<compile_context>
chip_gen: v7x
topology: tpu7x:2x2x1
jax: 0.10.0
libtpu: 0.0.40
codegen_flags: <defaults>
</compile_context>

<pallas_src>
import jax
import jax.numpy as jnp
from jax import lax
from jax.experimental import pallas as pl
from jax.experimental.pallas import tpu as pltpu

# ---------------- synthetic config (small shapes) ----------------
B = 2              # batch
S = 8              # video tokens per example (set size for DeepSets)
T = 8              # time-activity sequence length
V_NUM_EMB = 64
V_EMB_DIM = 32
PHI_HID, PHI_OUT = 64, 32
RHO_HID, RHO_OUT = 64, 32          # RhoConfig['out_features'] -> v_ffn input
T2V_DIM = 16                       # time_vector_input_size (== Time2Vec emb dim)
LSTM_HID = 32                      # time_vector_hidden_size
V_HID, V_OUT = 64, 16
T_HID, T_OUT = 64, 16
USER_DIM = 24
U_HID, U_OUT = 64, 24              # u_output_dim == user_features_dim (concat-dim math)
C_HID, C_OUT = 64, 1
CONCAT_DIM = USER_DIM + V_OUT + T_OUT   # 56

_VMEM = pl.BlockSpec(memory_space=pltpu.MemorySpace.VMEM)
_N_INPUTS = 35


# ---------------- fused forward kernel ----------------
def _genapon_kernel(
    tok_ref, emb_ref, time_ref, user_ref,
    pw1_ref, pb1_ref, pw2_ref, pb2_ref,
    rw1_ref, rb1_ref, rw2_ref, rb2_ref,
    t2v_w_ref, t2v_b_ref,
    wih_ref, whh_ref, lstm_b_ref,
    vw1_ref, vb1_ref, vw2_ref, vb2_ref,
    tw1_ref, tb1_ref, tw2_ref, tb2_ref,
    uw1_ref, ub1_ref, uw2_ref, ub2_ref,
    cw1u_ref, cw1v_ref, cw1t_ref, cb1_ref, cw2_ref, cb2_ref,
    o_ref,
):
    f32 = jnp.float32

    def mlp(x, w1, b1, w2, b2):
        # TODO(synk): dropout is identity in eval mode; not implemented in-kernel.
        h = jnp.maximum(jnp.dot(x, w1, preferred_element_type=f32) + b1, 0.0)
        return jnp.dot(h, w2, preferred_element_type=f32) + b2

    # ===== video branch: embedding gather (one-hot matmul) -> DeepSets -> v_ffn =====
    tok = tok_ref[...]                                               # (B*S, 1) int32
    vocab_iota = lax.broadcasted_iota(jnp.int32, (B * S, V_NUM_EMB), 1)
    one_hot = (vocab_iota == tok).astype(f32)                        # (B*S, V)
    v_emb = jnp.dot(one_hot, emb_ref[...], preferred_element_type=f32)   # (B*S, E)

    # phi MLP applied per set element
    phi = mlp(v_emb, pw1_ref[...], pb1_ref[...], pw2_ref[...], pb2_ref[...])  # (B*S, PHI_OUT)

    # permutation-invariant sum pool over S via a (B, B*S) block-pooling matmul
    row = lax.broadcasted_iota(jnp.int32, (B, B * S), 0)
    col = lax.broadcasted_iota(jnp.int32, (B, B * S), 1)
    pool = ((col >= row * S) & (col < (row + 1) * S)).astype(f32)    # (B, B*S)
    pooled = jnp.dot(pool, phi, preferred_element_type=f32)          # (B, PHI_OUT)

    video = mlp(pooled, rw1_ref[...], rb1_ref[...], rw2_ref[...], rb2_ref[...])  # (B, RHO_OUT)
    video = mlp(video, vw1_ref[...], vb1_ref[...], vw2_ref[...], vb2_ref[...])   # (B, V_OUT)

    # ===== time branch: Time2Vec -> LSTM (final hidden h_n) -> t_ffn =====
    # time_ref: (T*B, 1), time-major flatten; lane axis carries the T2V dim.
    raw = time_ref[...] * t2v_w_ref[...] + t2v_b_ref[...]            # (T*B, D)
    lane = lax.broadcasted_iota(jnp.int32, raw.shape, 1)
    # Time2Vec: channel 0 linear, channels 1: sin (linear-term-first convention)
    x = jnp.where(lane == 0, raw, jnp.sin(raw))                      # (T*B, D)

    # hoist the input projection out of the serial recurrence
    x_proj = (jnp.dot(x, wih_ref[...], preferred_element_type=f32)
              + lstm_b_ref[...])                                     # (T*B, 4H)

    whh = whh_ref[...]                                               # (H, 4H)
    H = LSTM_HID
    gate_lane = lax.broadcasted_iota(jnp.int32, (B, 4 * H), 1)       # hoisted mask
    is_g = (gate_lane >= 2 * H) & (gate_lane < 3 * H)

    h = jnp.zeros((B, H), f32)
    c = jnp.zeros((B, H), f32)
    for ti in range(T):                                              # static unroll (T=8)
        gates = (x_proj[ti * B:(ti + 1) * B, :]
                 + jnp.dot(h, whh, preferred_element_type=f32))      # (B, 4H)
        # one masked activation pass over the full 128-lane gates vreg
        act = jnp.where(is_g, jnp.tanh(gates), jax.nn.sigmoid(gates))
        i_g = act[:, 0 * H:1 * H]                                    # PyTorch gate order i,f,g,o
        f_g = act[:, 1 * H:2 * H]
        g_g = act[:, 2 * H:3 * H]
        o_g = act[:, 3 * H:4 * H]
        c = f_g * c + i_g * g_g
        h = o_g * jnp.tanh(c)

    time_feat = mlp(h, tw1_ref[...], tb1_ref[...], tw2_ref[...], tb2_ref[...])   # (B, T_OUT)

    # ===== user branch =====
    user_out = mlp(user_ref[...], uw1_ref[...], ub1_ref[...], uw2_ref[...], ub2_ref[...])  # (B, U_OUT)

    # ===== classification tower on concat([user, video, time], dim=-1) =====
    # concat-then-matmul expressed as a sum of three block matmuls (no lane concat)
    h1 = (jnp.dot(user_out, cw1u_ref[...], preferred_element_type=f32)
          + jnp.dot(video, cw1v_ref[...], preferred_element_type=f32)
          + jnp.dot(time_feat, cw1t_ref[...], preferred_element_type=f32)
          + cb1_ref[...])
    h1 = jnp.maximum(h1, 0.0)
    o_ref[...] = jnp.dot(h1, cw2_ref[...], preferred_element_type=f32) + cb2_ref[...]


def genapon_fused(*args):
    assert len(args) == _N_INPUTS
    return pl.pallas_call(
        _genapon_kernel,
        out_shape=jax.ShapeDtypeStruct((B, C_OUT), jnp.float32),
        in_specs=[_VMEM] * _N_INPUTS,
        out_specs=_VMEM,
    )(*args)


# ---------------- deterministic parameter init ----------------
def dense_params(key, din, dhid, dout):
    k1, k2, k3, k4 = jax.random.split(key, 4)
    w1 = jax.random.normal(k1, (din, dhid), jnp.float32) / jnp.sqrt(din)
    b1 = jax.random.normal(k2, (1, dhid), jnp.float32) * 0.01
    w2 = jax.random.normal(k3, (dhid, dout), jnp.float32) / jnp.sqrt(dhid)
    b2 = jax.random.normal(k4, (1, dout), jnp.float32) * 0.01
    return (w1, b1, w2, b2)


if __name__ == "__main__":
    key = jax.random.PRNGKey(0)
    keys = jax.random.split(key, 18)

    # parameters
    emb_table = jax.random.normal(keys[0], (V_NUM_EMB, V_EMB_DIM), jnp.float32)
    phi_p = dense_params(keys[1], V_EMB_DIM, PHI_HID, PHI_OUT)
    rho_p = dense_params(keys[2], PHI_OUT, RHO_HID, RHO_OUT)
    t2v_w = jax.random.normal(keys[3], (1, T2V_DIM), jnp.float32) * 0.5
    t2v_b = jax.random.normal(keys[4], (1, T2V_DIM), jnp.float32) * 0.1
    # torch LSTM params: weight_ih (4H, D), weight_hh (4H, H), bias_ih/hh (4H,)
    wih = jax.random.normal(keys[5], (4 * LSTM_HID, T2V_DIM), jnp.float32) / jnp.sqrt(LSTM_HID)
    whh = jax.random.normal(keys[6], (4 * LSTM_HID, LSTM_HID), jnp.float32) / jnp.sqrt(LSTM_HID)
    b_ih = jax.random.normal(keys[7], (4 * LSTM_HID,), jnp.float32) * 0.01
    b_hh = jax.random.normal(keys[8], (4 * LSTM_HID,), jnp.float32) * 0.01
    lstm_bias = (b_ih + b_hh).reshape(1, 4 * LSTM_HID)
    v_ffn_p = dense_params(keys[9], RHO_OUT, V_HID, V_OUT)
    t_ffn_p = dense_params(keys[10], LSTM_HID, T_HID, T_OUT)
    u_ffn_p = dense_params(keys[11], USER_DIM, U_HID, U_OUT)
    c_ffn_p = dense_params(keys[12], CONCAT_DIM, C_HID, C_OUT)
    # split classification-tower W1 into per-branch blocks: [user | video | time]
    cw1, cb1, cw2, cb2 = c_ffn_p
    cw1_u = cw1[:USER_DIM]
    cw1_v = cw1[USER_DIM:USER_DIM + V_OUT]
    cw1_t = cw1[USER_DIM + V_OUT:]

    # inputs (the X dict of the torch module)
    video_id_tokens = jax.random.randint(keys[13], (B, S), 0, V_NUM_EMB)          # X['video_id_tokens']
    time_activity = jax.random.uniform(keys[14], (B, T), jnp.float32) * 10.0      # X['time_activity']
    user_features = jax.random.normal(keys[15], (B, USER_DIM), jnp.float32)       # X['user_features'] (B,1,F)->(B,F)

    @jax.jit
    def genapon_forward(tokens, time_act, user_feat):
        tok_flat = tokens.astype(jnp.int32).reshape(B * S, 1)    # row index = b*S + s
        time_flat = time_act.T.reshape(T * B, 1)                 # row index = t*B + b (time-major)
        logits = genapon_fused(
            tok_flat, emb_table, time_flat, user_feat,
            *phi_p, *rho_p,
            t2v_w, t2v_b,
            wih.T, whh.T, lstm_bias,
            *v_ffn_p, *t_ffn_p, *u_ffn_p,
            cw1_u, cw1_v, cw1_t, cb1, cw2, cb2,
        )
        return logits[:, None, :]                                # (B, 1, C_OUT) like torch

    out = genapon_forward(video_id_tokens, time_activity, user_features)
    jax.block_until_ready(out)
    assert out.shape == (B, 1, C_OUT) and out.dtype == jnp.float32
    assert bool(jnp.all(jnp.isfinite(out)))
    print("KERNEL_OK")
</pallas_src>

<mosaic_0001>
module attributes {stable_mosaic.version = 11 : i64} {
  func.func @_genapon_kernel(%arg0: memref<16x1xi32, #tpu.memory_space<vmem>>, %arg1: memref<64x32xf32, #tpu.memory_space<vmem>>, %arg2: memref<16x1xf32, #tpu.memory_space<vmem>>, %arg3: memref<2x24xf32, #tpu.memory_space<vmem>>, %arg4: memref<32x64xf32, #tpu.memory_space<vmem>>, %arg5: memref<1x64xf32, #tpu.memory_space<vmem>>, %arg6: memref<64x32xf32, #tpu.memory_space<vmem>>, %arg7: memref<1x32xf32, #tpu.memory_space<vmem>>, %arg8: memref<32x64xf32, #tpu.memory_space<vmem>>, %arg9: memref<1x64xf32, #tpu.memory_space<vmem>>, %arg10: memref<64x32xf32, #tpu.memory_space<vmem>>, %arg11: memref<1x32xf32, #tpu.memory_space<vmem>>, %arg12: memref<1x16xf32, #tpu.memory_space<vmem>>, %arg13: memref<1x16xf32, #tpu.memory_space<vmem>>, %arg14: memref<16x128xf32, #tpu.memory_space<vmem>>, %arg15: memref<32x128xf32, #tpu.memory_space<vmem>>, %arg16: memref<1x128xf32, #tpu.memory_space<vmem>>, %arg17: memref<32x64xf32, #tpu.memory_space<vmem>>, %arg18: memref<1x64xf32, #tpu.memory_space<vmem>>, %arg19: memref<64x16xf32, #tpu.memory_space<vmem>>, %arg20: memref<1x16xf32, #tpu.memory_space<vmem>>, %arg21: memref<32x64xf32, #tpu.memory_space<vmem>>, %arg22: memref<1x64xf32, #tpu.memory_space<vmem>>, %arg23: memref<64x16xf32, #tpu.memory_space<vmem>>, %arg24: memref<1x16xf32, #tpu.memory_space<vmem>>, %arg25: memref<24x64xf32, #tpu.memory_space<vmem>>, %arg26: memref<1x64xf32, #tpu.memory_space<vmem>>, %arg27: memref<64x24xf32, #tpu.memory_space<vmem>>, %arg28: memref<1x24xf32, #tpu.memory_space<vmem>>, %arg29: memref<24x64xf32, #tpu.memory_space<vmem>>, %arg30: memref<16x64xf32, #tpu.memory_space<vmem>>, %arg31: memref<16x64xf32, #tpu.memory_space<vmem>>, %arg32: memref<1x64xf32, #tpu.memory_space<vmem>>, %arg33: memref<64x1xf32, #tpu.memory_space<vmem>>, %arg34: memref<1x1xf32, #tpu.memory_space<vmem>>, %arg35: memref<2x1xf32, #tpu.memory_space<vmem>>) attributes {dimension_semantics = [], scalar_prefetch = 0 : i64, scratch_operands = 0 : i64, tpu.core_type = #tpu.core_type<tc>} {
    %c0 = arith.constant 0 : index
    %c0_0 = arith.constant 0 : index
    %0 = vector.load %arg0[%c0, %c0_0] : memref<16x1xi32, #tpu.memory_space<vmem>>, vector<16x1xi32>
    %1 = tpu.iota {dimensions = array<i32: 1>} : vector<16x64xi32>
    %2 = vector.broadcast %0 : vector<16x1xi32> to vector<16x64xi32>
    %3 = arith.cmpi eq, %1, %2 : vector<16x64xi32>
    %4 = arith.extui %3 : vector<16x64xi1> to vector<16x64xi32>
    %5 = arith.sitofp %4 : vector<16x64xi32> to vector<16x64xf32>
    %c0_1 = arith.constant 0 : index
    %c0_2 = arith.constant 0 : index
    %6 = vector.load %arg1[%c0_1, %c0_2] : memref<64x32xf32, #tpu.memory_space<vmem>>, vector<64x32xf32>
    %cst = arith.constant dense<0.000000e+00> : vector<16x32xf32>
    %7 = tpu.matmul %5, %6, %cst {dimension_numbers = #tpu.dot_dimension_numbers<[1], [0], [0], [1], [0, 0, 1, 1], [], []>} : vector<16x64xf32>, vector<64x32xf32>, vector<16x32xf32> -> vector<16x32xf32>
    %c0_3 = arith.constant 0 : index
    %c0_4 = arith.constant 0 : index
    %8 = vector.load %arg4[%c0_3, %c0_4] : memref<32x64xf32, #tpu.memory_space<vmem>>, vector<32x64xf32>
    %c0_5 = arith.constant 0 : index
    %c0_6 = arith.constant 0 : index
    %9 = vector.load %arg5[%c0_5, %c0_6] : memref<1x64xf32, #tpu.memory_space<vmem>>, vector<1x64xf32>
    %c0_7 = arith.constant 0 : index
    %c0_8 = arith.constant 0 : index
    %10 = vector.load %arg6[%c0_7, %c0_8] : memref<64x32xf32, #tpu.memory_space<vmem>>, vector<64x32xf32>
    %c0_9 = arith.constant 0 : index
    %c0_10 = arith.constant 0 : index
    %11 = vector.load %arg7[%c0_9, %c0_10] : memref<1x32xf32, #tpu.memory_space<vmem>>, vector<1x32xf32>
    %cst_11 = arith.constant dense<0.000000e+00> : vector<16x64xf32>
    %12 = tpu.matmul %7, %8, %cst_11 {dimension_numbers = #tpu.dot_dimension_numbers<[1], [0], [0], [1], [0, 0, 1, 1], [], []>} : vector<16x32xf32>, vector<32x64xf32>, vector<16x64xf32> -> vector<16x64xf32>
    %13 = vector.broadcast %9 : vector<1x64xf32> to vector<16x64xf32>
    %14 = arith.addf %12, %13 : vector<16x64xf32>
    %cst_12 = arith.constant 0.000000e+00 : f32
    %15 = vector.broadcast %cst_12 : f32 to vector<16x64xf32>
    %16 = arith.maximumf %14, %15 : vector<16x64xf32>
    %cst_13 = arith.constant dense<0.000000e+00> : vector<16x32xf32>
    %17 = tpu.matmul %16, %10, %cst_13 {dimension_numbers = #tpu.dot_dimension_numbers<[1], [0], [0], [1], [0, 0, 1, 1], [], []>} : vector<16x64xf32>, vector<64x32xf32>, vector<16x32xf32> -> vector<16x32xf32>
    %18 = vector.broadcast %11 : vector<1x32xf32> to vector<16x32xf32>
    %19 = arith.addf %17, %18 : vector<16x32xf32>
    %20 = tpu.iota {dimensions = array<i32: 0>} : vector<2x16xi32>
    %21 = tpu.iota {dimensions = array<i32: 1>} : vector<2x16xi32>
    %c8_i32 = arith.constant 8 : i32
    %22 = vector.broadcast %c8_i32 : i32 to vector<2x16xi32>
    %23 = arith.muli %20, %22 : vector<2x16xi32>
    %24 = arith.cmpi sge, %21, %23 : vector<2x16xi32>
    %c1_i32 = arith.constant 1 : i32
    %25 = vector.broadcast %c1_i32 : i32 to vector<2x16xi32>
    %26 = arith.addi %20, %25 : vector<2x16xi32>
    %c8_i32_14 = arith.constant 8 : i32
    %27 = vector.broadcast %c8_i32_14 : i32 to vector<2x16xi32>
    %28 = arith.muli %26, %27 : vector<2x16xi32>
    %29 = arith.cmpi slt, %21, %28 : vector<2x16xi32>
    %30 = arith.andi %24, %29 : vector<2x16xi1>
    %31 = arith.extui %30 : vector<2x16xi1> to vector<2x16xi32>
    %32 = arith.sitofp %31 : vector<2x16xi32> to vector<2x16xf32>
    %cst_15 = arith.constant dense<0.000000e+00> : vector<2x32xf32>
    %33 = tpu.matmul %32, %19, %cst_15 {dimension_numbers = #tpu.dot_dimension_numbers<[1], [0], [0], [1], [0, 0, 1, 1], [], []>} : vector<2x16xf32>, vector<16x32xf32>, vector<2x32xf32> -> vector<2x32xf32>
    %c0_16 = arith.constant 0 : index
    %c0_17 = arith.constant 0 : index
    %34 = vector.load %arg8[%c0_16, %c0_17] : memref<32x64xf32, #tpu.memory_space<vmem>>, vector<32x64xf32>
    %c0_18 = arith.constant 0 : index
    %c0_19 = arith.constant 0 : index
    %35 = vector.load %arg9[%c0_18, %c0_19] : memref<1x64xf32, #tpu.memory_space<vmem>>, vector<1x64xf32>
    %c0_20 = arith.constant 0 : index
    %c0_21 = arith.constant 0 : index
    %36 = vector.load %arg10[%c0_20, %c0_21] : memref<64x32xf32, #tpu.memory_space<vmem>>, vector<64x32xf32>
    %c0_22 = arith.constant 0 : index
    %c0_23 = arith.constant 0 : index
    %37 = vector.load %arg11[%c0_22, %c0_23] : memref<1x32xf32, #tpu.memory_space<vmem>>, vector<1x32xf32>
    %cst_24 = arith.constant dense<0.000000e+00> : vector<2x64xf32>
    %38 = tpu.matmul %33, %34, %cst_24 {dimension_numbers = #tpu.dot_dimension_numbers<[1], [0], [0], [1], [0, 0, 1, 1], [], []>} : vector<2x32xf32>, vector<32x64xf32>, vector<2x64xf32> -> vector<2x64xf32>
    %39 = vector.broadcast %35 : vector<1x64xf32> to vector<2x64xf32>
    %40 = arith.addf %38, %39 : vector<2x64xf32>
    %cst_25 = arith.constant 0.000000e+00 : f32
    %41 = vector.broadcast %cst_25 : f32 to vector<2x64xf32>
    %42 = arith.maximumf %40, %41 : vector<2x64xf32>
    %cst_26 = arith.constant dense<0.000000e+00> : vector<2x32xf32>
    %43 = tpu.matmul %42, %36, %cst_26 {dimension_numbers = #tpu.dot_dimension_numbers<[1], [0], [0], [1], [0, 0, 1, 1], [], []>} : vector<2x64xf32>, vector<64x32xf32>, vector<2x32xf32> -> vector<2x32xf32>
    %44 = vector.broadcast %37 : vector<1x32xf32> to vector<2x32xf32>
    %45 = arith.addf %43, %44 : vector<2x32xf32>
    %c0_27 = arith.constant 0 : index
    %c0_28 = arith.constant 0 : index
    %46 = vector.load %arg17[%c0_27, %c0_28] : memref<32x64xf32, #tpu.memory_space<vmem>>, vector<32x64xf32>
    %c0_29 = arith.constant 0 : index
    %c0_30 = arith.constant 0 : index
    %47 = vector.load %arg18[%c0_29, %c0_30] : memref<1x64xf32, #tpu.memory_space<vmem>>, vector<1x64xf32>
    %c0_31 = arith.constant 0 : index
    %c0_32 = arith.constant 0 : index
    %48 = vector.load %arg19[%c0_31, %c0_32] : memref<64x16xf32, #tpu.memory_space<vmem>>, vector<64x16xf32>
    %c0_33 = arith.constant 0 : index
    %c0_34 = arith.constant 0 : index
    %49 = vector.load %arg20[%c0_33, %c0_34] : memref<1x16xf32, #tpu.memory_space<vmem>>, vector<1x16xf32>
    %cst_35 = arith.constant dense<0.000000e+00> : vector<2x64xf32>
    %50 = tpu.matmul %45, %46, %cst_35 {dimension_numbers = #tpu.dot_dimension_numbers<[1], [0], [0], [1], [0, 0, 1, 1], [], []>} : vector<2x32xf32>, vector<32x64xf32>, vector<2x64xf32> -> vector<2x64xf32>
    %51 = vector.broadcast %47 : vector<1x64xf32> to vector<2x64xf32>
    %52 = arith.addf %50, %51 : vector<2x64xf32>
    %cst_36 = arith.constant 0.000000e+00 : f32
    %53 = vector.broadcast %cst_36 : f32 to vector<2x64xf32>
    %54 = arith.maximumf %52, %53 : vector<2x64xf32>
    %cst_37 = arith.constant dense<0.000000e+00> : vector<2x16xf32>
    %55 = tpu.matmul %54, %48, %cst_37 {dimension_numbers = #tpu.dot_dimension_numbers<[1], [0], [0], [1], [0, 0, 1, 1], [], []>} : vector<2x64xf32>, vector<64x16xf32>, vector<2x16xf32> -> vector<2x16xf32>
    %56 = vector.broadcast %49 : vector<1x16xf32> to vector<2x16xf32>
    %57 = arith.addf %55, %56 : vector<2x16xf32>
    %c0_38 = arith.constant 0 : index
    %c0_39 = arith.constant 0 : index
    %58 = vector.load %arg2[%c0_38, %c0_39] : memref<16x1xf32, #tpu.memory_space<vmem>>, vector<16x1xf32>
    %c0_40 = arith.constant 0 : index
    %c0_41 = arith.constant 0 : index
    %59 = vector.load %arg12[%c0_40, %c0_41] : memref<1x16xf32, #tpu.memory_space<vmem>>, vector<1x16xf32>
    %60 = vector.broadcast %58 : vector<16x1xf32> to vector<16x16xf32>
    %61 = vector.broadcast %59 : vector<1x16xf32> to vector<16x16xf32>
    %62 = arith.mulf %60, %61 : vector<16x16xf32>
    %c0_42 = arith.constant 0 : index
    %c0_43 = arith.constant 0 : index
    %63 = vector.load %arg13[%c0_42, %c0_43] : memref<1x16xf32, #tpu.memory_space<vmem>>, vector<1x16xf32>
    %64 = vector.broadcast %63 : vector<1x16xf32> to vector<16x16xf32>
    %65 = arith.addf %62, %64 : vector<16x16xf32>
    %66 = tpu.iota {dimensions = array<i32: 1>} : vector<16x16xi32>
    %c0_i32 = arith.constant 0 : i32
    %67 = vector.broadcast %c0_i32 : i32 to vector<16x16xi32>
    %68 = arith.cmpi eq, %66, %67 : vector<16x16xi32>
    %69 = math.sin %65 : vector<16x16xf32>
    %70 = arith.select %68, %65, %69 : vector<16x16xi1>, vector<16x16xf32>
    %c0_44 = arith.constant 0 : index
    %c0_45 = arith.constant 0 : index
    %71 = vector.load %arg14[%c0_44, %c0_45] : memref<16x128xf32, #tpu.memory_space<vmem>>, vector<16x128xf32>
    %cst_46 = arith.constant dense<0.000000e+00> : vector<16x128xf32>
    %72 = tpu.matmul %70, %71, %cst_46 {dimension_numbers = #tpu.dot_dimension_numbers<[1], [0], [0], [1], [0, 0, 1, 1], [], []>} : vector<16x16xf32>, vector<16x128xf32>, vector<16x128xf32> -> vector<16x128xf32>
    %c0_47 = arith.constant 0 : index
    %c0_48 = arith.constant 0 : index
    %73 = vector.load %arg16[%c0_47, %c0_48] : memref<1x128xf32, #tpu.memory_space<vmem>>, vector<1x128xf32>
    %74 = vector.broadcast %73 : vector<1x128xf32> to vector<16x128xf32>
    %75 = arith.addf %72, %74 : vector<16x128xf32>
    %c0_49 = arith.constant 0 : index
    %c0_50 = arith.constant 0 : index
    %76 = vector.load %arg15[%c0_49, %c0_50] : memref<32x128xf32, #tpu.memory_space<vmem>>, vector<32x128xf32>
    %77 = tpu.iota {dimensions = array<i32: 1>} : vector<2x128xi32>
    %c64_i32 = arith.constant 64 : i32
    %78 = vector.broadcast %c64_i32 : i32 to vector<2x128xi32>
    %79 = arith.cmpi sge, %77, %78 : vector<2x128xi32>
    %c96_i32 = arith.constant 96 : i32
    %80 = vector.broadcast %c96_i32 : i32 to vector<2x128xi32>
    %81 = arith.cmpi slt, %77, %80 : vector<2x128xi32>
    %82 = arith.andi %79, %81 : vector<2x128xi1>
    %cst_51 = arith.constant 0.000000e+00 : f32
    %83 = vector.broadcast %cst_51 : f32 to vector<2x32xf32>
    %cst_52 = arith.constant 0.000000e+00 : f32
    %84 = vector.broadcast %cst_52 : f32 to vector<2x32xf32>
    %85 = vector.extract_strided_slice %75 {offsets = [0, 0], sizes = [2, 128], strides = [1, 1]} : vector<16x128xf32> to vector<2x128xf32>
    %cst_53 = arith.constant dense<0.000000e+00> : vector<2x128xf32>
    %86 = tpu.matmul %83, %76, %cst_53 {dimension_numbers = #tpu.dot_dimension_numbers<[1], [0], [0], [1], [0, 0, 1, 1], [], []>} : vector<2x32xf32>, vector<32x128xf32>, vector<2x128xf32> -> vector<2x128xf32>
    %87 = arith.addf %85, %86 : vector<2x128xf32>
    %88 = math.tanh %87 : vector<2x128xf32>
    %89 = arith.negf %87 : vector<2x128xf32>
    %90 = math.exp %89 : vector<2x128xf32>
    %cst_54 = arith.constant 1.000000e+00 : f32
    %91 = vector.broadcast %cst_54 : f32 to vector<2x128xf32>
    %92 = arith.addf %91, %90 : vector<2x128xf32>
    %93 = arith.divf %91, %92 : vector<2x128xf32>
    %94 = arith.select %82, %88, %93 : vector<2x128xi1>, vector<2x128xf32>
    %95 = vector.extract_strided_slice %94 {offsets = [0, 0], sizes = [2, 32], strides = [1, 1]} : vector<2x128xf32> to vector<2x32xf32>
    %96 = vector.extract_strided_slice %94 {offsets = [0, 32], sizes = [2, 32], strides = [1, 1]} : vector<2x128xf32> to vector<2x32xf32>
    %97 = vector.extract_strided_slice %94 {offsets = [0, 64], sizes = [2, 32], strides = [1, 1]} : vector<2x128xf32> to vector<2x32xf32>
    %98 = vector.extract_strided_slice %94 {offsets = [0, 96], sizes = [2, 32], strides = [1, 1]} : vector<2x128xf32> to vector<2x32xf32>
    %99 = arith.mulf %96, %84 : vector<2x32xf32>
    %100 = arith.mulf %95, %97 : vector<2x32xf32>
    %101 = arith.addf %99, %100 : vector<2x32xf32>
    %102 = math.tanh %101 : vector<2x32xf32>
    %103 = arith.mulf %98, %102 : vector<2x32xf32>
    %104 = vector.extract_strided_slice %75 {offsets = [2, 0], sizes = [2, 128], strides = [1, 1]} : vector<16x128xf32> to vector<2x128xf32>
    %cst_55 = arith.constant dense<0.000000e+00> : vector<2x128xf32>
    %105 = tpu.matmul %103, %76, %cst_55 {dimension_numbers = #tpu.dot_dimension_numbers<[1], [0], [0], [1], [0, 0, 1, 1], [], []>} : vector<2x32xf32>, vector<32x128xf32>, vector<2x128xf32> -> vector<2x128xf32>
    %106 = arith.addf %104, %105 : vector<2x128xf32>
    %107 = math.tanh %106 : vector<2x128xf32>
    %108 = arith.negf %106 : vector<2x128xf32>
    %109 = math.exp %108 : vector<2x128xf32>
    %cst_56 = arith.constant 1.000000e+00 : f32
    %110 = vector.broadcast %cst_56 : f32 to vector<2x128xf32>
    %111 = arith.addf %110, %109 : vector<2x128xf32>
    %112 = arith.divf %110, %111 : vector<2x128xf32>
    %113 = arith.select %82, %107, %112 : vector<2x128xi1>, vector<2x128xf32>
    %114 = vector.extract_strided_slice %113 {offsets = [0, 0], sizes = [2, 32], strides = [1, 1]} : vector<2x128xf32> to vector<2x32xf32>
    %115 = vector.extract_strided_slice %113 {offsets = [0, 32], sizes = [2, 32], strides = [1, 1]} : vector<2x128xf32> to vector<2x32xf32>
    %116 = vector.extract_strided_slice %113 {offsets = [0, 64], sizes = [2, 32], strides = [1, 1]} : vector<2x128xf32> to vector<2x32xf32>
    %117 = vector.extract_strided_slice %113 {offsets = [0, 96], sizes = [2, 32], strides = [1, 1]} : vector<2x128xf32> to vector<2x32xf32>
    %118 = arith.mulf %115, %101 : vector<2x32xf32>
    %119 = arith.mulf %114, %116 : vector<2x32xf32>
    %120 = arith.addf %118, %119 : vector<2x32xf32>
    %121 = math.tanh %120 : vector<2x32xf32>
    %122 = arith.mulf %117, %121 : vector<2x32xf32>
    %123 = vector.extract_strided_slice %75 {offsets = [4, 0], sizes = [2, 128], strides = [1, 1]} : vector<16x128xf32> to vector<2x128xf32>
    %cst_57 = arith.constant dense<0.000000e+00> : vector<2x128xf32>
    %124 = tpu.matmul %122, %76, %cst_57 {dimension_numbers = #tpu.dot_dimension_numbers<[1], [0], [0], [1], [0, 0, 1, 1], [], []>} : vector<2x32xf32>, vector<32x128xf32>, vector<2x128xf32> -> vector<2x128xf32>
    %125 = arith.addf %123, %124 : vector<2x128xf32>
    %126 = math.tanh %125 : vector<2x128xf32>
    %127 = arith.negf %125 : vector<2x128xf32>
    %128 = math.exp %127 : vector<2x128xf32>
    %cst_58 = arith.constant 1.000000e+00 : f32
    %129 = vector.broadcast %cst_58 : f32 to vector<2x128xf32>
    %130 = arith.addf %129, %128 : vector<2x128xf32>
    %131 = arith.divf %129, %130 : vector<2x128xf32>
    %132 = arith.select %82, %126, %131 : vector<2x128xi1>, vector<2x128xf32>
    %133 = vector.extract_strided_slice %132 {offsets = [0, 0], sizes = [2, 32], strides = [1, 1]} : vector<2x128xf32> to vector<2x32xf32>
    %134 = vector.extract_strided_slice %132 {offsets = [0, 32], sizes = [2, 32], strides = [1, 1]} : vector<2x128xf32> to vector<2x32xf32>
    %135 = vector.extract_strided_slice %132 {offsets = [0, 64], sizes = [2, 32], strides = [1, 1]} : vector<2x128xf32> to vector<2x32xf32>
    %136 = vector.extract_strided_slice %132 {offsets = [0, 96], sizes = [2, 32], strides = [1, 1]} : vector<2x128xf32> to vector<2x32xf32>
    %137 = arith.mulf %134, %120 : vector<2x32xf32>
    %138 = arith.mulf %133, %135 : vector<2x32xf32>
    %139 = arith.addf %137, %138 : vector<2x32xf32>
    %140 = math.tanh %139 : vector<2x32xf32>
    %141 = arith.mulf %136, %140 : vector<2x32xf32>
    %142 = vector.extract_strided_slice %75 {offsets = [6, 0], sizes = [2, 128], strides = [1, 1]} : vector<16x128xf32> to vector<2x128xf32>
    %cst_59 = arith.constant dense<0.000000e+00> : vector<2x128xf32>
    %143 = tpu.matmul %141, %76, %cst_59 {dimension_numbers = #tpu.dot_dimension_numbers<[1], [0], [0], [1], [0, 0, 1, 1], [], []>} : vector<2x32xf32>, vector<32x128xf32>, vector<2x128xf32> -> vector<2x128xf32>
    %144 = arith.addf %142, %143 : vector<2x128xf32>
    %145 = math.tanh %144 : vector<2x128xf32>
    %146 = arith.negf %144 : vector<2x128xf32>
    %147 = math.exp %146 : vector<2x128xf32>
    %cst_60 = arith.constant 1.000000e+00 : f32
    %148 = vector.broadcast %cst_60 : f32 to vector<2x128xf32>
    %149 = arith.addf %148, %147 : vector<2x128xf32>
    %150 = arith.divf %148, %149 : vector<2x128xf32>
    %151 = arith.select %82, %145, %150 : vector<2x128xi1>, vector<2x128xf32>
    %152 = vector.extract_strided_slice %151 {offsets = [0, 0], sizes = [2, 32], strides = [1, 1]} : vector<2x128xf32> to vector<2x32xf32>
    %153 = vector.extract_strided_slice %151 {offsets = [0, 32], sizes = [2, 32], strides = [1, 1]} : vector<2x128xf32> to vector<2x32xf32>
    %154 = vector.extract_strided_slice %151 {offsets = [0, 64], sizes = [2, 32], strides = [1, 1]} : vector<2x128xf32> to vector<2x32xf32>
    %155 = vector.extract_strided_slice %151 {offsets = [0, 96], sizes = [2, 32], strides = [1, 1]} : vector<2x128xf32> to vector<2x32xf32>
    %156 = arith.mulf %153, %139 : vector<2x32xf32>
    %157 = arith.mulf %152, %154 : vector<2x32xf32>
    %158 = arith.addf %156, %157 : vector<2x32xf32>
    %159 = math.tanh %158 : vector<2x32xf32>
    %160 = arith.mulf %155, %159 : vector<2x32xf32>
    %161 = vector.extract_strided_slice %75 {offsets = [8, 0], sizes = [2, 128], strides = [1, 1]} : vector<16x128xf32> to vector<2x128xf32>
    %cst_61 = arith.constant dense<0.000000e+00> : vector<2x128xf32>
    %162 = tpu.matmul %160, %76, %cst_61 {dimension_numbers = #tpu.dot_dimension_numbers<[1], [0], [0], [1], [0, 0, 1, 1], [], []>} : vector<2x32xf32>, vector<32x128xf32>, vector<2x128xf32> -> vector<2x128xf32>
    %163 = arith.addf %161, %162 : vector<2x128xf32>
    %164 = math.tanh %163 : vector<2x128xf32>
    %165 = arith.negf %163 : vector<2x128xf32>
    %166 = math.exp %165 : vector<2x128xf32>
    %cst_62 = arith.constant 1.000000e+00 : f32
    %167 = vector.broadcast %cst_62 : f32 to vector<2x128xf32>
    %168 = arith.addf %167, %166 : vector<2x128xf32>
    %169 = arith.divf %167, %168 : vector<2x128xf32>
    %170 = arith.select %82, %164, %169 : vector<2x128xi1>, vector<2x128xf32>
    %171 = vector.extract_strided_slice %170 {offsets = [0, 0], sizes = [2, 32], strides = [1, 1]} : vector<2x128xf32> to vector<2x32xf32>
    %172 = vector.extract_strided_slice %170 {offsets = [0, 32], sizes = [2, 32], strides = [1, 1]} : vector<2x128xf32> to vector<2x32xf32>
    %173 = vector.extract_strided_slice %170 {offsets = [0, 64], sizes = [2, 32], strides = [1, 1]} : vector<2x128xf32> to vector<2x32xf32>
    %174 = vector.extract_strided_slice %170 {offsets = [0, 96], sizes = [2, 32], strides = [1, 1]} : vector<2x128xf32> to vector<2x32xf32>
    %175 = arith.mulf %172, %158 : vector<2x32xf32>
    %176 = arith.mulf %171, %173 : vector<2x32xf32>
    %177 = arith.addf %175, %176 : vector<2x32xf32>
    %178 = math.tanh %177 : vector<2x32xf32>
    %179 = arith.mulf %174, %178 : vector<2x32xf32>
    %180 = vector.extract_strided_slice %75 {offsets = [10, 0], sizes = [2, 128], strides = [1, 1]} : vector<16x128xf32> to vector<2x128xf32>
    %cst_63 = arith.constant dense<0.000000e+00> : vector<2x128xf32>
    %181 = tpu.matmul %179, %76, %cst_63 {dimension_numbers = #tpu.dot_dimension_numbers<[1], [0], [0], [1], [0, 0, 1, 1], [], []>} : vector<2x32xf32>, vector<32x128xf32>, vector<2x128xf32> -> vector<2x128xf32>
    %182 = arith.addf %180, %181 : vector<2x128xf32>
    %183 = math.tanh %182 : vector<2x128xf32>
    %184 = arith.negf %182 : vector<2x128xf32>
    %185 = math.exp %184 : vector<2x128xf32>
    %cst_64 = arith.constant 1.000000e+00 : f32
    %186 = vector.broadcast %cst_64 : f32 to vector<2x128xf32>
    %187 = arith.addf %186, %185 : vector<2x128xf32>
    %188 = arith.divf %186, %187 : vector<2x128xf32>
    %189 = arith.select %82, %183, %188 : vector<2x128xi1>, vector<2x128xf32>
    %190 = vector.extract_strided_slice %189 {offsets = [0, 0], sizes = [2, 32], strides = [1, 1]} : vector<2x128xf32> to vector<2x32xf32>
    %191 = vector.extract_strided_slice %189 {offsets = [0, 32], sizes = [2, 32], strides = [1, 1]} : vector<2x128xf32> to vector<2x32xf32>
    %192 = vector.extract_strided_slice %189 {offsets = [0, 64], sizes = [2, 32], strides = [1, 1]} : vector<2x128xf32> to vector<2x32xf32>
    %193 = vector.extract_strided_slice %189 {offsets = [0, 96], sizes = [2, 32], strides = [1, 1]} : vector<2x128xf32> to vector<2x32xf32>
    %194 = arith.mulf %191, %177 : vector<2x32xf32>
    %195 = arith.mulf %190, %192 : vector<2x32xf32>
    %196 = arith.addf %194, %195 : vector<2x32xf32>
    %197 = math.tanh %196 : vector<2x32xf32>
    %198 = arith.mulf %193, %197 : vector<2x32xf32>
    %199 = vector.extract_strided_slice %75 {offsets = [12, 0], sizes = [2, 128], strides = [1, 1]} : vector<16x128xf32> to vector<2x128xf32>
    %cst_65 = arith.constant dense<0.000000e+00> : vector<2x128xf32>
    %200 = tpu.matmul %198, %76, %cst_65 {dimension_numbers = #tpu.dot_dimension_numbers<[1], [0], [0], [1], [0, 0, 1, 1], [], []>} : vector<2x32xf32>, vector<32x128xf32>, vector<2x128xf32> -> vector<2x128xf32>
    %201 = arith.addf %199, %200 : vector<2x128xf32>
    %202 = math.tanh %201 : vector<2x128xf32>
    %203 = arith.negf %201 : vector<2x128xf32>
    %204 = math.exp %203 : vector<2x128xf32>
    %cst_66 = arith.constant 1.000000e+00 : f32
    %205 = vector.broadcast %cst_66 : f32 to vector<2x128xf32>
    %206 = arith.addf %205, %204 : vector<2x128xf32>
    %207 = arith.divf %205, %206 : vector<2x128xf32>
    %208 = arith.select %82, %202, %207 : vector<2x128xi1>, vector<2x128xf32>
    %209 = vector.extract_strided_slice %208 {offsets = [0, 0], sizes = [2, 32], strides = [1, 1]} : vector<2x128xf32> to vector<2x32xf32>
    %210 = vector.extract_strided_slice %208 {offsets = [0, 32], sizes = [2, 32], strides = [1, 1]} : vector<2x128xf32> to vector<2x32xf32>
    %211 = vector.extract_strided_slice %208 {offsets = [0, 64], sizes = [2, 32], strides = [1, 1]} : vector<2x128xf32> to vector<2x32xf32>
    %212 = vector.extract_strided_slice %208 {offsets = [0, 96], sizes = [2, 32], strides = [1, 1]} : vector<2x128xf32> to vector<2x32xf32>
    %213 = arith.mulf %210, %196 : vector<2x32xf32>
    %214 = arith.mulf %209, %211 : vector<2x32xf32>
    %215 = arith.addf %213, %214 : vector<2x32xf32>
    %216 = math.tanh %215 : vector<2x32xf32>
    %217 = arith.mulf %212, %216 : vector<2x32xf32>
    %218 = vector.extract_strided_slice %75 {offsets = [14, 0], sizes = [2, 128], strides = [1, 1]} : vector<16x128xf32> to vector<2x128xf32>
    %cst_67 = arith.constant dense<0.000000e+00> : vector<2x128xf32>
    %219 = tpu.matmul %217, %76, %cst_67 {dimension_numbers = #tpu.dot_dimension_numbers<[1], [0], [0], [1], [0, 0, 1, 1], [], []>} : vector<2x32xf32>, vector<32x128xf32>, vector<2x128xf32> -> vector<2x128xf32>
    %220 = arith.addf %218, %219 : vector<2x128xf32>
    %221 = math.tanh %220 : vector<2x128xf32>
    %222 = arith.negf %220 : vector<2x128xf32>
    %223 = math.exp %222 : vector<2x128xf32>
    %cst_68 = arith.constant 1.000000e+00 : f32
    %224 = vector.broadcast %cst_68 : f32 to vector<2x128xf32>
    %225 = arith.addf %224, %223 : vector<2x128xf32>
    %226 = arith.divf %224, %225 : vector<2x128xf32>
    %227 = arith.select %82, %221, %226 : vector<2x128xi1>, vector<2x128xf32>
    %228 = vector.extract_strided_slice %227 {offsets = [0, 0], sizes = [2, 32], strides = [1, 1]} : vector<2x128xf32> to vector<2x32xf32>
    %229 = vector.extract_strided_slice %227 {offsets = [0, 32], sizes = [2, 32], strides = [1, 1]} : vector<2x128xf32> to vector<2x32xf32>
    %230 = vector.extract_strided_slice %227 {offsets = [0, 64], sizes = [2, 32], strides = [1, 1]} : vector<2x128xf32> to vector<2x32xf32>
    %231 = vector.extract_strided_slice %227 {offsets = [0, 96], sizes = [2, 32], strides = [1, 1]} : vector<2x128xf32> to vector<2x32xf32>
    %232 = arith.mulf %229, %215 : vector<2x32xf32>
    %233 = arith.mulf %228, %230 : vector<2x32xf32>
    %234 = arith.addf %232, %233 : vector<2x32xf32>
    %235 = math.tanh %234 : vector<2x32xf32>
    %236 = arith.mulf %231, %235 : vector<2x32xf32>
    %c0_69 = arith.constant 0 : index
    %c0_70 = arith.constant 0 : index
    %237 = vector.load %arg21[%c0_69, %c0_70] : memref<32x64xf32, #tpu.memory_space<vmem>>, vector<32x64xf32>
    %c0_71 = arith.constant 0 : index
    %c0_72 = arith.constant 0 : index
    %238 = vector.load %arg22[%c0_71, %c0_72] : memref<1x64xf32, #tpu.memory_space<vmem>>, vector<1x64xf32>
    %c0_73 = arith.constant 0 : index
    %c0_74 = arith.constant 0 : index
    %239 = vector.load %arg23[%c0_73, %c0_74] : memref<64x16xf32, #tpu.memory_space<vmem>>, vector<64x16xf32>
    %c0_75 = arith.constant 0 : index
    %c0_76 = arith.constant 0 : index
    %240 = vector.load %arg24[%c0_75, %c0_76] : memref<1x16xf32, #tpu.memory_space<vmem>>, vector<1x16xf32>
    %cst_77 = arith.constant dense<0.000000e+00> : vector<2x64xf32>
    %241 = tpu.matmul %236, %237, %cst_77 {dimension_numbers = #tpu.dot_dimension_numbers<[1], [0], [0], [1], [0, 0, 1, 1], [], []>} : vector<2x32xf32>, vector<32x64xf32>, vector<2x64xf32> -> vector<2x64xf32>
    %242 = vector.broadcast %238 : vector<1x64xf32> to vector<2x64xf32>
    %243 = arith.addf %241, %242 : vector<2x64xf32>
    %cst_78 = arith.constant 0.000000e+00 : f32
    %244 = vector.broadcast %cst_78 : f32 to vector<2x64xf32>
    %245 = arith.maximumf %243, %244 : vector<2x64xf32>
    %cst_79 = arith.constant dense<0.000000e+00> : vector<2x16xf32>
    %246 = tpu.matmul %245, %239, %cst_79 {dimension_numbers = #tpu.dot_dimension_numbers<[1], [0], [0], [1], [0, 0, 1, 1], [], []>} : vector<2x64xf32>, vector<64x16xf32>, vector<2x16xf32> -> vector<2x16xf32>
    %247 = vector.broadcast %240 : vector<1x16xf32> to vector<2x16xf32>
    %248 = arith.addf %246, %247 : vector<2x16xf32>
    %c0_80 = arith.constant 0 : index
    %c0_81 = arith.constant 0 : index
    %249 = vector.load %arg3[%c0_80, %c0_81] : memref<2x24xf32, #tpu.memory_space<vmem>>, vector<2x24xf32>
    %c0_82 = arith.constant 0 : index
    %c0_83 = arith.constant 0 : index
    %250 = vector.load %arg25[%c0_82, %c0_83] : memref<24x64xf32, #tpu.memory_space<vmem>>, vector<24x64xf32>
    %c0_84 = arith.constant 0 : index
    %c0_85 = arith.constant 0 : index
    %251 = vector.load %arg26[%c0_84, %c0_85] : memref<1x64xf32, #tpu.memory_space<vmem>>, vector<1x64xf32>
    %c0_86 = arith.constant 0 : index
    %c0_87 = arith.constant 0 : index
    %252 = vector.load %arg27[%c0_86, %c0_87] : memref<64x24xf32, #tpu.memory_space<vmem>>, vector<64x24xf32>
    %c0_88 = arith.constant 0 : index
    %c0_89 = arith.constant 0 : index
    %253 = vector.load %arg28[%c0_88, %c0_89] : memref<1x24xf32, #tpu.memory_space<vmem>>, vector<1x24xf32>
    %cst_90 = arith.constant dense<0.000000e+00> : vector<2x64xf32>
    %254 = tpu.matmul %249, %250, %cst_90 {dimension_numbers = #tpu.dot_dimension_numbers<[1], [0], [0], [1], [0, 0, 1, 1], [], []>} : vector<2x24xf32>, vector<24x64xf32>, vector<2x64xf32> -> vector<2x64xf32>
    %255 = vector.broadcast %251 : vector<1x64xf32> to vector<2x64xf32>
    %256 = arith.addf %254, %255 : vector<2x64xf32>
    %cst_91 = arith.constant 0.000000e+00 : f32
    %257 = vector.broadcast %cst_91 : f32 to vector<2x64xf32>
    %258 = arith.maximumf %256, %257 : vector<2x64xf32>
    %cst_92 = arith.constant dense<0.000000e+00> : vector<2x24xf32>
    %259 = tpu.matmul %258, %252, %cst_92 {dimension_numbers = #tpu.dot_dimension_numbers<[1], [0], [0], [1], [0, 0, 1, 1], [], []>} : vector<2x64xf32>, vector<64x24xf32>, vector<2x24xf32> -> vector<2x24xf32>
    %260 = vector.broadcast %253 : vector<1x24xf32> to vector<2x24xf32>
    %261 = arith.addf %259, %260 : vector<2x24xf32>
    %c0_93 = arith.constant 0 : index
    %c0_94 = arith.constant 0 : index
    %262 = vector.load %arg29[%c0_93, %c0_94] : memref<24x64xf32, #tpu.memory_space<vmem>>, vector<24x64xf32>
    %cst_95 = arith.constant dense<0.000000e+00> : vector<2x64xf32>
    %263 = tpu.matmul %261, %262, %cst_95 {dimension_numbers = #tpu.dot_dimension_numbers<[1], [0], [0], [1], [0, 0, 1, 1], [], []>} : vector<2x24xf32>, vector<24x64xf32>, vector<2x64xf32> -> vector<2x64xf32>
    %c0_96 = arith.constant 0 : index
    %c0_97 = arith.constant 0 : index
    %264 = vector.load %arg30[%c0_96, %c0_97] : memref<16x64xf32, #tpu.memory_space<vmem>>, vector<16x64xf32>
    %cst_98 = arith.constant dense<0.000000e+00> : vector<2x64xf32>
    %265 = tpu.matmul %57, %264, %cst_98 {dimension_numbers = #tpu.dot_dimension_numbers<[1], [0], [0], [1], [0, 0, 1, 1], [], []>} : vector<2x16xf32>, vector<16x64xf32>, vector<2x64xf32> -> vector<2x64xf32>
    %266 = arith.addf %263, %265 : vector<2x64xf32>
    %c0_99 = arith.constant 0 : index
    %c0_100 = arith.constant 0 : index
    %267 = vector.load %arg31[%c0_99, %c0_100] : memref<16x64xf32, #tpu.memory_space<vmem>>, vector<16x64xf32>
    %cst_101 = arith.constant dense<0.000000e+00> : vector<2x64xf32>
    %268 = tpu.matmul %248, %267, %cst_101 {dimension_numbers = #tpu.dot_dimension_numbers<[1], [0], [0], [1], [0, 0, 1, 1], [], []>} : vector<2x16xf32>, vector<16x64xf32>, vector<2x64xf32> -> vector<2x64xf32>
    %269 = arith.addf %266, %268 : vector<2x64xf32>
    %c0_102 = arith.constant 0 : index
    %c0_103 = arith.constant 0 : index
    %270 = vector.load %arg32[%c0_102, %c0_103] : memref<1x64xf32, #tpu.memory_space<vmem>>, vector<1x64xf32>
    %271 = vector.broadcast %270 : vector<1x64xf32> to vector<2x64xf32>
    %272 = arith.addf %269, %271 : vector<2x64xf32>
    %cst_104 = arith.constant 0.000000e+00 : f32
    %273 = vector.broadcast %cst_104 : f32 to vector<2x64xf32>
    %274 = arith.maximumf %272, %273 : vector<2x64xf32>
    %c0_105 = arith.constant 0 : index
    %c0_106 = arith.constant 0 : index
    %275 = vector.load %arg33[%c0_105, %c0_106] : memref<64x1xf32, #tpu.memory_space<vmem>>, vector<64x1xf32>
    %cst_107 = arith.constant dense<0.000000e+00> : vector<2x1xf32>
    %276 = tpu.matmul %274, %275, %cst_107 {dimension_numbers = #tpu.dot_dimension_numbers<[1], [0], [0], [1], [0, 0, 1, 1], [], []>} : vector<2x64xf32>, vector<64x1xf32>, vector<2x1xf32> -> vector<2x1xf32>
    %c0_108 = arith.constant 0 : index
    %c0_109 = arith.constant 0 : index
    %277 = vector.load %arg34[%c0_108, %c0_109] : memref<1x1xf32, #tpu.memory_space<vmem>>, vector<1x1xf32>
    %278 = vector.broadcast %277 : vector<1x1xf32> to vector<2x1xf32>
    %279 = arith.addf %276, %278 : vector<2x1xf32>
    %c0_110 = arith.constant 0 : index
    %c0_111 = arith.constant 0 : index
    %280 = vector.load %arg35[%c0_110, %c0_111] : memref<2x1xf32, #tpu.memory_space<vmem>>, vector<2x1xf32>
    tpu.vector_store %arg35[%c0_110, %c0_111], %279 {strides = array<i32>} : memref<2x1xf32, #tpu.memory_space<vmem>>, vector<2x1xf32>,
    return
  }
}

</mosaic_0001>

<llo_original>
// kernel: genapon_forward.1
$region0: #{genapon_forward.1}
  #allocation0 [shape = 'u32[]', space=smem, size = 0x4, offset = 0x4, fixed_abs, tag = 'smem constant byte address 0x4 - core index']
  #allocation1 [shape = 'u32[144,128]{1,0:T(1,128)}', space=vmem, size = 0x12000, scoped, tag = 'internal scratch']
  #allocation2 [shape = 'f32[1,1]{1,0:T(1,128)S(1)}', space=vmem, size = 0x200, scoped, tag = 'scoped memory for genapon_forward.1']
  %s0 = inlined_call_operand.smem [shape: u32[36], index: -1, kind: input, shape index: {}]
  %s1 = sld [smem:[%s0]]
  %s2 = scalar_lea.smem %s0, 1
  %s3 = sld [smem:[%s2]]
  %s4 = scalar_lea.smem %s0, 2
  %s5 = sld [smem:[%s4]]
  %s6 = scalar_lea.smem %s0, 3
  %s7 = sld [smem:[%s6]]
  %s8 = scalar_lea.smem %s0, 4
  %s9 = sld [smem:[%s8]]
  %s10 = scalar_lea.smem %s0, 5
  %s11 = sld [smem:[%s10]]
  %s12 = scalar_lea.smem %s0, 6
  %s13 = sld [smem:[%s12]]
  %s14 = scalar_lea.smem %s0, 7
  %s15 = sld [smem:[%s14]]
  %s16 = scalar_lea.smem %s0, 8
  %s17 = sld [smem:[%s16]]
  %s18 = scalar_lea.smem %s0, 9
  %s19 = sld [smem:[%s18]]
  %s20 = scalar_lea.smem %s0, 10
  %s21 = sld [smem:[%s20]]
  %s22 = scalar_lea.smem %s0, 11
  %s23 = sld [smem:[%s22]]
  %s24 = scalar_lea.smem %s0, 12
  %s25 = sld [smem:[%s24]]
  %s26 = scalar_lea.smem %s0, 13
  %s27 = sld [smem:[%s26]]
  %s28 = scalar_lea.smem %s0, 14
  %s29 = sld [smem:[%s28]]
  %s30 = scalar_lea.smem %s0, 15
  %s31 = sld [smem:[%s30]]
  %s32 = scalar_lea.smem %s0, 16
  %s33 = sld [smem:[%s32]]
  %s34 = scalar_lea.smem %s0, 17
  %s35 = sld [smem:[%s34]]
  %s36 = scalar_lea.smem %s0, 18
  %s37 = sld [smem:[%s36]]
  %s38 = scalar_lea.smem %s0, 19
  %s39 = sld [smem:[%s38]]
  %s40 = scalar_lea.smem %s0, 20
  %s41 = sld [smem:[%s40]]
  %s42 = scalar_lea.smem %s0, 21
  %s43 = sld [smem:[%s42]]
  %s44 = scalar_lea.smem %s0, 22
  %s45 = sld [smem:[%s44]]
  %s46 = scalar_lea.smem %s0, 23
  %s47 = sld [smem:[%s46]]
  %s48 = scalar_lea.smem %s0, 24
  %s49 = sld [smem:[%s48]]
  %s50 = scalar_lea.smem %s0, 25
  %s51 = sld [smem:[%s50]]
  %s52 = scalar_lea.smem %s0, 26
  %s53 = sld [smem:[%s52]]
  %s54 = scalar_lea.smem %s0, 27
  %s55 = sld [smem:[%s54]]
  %s56 = scalar_lea.smem %s0, 28
  %s57 = sld [smem:[%s56]]
  %s58 = scalar_lea.smem %s0, 29
  %s59 = sld [smem:[%s58]]
  %s60 = scalar_lea.smem %s0, 30
  %s61 = sld [smem:[%s60]]
  %s62 = scalar_lea.smem %s0, 31
  %s63 = sld [smem:[%s62]]
  %s64 = scalar_lea.smem %s0, 32
  %s65 = sld [smem:[%s64]]
  %s66 = scalar_lea.smem %s0, 33
  %s67 = sld [smem:[%s66]]
  %s68 = scalar_lea.smem %s0, 34
  %s69 = sld [smem:[%s68]]
  %s70 = scalar_lea.smem %s0, 35
  %s71 = sld [smem:[%s70]]
  %s72 = sld [smem:[#allocation0]]
  $region258: #{genapon_forward.1} parent=0
    _
  %s74 = ssub.s32 1, %s72
  %s75 = scalar_select 0, %s74, %s72
  %v76 = vstv %s69
  %77 = vst [vmem:[#allocation2] sm:$0x1] %v76
  $region1: #{genapon_forward.1} parent=0
    #allocation3 [shape = 'u8[32768]{0}', space=vmem, size = 0x8000, scoped, tag = 'input window, operand 1, single buffered']
    #allocation4 [shape = 's32[1]{0}', space=sflag, size = 0x4, scoped, tag = 'scoped memory for genapon_forward.1']
    #allocation5 [shape = 'u8[1024]{0}', space=vmem, size = 0x400, scoped, tag = 'input window, operand 3, single buffered']
    #allocation6 [shape = 's32[1]{0}', space=sflag, size = 0x4, scoped, tag = 'scoped memory for genapon_forward.1']
    #allocation7 [shape = 'u8[16384]{0}', space=vmem, size = 0x4000, scoped, tag = 'input window, operand 4, single buffered']
    #allocation8 [shape = 'u8[512]{0}', space=vmem, size = 0x400, scoped, tag = 'input window, operand 5, single buffered']
    #allocation9 [shape = 's32[1]{0}', space=sflag, size = 0x4, scoped, tag = 'scoped memory for genapon_forward.1']
    #allocation10 [shape = 'u8[32768]{0}', space=vmem, size = 0x8000, scoped, tag = 'input window, operand 6, single buffered']
    #allocation11 [shape = 'u8[512]{0}', space=vmem, size = 0x400, scoped, tag = 'input window, operand 7, single buffered']
    #allocation12 [shape = 's32[1]{0}', space=sflag, size = 0x4, scoped, tag = 'scoped memory for genapon_forward.1']
    #allocation13 [shape = 'u8[16384]{0}', space=vmem, size = 0x4000, scoped, tag = 'input window, operand 8, single buffered']
    #allocation14 [shape = 'u8[512]{0}', space=vmem, size = 0x400, scoped, tag = 'input window, operand 9, single buffered']
    #allocation15 [shape = 's32[1]{0}', space=sflag, size = 0x4, scoped, tag = 'scoped memory for genapon_forward.1']
    #allocation16 [shape = 'u8[32768]{0}', space=vmem, size = 0x8000, scoped, tag = 'input window, operand 10, single buffered']
    #allocation17 [shape = 'u8[512]{0}', space=vmem, size = 0x400, scoped, tag = 'input window, operand 11, single buffered']
    #allocation18 [shape = 's32[1]{0}', space=sflag, size = 0x4, scoped, tag = 'scoped memory for genapon_forward.1']
    #allocation19 [shape = 'u8[512]{0}', space=vmem, size = 0x400, scoped, tag = 'input window, operand 12, single buffered']
    #allocation20 [shape = 'u8[512]{0}', space=vmem, size = 0x400, scoped, tag = 'input window, operand 13, single buffered']
    #allocation21 [shape = 's32[1]{0}', space=sflag, size = 0x4, scoped, tag = 'scoped memory for genapon_forward.1']
    #allocation22 [shape = 'u8[8192]{0}', space=vmem, size = 0x2000, scoped, tag = 'input window, operand 14, single buffered']
    #allocation23 [shape = 'u8[16384]{0}', space=vmem, size = 0x4000, scoped, tag = 'input window, operand 15, single buffered']
    #allocation24 [shape = 's32[1]{0}', space=sflag, size = 0x4, scoped, tag = 'scoped memory for genapon_forward.1']
    #allocation25 [shape = 'u8[512]{0}', space=vmem, size = 0x400, scoped, tag = 'input window, operand 16, single buffered']
    #allocation26 [shape = 'u8[16384]{0}', space=vmem, size = 0x4000, scoped, tag = 'input window, operand 17, single buffered']
    #allocation27 [shape = 's32[1]{0}', space=sflag, size = 0x4, scoped, tag = 'scoped memory for genapon_forward.1']
    #allocation28 [shape = 'u8[512]{0}', space=vmem, size = 0x400, scoped, tag = 'input window, operand 18, single buffered']
    #allocation29 [shape = 'u8[32768]{0}', space=vmem, size = 0x8000, scoped, tag = 'input window, operand 19, single buffered']
    #allocation30 [shape = 's32[1]{0}', space=sflag, size = 0x4, scoped, tag = 'scoped memory for genapon_forward.1']
    #allocation31 [shape = 'u8[512]{0}', space=vmem, size = 0x400, scoped, tag = 'input window, operand 20, single buffered']
    #allocation32 [shape = 'u8[16384]{0}', space=vmem, size = 0x4000, scoped, tag = 'input window, operand 21, single buffered']
    #allocation33 [shape = 's32[1]{0}', space=sflag, size = 0x4, scoped, tag = 'scoped memory for genapon_forward.1']
    #allocation34 [shape = 'u8[512]{0}', space=vmem, size = 0x400, scoped, tag = 'input window, operand 22, single buffered']
    #allocation35 [shape = 'u8[32768]{0}', space=vmem, size = 0x8000, scoped, tag = 'input window, operand 23, single buffered']
    #allocation36 [shape = 's32[1]{0}', space=sflag, size = 0x4, scoped, tag = 'scoped memory for genapon_forward.1']
    #allocation37 [shape = 'u8[512]{0}', space=vmem, size = 0x400, scoped, tag = 'input window, operand 24, single buffered']
    #allocation38 [shape = 'u8[12288]{0}', space=vmem, size = 0x3000, scoped, tag = 'input window, operand 25, single buffered']
    #allocation39 [shape = 's32[1]{0}', space=sflag, size = 0x4, scoped, tag = 'scoped memory for genapon_forward.1']
    #allocation40 [shape = 'u8[512]{0}', space=vmem, size = 0x400, scoped, tag = 'input window, operand 26, single buffered']
    #allocation41 [shape = 'u8[512]{0}', space=vmem, size = 0x400, scoped, tag = 'input window, operand 28, single buffered']
    #allocation42 [shape = 's32[1]{0}', space=sflag, size = 0x4, scoped, tag = 'scoped memory for genapon_forward.1']
    #allocation43 [shape = 'u8[8192]{0}', space=vmem, size = 0x2000, scoped, tag = 'input window, operand 30, single buffered']
    %78 = vsyncpa [#allocation4], 0
    %79 = vsyncpa [#allocation6], 0
    %80 = vsyncpa [#allocation9], 0
    %81 = vsyncpa [#allocation12], 0
    %82 = vsyncpa [#allocation15], 0
    %83 = vsyncpa [#allocation18], 0
    %84 = vsyncpa [#allocation21], 0
    %85 = vsyncpa [#allocation24], 0
    %86 = vsyncpa [#allocation27], 0
    %87 = vsyncpa [#allocation30], 0
    %88 = vsyncpa [#allocation33], 0
    %89 = vsyncpa [#allocation36], 0
    %90 = vsyncpa [#allocation39], 0
    %91 = vsyncpa [#allocation42], 0
    // Predicated region
    $region2: #{genapon_forward.1} parent=1 // pred_check
      _
    $region3: #{genapon_forward.1} parent=1 // pred_check_branch
      %93 = sbr.rel (0) target = $region5
    $region4: #{genapon_forward.1} parent=1 // pred_region
      _
    $region5: #{genapon_forward.1} parent=1 // pred_fallthru
      _
    // Predicated region
    $region6: #{genapon_forward.1} parent=1 // pred_check
      _
    $region7: #{genapon_forward.1} parent=1 // pred_check_branch
      %95 = sbr.rel (0) target = $region9
    $region8: #{genapon_forward.1} parent=1 // pred_region
      %s97 = ssub.s32 1024, 1024
      %98 = vsyncadd [#allocation4], %s97
      %s99 = sshll.u32 [#allocation3], 4
      %s100 = int_to_ptr.vmem [resolvable:$true] %s99
      %105 = dma.hbm_to_vmem [thread:$0]  %s3, 1024, %s100, [#allocation4], 128, 128, 8
    $region9: #{genapon_forward.1} parent=1 // pred_fallthru
      _
    // Predicated region
    $region10: #{genapon_forward.1} parent=1 // pred_check
      _
    $region11: #{genapon_forward.1} parent=1 // pred_check_branch
      %107 = sbr.rel (0) target = $region13
    $region12: #{genapon_forward.1} parent=1 // pred_region
      _
    $region13: #{genapon_forward.1} parent=1 // pred_fallthru
      _
    // Predicated region
    $region14: #{genapon_forward.1} parent=1 // pred_check
      _
    $region15: #{genapon_forward.1} parent=1 // pred_check_branch
      %109 = sbr.rel (0) target = $region17
    $region16: #{genapon_forward.1} parent=1 // pred_region
      %s111 = ssub.s32 32, 32
      %112 = vsyncadd [#allocation6], %s111
      %s114 = sshll.u32 [#allocation5], 4
      %s115 = int_to_ptr.vmem [resolvable:$true] %s114
      %117 = dma.hbm_to_vmem [thread:$0]  %s7, 32, %s115, [#allocation6]
    $region17: #{genapon_forward.1} parent=1 // pred_fallthru
      _
    // Predicated region
    $region18: #{genapon_forward.1} parent=1 // pred_check
      _
    $region19: #{genapon_forward.1} parent=1 // pred_check_branch
      %119 = sbr.rel (0) target = $region21
    $region20: #{genapon_forward.1} parent=1 // pred_region
      %s121 = ssub.s32 512, 512
      %122 = vsyncadd [#allocation6], %s121
      %s123 = sshll.u32 [#allocation7], 4
      %s124 = int_to_ptr.vmem [resolvable:$true] %s123
      %129 = dma.hbm_to_vmem [thread:$0]  %s9, 512, %s124, [#allocation6], 128, 128, 8
    $region21: #{genapon_forward.1} parent=1 // pred_fallthru
      _
    // Predicated region
    $region22: #{genapon_forward.1} parent=1 // pred_check
      _
    $region23: #{genapon_forward.1} parent=1 // pred_check_branch
      %131 = sbr.rel (0) target = $region25
    $region24: #{genapon_forward.1} parent=1 // pred_region
      %s133 = ssub.s32 16, 16
      %134 = vsyncadd [#allocation9], %s133
      %s136 = sshll.u32 [#allocation8], 4
      %s137 = int_to_ptr.vmem [resolvable:$true] %s136
      %139 = dma.hbm_to_vmem [thread:$0]  %s11, 16, %s137, [#allocation9]
    $region25: #{genapon_forward.1} parent=1 // pred_fallthru
      _
    // Predicated region
    $region26: #{genapon_forward.1} parent=1 // pred_check
      _
    $region27: #{genapon_forward.1} parent=1 // pred_check_branch
      %141 = sbr.rel (0) target = $region29
    $region28: #{genapon_forward.1} parent=1 // pred_region
      %s143 = ssub.s32 1024, 1024
      %144 = vsyncadd [#allocation9], %s143
      %s145 = sshll.u32 [#allocation10], 4
      %s146 = int_to_ptr.vmem [resolvable:$true] %s145
      %151 = dma.hbm_to_vmem [thread:$0]  %s13, 1024, %s146, [#allocation9], 128, 128, 8
    $region29: #{genapon_forward.1} parent=1 // pred_fallthru
      _
    // Predicated region
    $region30: #{genapon_forward.1} parent=1 // pred_check
      _
    $region31: #{genapon_forward.1} parent=1 // pred_check_branch
      %153 = sbr.rel (0) target = $region33
    $region32: #{genapon_forward.1} parent=1 // pred_region
      %s155 = ssub.s32 16, 16
      %156 = vsyncadd [#allocation12], %s155
      %s158 = sshll.u32 [#allocation11], 4
      %s159 = int_to_ptr.vmem [resolvable:$true] %s158
      %161 = dma.hbm_to_vmem [thread:$0]  %s15, 16, %s159, [#allocation12]
    $region33: #{genapon_forward.1} parent=1 // pred_fallthru
      _
    // Predicated region
    $region34: #{genapon_forward.1} parent=1 // pred_check
      _
    $region35: #{genapon_forward.1} parent=1 // pred_check_branch
      %163 = sbr.rel (0) target = $region37
    $region36: #{genapon_forward.1} parent=1 // pred_region
      %s165 = ssub.s32 512, 512
      %166 = vsyncadd [#allocation12], %s165
      %s167 = sshll.u32 [#allocation13], 4
      %s168 = int_to_ptr.vmem [resolvable:$true] %s167
      %173 = dma.hbm_to_vmem [thread:$0]  %s17, 512, %s168, [#allocation12], 128, 128, 8
    $region37: #{genapon_forward.1} parent=1 // pred_fallthru
      _
    // Predicated region
    $region38: #{genapon_forward.1} parent=1 // pred_check
      _
    $region39: #{genapon_forward.1} parent=1 // pred_check_branch
      %175 = sbr.rel (0) target = $region41
    $region40: #{genapon_forward.1} parent=1 // pred_region
      %s177 = ssub.s32 16, 16
      %178 = vsyncadd [#allocation15], %s177
      %s180 = sshll.u32 [#allocation14], 4
      %s181 = int_to_ptr.vmem [resolvable:$true] %s180
      %183 = dma.hbm_to_vmem [thread:$0]  %s19, 16, %s181, [#allocation15]
    $region41: #{genapon_forward.1} parent=1 // pred_fallthru
      _
    // Predicated region
    $region42: #{genapon_forward.1} parent=1 // pred_check
      _
    $region43: #{genapon_forward.1} parent=1 // pred_check_branch
      %185 = sbr.rel (0) target = $region45
    $region44: #{genapon_forward.1} parent=1 // pred_region
      %s187 = ssub.s32 1024, 1024
      %188 = vsyncadd [#allocation15], %s187
      %s189 = sshll.u32 [#allocation16], 4
      %s190 = int_to_ptr.vmem [resolvable:$true] %s189
      %195 = dma.hbm_to_vmem [thread:$0]  %s21, 1024, %s190, [#allocation15], 128, 128, 8
    $region45: #{genapon_forward.1} parent=1 // pred_fallthru
      _
    // Predicated region
    $region46: #{genapon_forward.1} parent=1 // pred_check
      _
    $region47: #{genapon_forward.1} parent=1 // pred_check_branch
      %197 = sbr.rel (0) target = $region49
    $region48: #{genapon_forward.1} parent=1 // pred_region
      %s199 = ssub.s32 16, 16
      %200 = vsyncadd [#allocation18], %s199
      %s202 = sshll.u32 [#allocation17], 4
      %s203 = int_to_ptr.vmem [resolvable:$true] %s202
      %205 = dma.hbm_to_vmem [thread:$0]  %s23, 16, %s203, [#allocation18]
    $region49: #{genapon_forward.1} parent=1 // pred_fallthru
      _
    // Predicated region
    $region50: #{genapon_forward.1} parent=1 // pred_check
      _
    $region51: #{genapon_forward.1} parent=1 // pred_check_branch
      %207 = sbr.rel (0) target = $region53
    $region52: #{genapon_forward.1} parent=1 // pred_region
      %s209 = ssub.s32 16, 16
      %210 = vsyncadd [#allocation18], %s209
      %s212 = sshll.u32 [#allocation19], 4
      %s213 = int_to_ptr.vmem [resolvable:$true] %s212
      %215 = dma.hbm_to_vmem [thread:$0]  %s25, 16, %s213, [#allocation18]
    $region53: #{genapon_forward.1} parent=1 // pred_fallthru
      _
    // Predicated region
    $region54: #{genapon_forward.1} parent=1 // pred_check
      _
    $region55: #{genapon_forward.1} parent=1 // pred_check_branch
      %217 = sbr.rel (0) target = $region57
    $region56: #{genapon_forward.1} parent=1 // pred_region
      %s219 = ssub.s32 16, 16
      %220 = vsyncadd [#allocation21], %s219
      %s222 = sshll.u32 [#allocation20], 4
      %s223 = int_to_ptr.vmem [resolvable:$true] %s222
      %225 = dma.hbm_to_vmem [thread:$0]  %s27, 16, %s223, [#allocation21]
    $region57: #{genapon_forward.1} parent=1 // pred_fallthru
      _
    // Predicated region
    $region58: #{genapon_forward.1} parent=1 // pred_check
      _
    $region59: #{genapon_forward.1} parent=1 // pred_check_branch
      %227 = sbr.rel (0) target = $region61
    $region60: #{genapon_forward.1} parent=1 // pred_region
      %s229 = ssub.s32 256, 256
      %230 = vsyncadd [#allocation21], %s229
      %s231 = sshll.u32 [#allocation22], 4
      %s232 = int_to_ptr.vmem [resolvable:$true] %s231
      %237 = dma.hbm_to_vmem [thread:$0]  %s29, 256, %s232, [#allocation21], 128, 128, 8
    $region61: #{genapon_forward.1} parent=1 // pred_fallthru
      _
    // Predicated region
    $region62: #{genapon_forward.1} parent=1 // pred_check
      _
    $region63: #{genapon_forward.1} parent=1 // pred_check_branch
      %239 = sbr.rel (0) target = $region65
    $region64: #{genapon_forward.1} parent=1 // pred_region
      %s241 = ssub.s32 512, 512
      %242 = vsyncadd [#allocation24], %s241
      %s243 = sshll.u32 [#allocation23], 4
      %s244 = int_to_ptr.vmem [resolvable:$true] %s243
      %249 = dma.hbm_to_vmem [thread:$0]  %s31, 512, %s244, [#allocation24], 128, 128, 8
    $region65: #{genapon_forward.1} parent=1 // pred_fallthru
      _
    // Predicated region
    $region66: #{genapon_forward.1} parent=1 // pred_check
      _
    $region67: #{genapon_forward.1} parent=1 // pred_check_branch
      %251 = sbr.rel (0) target = $region69
    $region68: #{genapon_forward.1} parent=1 // pred_region
      %s253 = ssub.s32 16, 16
      %254 = vsyncadd [#allocation24], %s253
      %s256 = sshll.u32 [#allocation25], 4
      %s257 = int_to_ptr.vmem [resolvable:$true] %s256
      %259 = dma.hbm_to_vmem [thread:$0]  %s33, 16, %s257, [#allocation24]
    $region69: #{genapon_forward.1} parent=1 // pred_fallthru
      _
    // Predicated region
    $region70: #{genapon_forward.1} parent=1 // pred_check
      _
    $region71: #{genapon_forward.1} parent=1 // pred_check_branch
      %261 = sbr.rel (0) target = $region73
    $region72: #{genapon_forward.1} parent=1 // pred_region
      %s263 = ssub.s32 512, 512
      %264 = vsyncadd [#allocation27], %s263
      %s265 = sshll.u32 [#allocation26], 4
      %s266 = int_to_ptr.vmem [resolvable:$true] %s265
      %271 = dma.hbm_to_vmem [thread:$0]  %s35, 512, %s266, [#allocation27], 128, 128, 8
    $region73: #{genapon_forward.1} parent=1 // pred_fallthru
      _
    // Predicated region
    $region74: #{genapon_forward.1} parent=1 // pred_check
      _
    $region75: #{genapon_forward.1} parent=1 // pred_check_branch
      %273 = sbr.rel (0) target = $region77
    $region76: #{genapon_forward.1} parent=1 // pred_region
      %s275 = ssub.s32 16, 16
      %276 = vsyncadd [#allocation27], %s275
      %s278 = sshll.u32 [#allocation28], 4
      %s279 = int_to_ptr.vmem [resolvable:$true] %s278
      %281 = dma.hbm_to_vmem [thread:$0]  %s37, 16, %s279, [#allocation27]
    $region77: #{genapon_forward.1} parent=1 // pred_fallthru
      _
    // Predicated region
    $region78: #{genapon_forward.1} parent=1 // pred_check
      _
    $region79: #{genapon_forward.1} parent=1 // pred_check_branch
      %283 = sbr.rel (0) target = $region81
    $region80: #{genapon_forward.1} parent=1 // pred_region
      %s285 = ssub.s32 1024, 1024
      %286 = vsyncadd [#allocation30], %s285
      %s287 = sshll.u32 [#allocation29], 4
      %s288 = int_to_ptr.vmem [resolvable:$true] %s287
      %293 = dma.hbm_to_vmem [thread:$0]  %s39, 1024, %s288, [#allocation30], 128, 128, 8
    $region81: #{genapon_forward.1} parent=1 // pred_fallthru
      _
    // Predicated region
    $region82: #{genapon_forward.1} parent=1 // pred_check
      _
    $region83: #{genapon_forward.1} parent=1 // pred_check_branch
      %295 = sbr.rel (0) target = $region85
    $region84: #{genapon_forward.1} parent=1 // pred_region
      %s297 = ssub.s32 16, 16
      %298 = vsyncadd [#allocation30], %s297
      %s300 = sshll.u32 [#allocation31], 4
      %s301 = int_to_ptr.vmem [resolvable:$true] %s300
      %303 = dma.hbm_to_vmem [thread:$0]  %s41, 16, %s301, [#allocation30]
    $region85: #{genapon_forward.1} parent=1 // pred_fallthru
      _
    // Predicated region
    $region86: #{genapon_forward.1} parent=1 // pred_check
      _
    $region87: #{genapon_forward.1} parent=1 // pred_check_branch
      %305 = sbr.rel (0) target = $region89
    $region88: #{genapon_forward.1} parent=1 // pred_region
      %s307 = ssub.s32 512, 512
      %308 = vsyncadd [#allocation33], %s307
      %s309 = sshll.u32 [#allocation32], 4
      %s310 = int_to_ptr.vmem [resolvable:$true] %s309
      %315 = dma.hbm_to_vmem [thread:$0]  %s43, 512, %s310, [#allocation33], 128, 128, 8
    $region89: #{genapon_forward.1} parent=1 // pred_fallthru
      _
    // Predicated region
    $region90: #{genapon_forward.1} parent=1 // pred_check
      _
    $region91: #{genapon_forward.1} parent=1 // pred_check_branch
      %317 = sbr.rel (0) target = $region93
    $region92: #{genapon_forward.1} parent=1 // pred_region
      %s319 = ssub.s32 16, 16
      %320 = vsyncadd [#allocation33], %s319
      %s322 = sshll.u32 [#allocation34], 4
      %s323 = int_to_ptr.vmem [resolvable:$true] %s322
      %325 = dma.hbm_to_vmem [thread:$0]  %s45, 16, %s323, [#allocation33]
    $region93: #{genapon_forward.1} parent=1 // pred_fallthru
      _
    // Predicated region
    $region94: #{genapon_forward.1} parent=1 // pred_check
      _
    $region95: #{genapon_forward.1} parent=1 // pred_check_branch
      %327 = sbr.rel (0) target = $region97
    $region96: #{genapon_forward.1} parent=1 // pred_region
      %s329 = ssub.s32 1024, 1024
      %330 = vsyncadd [#allocation36], %s329
      %s331 = sshll.u32 [#allocation35], 4
      %s332 = int_to_ptr.vmem [resolvable:$true] %s331
      %337 = dma.hbm_to_vmem [thread:$0]  %s47, 1024, %s332, [#allocation36], 128, 128, 8
    $region97: #{genapon_forward.1} parent=1 // pred_fallthru
      _
    // Predicated region
    $region98: #{genapon_forward.1} parent=1 // pred_check
      _
    $region99: #{genapon_forward.1} parent=1 // pred_check_branch
      %339 = sbr.rel (0) target = $region101
    $region100: #{genapon_forward.1} parent=1 // pred_region
      %s341 = ssub.s32 16, 16
      %342 = vsyncadd [#allocation36], %s341
      %s344 = sshll.u32 [#allocation37], 4
      %s345 = int_to_ptr.vmem [resolvable:$true] %s344
      %347 = dma.hbm_to_vmem [thread:$0]  %s49, 16, %s345, [#allocation36]
    $region101: #{genapon_forward.1} parent=1 // pred_fallthru
      _
    // Predicated region
    $region102: #{genapon_forward.1} parent=1 // pred_check
      _
    $region103: #{genapon_forward.1} parent=1 // pred_check_branch
      %349 = sbr.rel (0) target = $region105
    $region104: #{genapon_forward.1} parent=1 // pred_region
      %s351 = ssub.s32 384, 384
      %352 = vsyncadd [#allocation39], %s351
      %s353 = sshll.u32 [#allocation38], 4
      %s354 = int_to_ptr.vmem [resolvable:$true] %s353
      %359 = dma.hbm_to_vmem [thread:$0]  %s51, 384, %s354, [#allocation39], 128, 128, 8
    $region105: #{genapon_forward.1} parent=1 // pred_fallthru
      _
    // Predicated region
    $region106: #{genapon_forward.1} parent=1 // pred_check
      _
    $region107: #{genapon_forward.1} parent=1 // pred_check_branch
      %361 = sbr.rel (0) target = $region109
    $region108: #{genapon_forward.1} parent=1 // pred_region
      %s363 = ssub.s32 16, 16
      %364 = vsyncadd [#allocation39], %s363
      %s366 = sshll.u32 [#allocation40], 4
      %s367 = int_to_ptr.vmem [resolvable:$true] %s366
      %369 = dma.hbm_to_vmem [thread:$0]  %s53, 16, %s367, [#allocation39]
    $region109: #{genapon_forward.1} parent=1 // pred_fallthru
      _
    // Predicated region
    $region110: #{genapon_forward.1} parent=1 // pred_check
      _
    $region111: #{genapon_forward.1} parent=1 // pred_check_branch
      %371 = sbr.rel (0) target = $region113
    $region112: #{genapon_forward.1} parent=1 // pred_region
      _
    $region113: #{genapon_forward.1} parent=1 // pred_fallthru
      _
    // Predicated region
    $region114: #{genapon_forward.1} parent=1 // pred_check
      _
    $region115: #{genapon_forward.1} parent=1 // pred_check_branch
      %373 = sbr.rel (0) target = $region117
    $region116: #{genapon_forward.1} parent=1 // pred_region
      %s375 = ssub.s32 16, 16
      %376 = vsyncadd [#allocation42], %s375
      %s378 = sshll.u32 [#allocation41], 4
      %s379 = int_to_ptr.vmem [resolvable:$true] %s378
      %381 = dma.hbm_to_vmem [thread:$0]  %s57, 16, %s379, [#allocation42]
    $region117: #{genapon_forward.1} parent=1 // pred_fallthru
      _
    // Predicated region
    $region118: #{genapon_forward.1} parent=1 // pred_check
      _
    $region119: #{genapon_forward.1} parent=1 // pred_check_branch
      %383 = sbr.rel (0) target = $region121
    $region120: #{genapon_forward.1} parent=1 // pred_region
      _
    $region121: #{genapon_forward.1} parent=1 // pred_fallthru
      _
    // Predicated region
    $region122: #{genapon_forward.1} parent=1 // pred_check
      _
    $region123: #{genapon_forward.1} parent=1 // pred_check_branch
      %385 = sbr.rel (0) target = $region125
    $region124: #{genapon_forward.1} parent=1 // pred_region
      %s387 = ssub.s32 256, 256
      %388 = vsyncadd [#allocation42], %s387
      %s389 = sshll.u32 [#allocation43], 4
      %s390 = int_to_ptr.vmem [resolvable:$true] %s389
      %395 = dma.hbm_to_vmem [thread:$0]  %s61, 256, %s390, [#allocation42], 128, 128, 8
    $region125: #{genapon_forward.1} parent=1 // pred_fallthru
      _
    // Predicated region
    $region126: #{genapon_forward.1} parent=1 // pred_check
      _
    $region127: #{genapon_forward.1} parent=1 // pred_check_branch
      %397 = sbr.rel (0) target = $region129
    $region128: #{genapon_forward.1} parent=1 // pred_region
      _
    $region129: #{genapon_forward.1} parent=1 // pred_fallthru
      _
    // Predicated region
    $region130: #{genapon_forward.1} parent=1 // pred_check
      _
    $region131: #{genapon_forward.1} parent=1 // pred_check_branch
      %399 = sbr.rel (0) target = $region133
    $region132: #{genapon_forward.1} parent=1 // pred_region
      _
    $region133: #{genapon_forward.1} parent=1 // pred_fallthru
      _
    // Predicated region
    $region134: #{genapon_forward.1} parent=1 // pred_check
      _
    $region135: #{genapon_forward.1} parent=1 // pred_check_branch
      %401 = sbr.rel (0) target = $region137
    $region136: #{genapon_forward.1} parent=1 // pred_region
      _
    $region137: #{genapon_forward.1} parent=1 // pred_fallthru
      _
    // Predicated region
    $region138: #{genapon_forward.1} parent=1 // pred_check
      _
    $region139: #{genapon_forward.1} parent=1 // pred_check_branch
      %403 = sbr.rel (0) target = $region141
    $region140: #{genapon_forward.1} parent=1 // pred_region
      _
    $region141: #{genapon_forward.1} parent=1 // pred_fallthru
      _
    // Predicated region
    $region142: #{genapon_forward.1} parent=1 // pred_check
      _
    $region143: #{genapon_forward.1} parent=1 // pred_check_branch
      %405 = sbr.rel (0) target = $region145
    $region144: #{genapon_forward.1} parent=1 // pred_region
      %406 = dma.done [#allocation4], 1024
    $region145: #{genapon_forward.1} parent=1 // pred_fallthru
      _
    // Predicated region
    $region146: #{genapon_forward.1} parent=1 // pred_check
      _
    $region147: #{genapon_forward.1} parent=1 // pred_check_branch
      %408 = sbr.rel (0) target = $region149
    $region148: #{genapon_forward.1} parent=1 // pred_region
      %409 = dma.done [#allocation6], 32
    $region149: #{genapon_forward.1} parent=1 // pred_fallthru
      _
    // Predicated region
    $region150: #{genapon_forward.1} parent=1 // pred_check
      _
    $region151: #{genapon_forward.1} parent=1 // pred_check_branch
      %411 = sbr.rel (0) target = $region153
    $region152: #{genapon_forward.1} parent=1 // pred_region
      %412 = dma.done [#allocation6], 512
    $region153: #{genapon_forward.1} parent=1 // pred_fallthru
      _
    // Predicated region
    $region154: #{genapon_forward.1} parent=1 // pred_check
      _
    $region155: #{genapon_forward.1} parent=1 // pred_check_branch
      %414 = sbr.rel (0) target = $region157
    $region156: #{genapon_forward.1} parent=1 // pred_region
      %415 = dma.done [#allocation9], 16
    $region157: #{genapon_forward.1} parent=1 // pred_fallthru
      _
    // Predicated region
    $region158: #{genapon_forward.1} parent=1 // pred_check
      _
    $region159: #{genapon_forward.1} parent=1 // pred_check_branch
      %417 = sbr.rel (0) target = $region161
    $region160: #{genapon_forward.1} parent=1 // pred_region
      %418 = dma.done [#allocation9], 1024
    $region161: #{genapon_forward.1} parent=1 // pred_fallthru
      _
    // Predicated region
    $region162: #{genapon_forward.1} parent=1 // pred_check
      _
    $region163: #{genapon_forward.1} parent=1 // pred_check_branch
      %420 = sbr.rel (0) target = $region165
    $region164: #{genapon_forward.1} parent=1 // pred_region
      %421 = dma.done [#allocation12], 16
    $region165: #{genapon_forward.1} parent=1 // pred_fallthru
      _
    // Predicated region
    $region166: #{genapon_forward.1} parent=1 // pred_check
      _
    $region167: #{genapon_forward.1} parent=1 // pred_check_branch
      %423 = sbr.rel (0) target = $region169
    $region168: #{genapon_forward.1} parent=1 // pred_region
      %424 = dma.done [#allocation12], 512
    $region169: #{genapon_forward.1} parent=1 // pred_fallthru
      _
    // Predicated region
    $region170: #{genapon_forward.1} parent=1 // pred_check
      _
    $region171: #{genapon_forward.1} parent=1 // pred_check_branch
      %426 = sbr.rel (0) target = $region173
    $region172: #{genapon_forward.1} parent=1 // pred_region
      %427 = dma.done [#allocation15], 16
    $region173: #{genapon_forward.1} parent=1 // pred_fallthru
      _
    // Predicated region
    $region174: #{genapon_forward.1} parent=1 // pred_check
      _
    $region175: #{genapon_forward.1} parent=1 // pred_check_branch
      %429 = sbr.rel (0) target = $region177
    $region176: #{genapon_forward.1} parent=1 // pred_region
      %430 = dma.done [#allocation15], 1024
    $region177: #{genapon_forward.1} parent=1 // pred_fallthru
      _
    // Predicated region
    $region178: #{genapon_forward.1} parent=1 // pred_check
      _
    $region179: #{genapon_forward.1} parent=1 // pred_check_branch
      %432 = sbr.rel (0) target = $region181
    $region180: #{genapon_forward.1} parent=1 // pred_region
      %433 = dma.done [#allocation18], 16
    $region181: #{genapon_forward.1} parent=1 // pred_fallthru
      _
    // Predicated region
    $region182: #{genapon_forward.1} parent=1 // pred_check
      _
    $region183: #{genapon_forward.1} parent=1 // pred_check_branch
      %435 = sbr.rel (0) target = $region185
    $region184: #{genapon_forward.1} parent=1 // pred_region
      %436 = dma.done [#allocation18], 16
    $region185: #{genapon_forward.1} parent=1 // pred_fallthru
      _
    // Predicated region
    $region186: #{genapon_forward.1} parent=1 // pred_check
      _
    $region187: #{genapon_forward.1} parent=1 // pred_check_branch
      %438 = sbr.rel (0) target = $region189
    $region188: #{genapon_forward.1} parent=1 // pred_region
      %439 = dma.done [#allocation21], 16
    $region189: #{genapon_forward.1} parent=1 // pred_fallthru
      _
    // Predicated region
    $region190: #{genapon_forward.1} parent=1 // pred_check
      _
    $region191: #{genapon_forward.1} parent=1 // pred_check_branch
      %441 = sbr.rel (0) target = $region193
    $region192: #{genapon_forward.1} parent=1 // pred_region
      %442 = dma.done [#allocation21], 256
    $region193: #{genapon_forward.1} parent=1 // pred_fallthru
      _
    // Predicated region
    $region194: #{genapon_forward.1} parent=1 // pred_check
      _
    $region195: #{genapon_forward.1} parent=1 // pred_check_branch
      %444 = sbr.rel (0) target = $region197
    $region196: #{genapon_forward.1} parent=1 // pred_region
      %445 = dma.done [#allocation24], 512
    $region197: #{genapon_forward.1} parent=1 // pred_fallthru
      _
    // Predicated region
    $region198: #{genapon_forward.1} parent=1 // pred_check
      _
    $region199: #{genapon_forward.1} parent=1 // pred_check_branch
      %447 = sbr.rel (0) target = $region201
    $region200: #{genapon_forward.1} parent=1 // pred_region
      %448 = dma.done [#allocation24], 16
    $region201: #{genapon_forward.1} parent=1 // pred_fallthru
      _
    // Predicated region
    $region202: #{genapon_forward.1} parent=1 // pred_check
      _
    $region203: #{genapon_forward.1} parent=1 // pred_check_branch
      %450 = sbr.rel (0) target = $region205
    $region204: #{genapon_forward.1} parent=1 // pred_region
      %451 = dma.done [#allocation27], 512
    $region205: #{genapon_forward.1} parent=1 // pred_fallthru
      _
    // Predicated region
    $region206: #{genapon_forward.1} parent=1 // pred_check
      _
    $region207: #{genapon_forward.1} parent=1 // pred_check_branch
      %453 = sbr.rel (0) target = $region209
    $region208: #{genapon_forward.1} parent=1 // pred_region
      %454 = dma.done [#allocation27], 16
    $region209: #{genapon_forward.1} parent=1 // pred_fallthru
      _
    // Predicated region
    $region210: #{genapon_forward.1} parent=1 // pred_check
      _
    $region211: #{genapon_forward.1} parent=1 // pred_check_branch
      %456 = sbr.rel (0) target = $region213
    $region212: #{genapon_forward.1} parent=1 // pred_region
      %457 = dma.done [#allocation30], 1024
    $region213: #{genapon_forward.1} parent=1 // pred_fallthru
      _
    // Predicated region
    $region214: #{genapon_forward.1} parent=1 // pred_check
      _
    $region215: #{genapon_forward.1} parent=1 // pred_check_branch
      %459 = sbr.rel (0) target = $region217
    $region216: #{genapon_forward.1} parent=1 // pred_region
      %460 = dma.done [#allocation30], 16
    $region217: #{genapon_forward.1} parent=1 // pred_fallthru
      _
    // Predicated region
    $region218: #{genapon_forward.1} parent=1 // pred_check
      _
    $region219: #{genapon_forward.1} parent=1 // pred_check_branch
      %462 = sbr.rel (0) target = $region221
    $region220: #{genapon_forward.1} parent=1 // pred_region
      %463 = dma.done [#allocation33], 512
    $region221: #{genapon_forward.1} parent=1 // pred_fallthru
      _
    // Predicated region
    $region222: #{genapon_forward.1} parent=1 // pred_check
      _
    $region223: #{genapon_forward.1} parent=1 // pred_check_branch
      %465 = sbr.rel (0) target = $region225
    $region224: #{genapon_forward.1} parent=1 // pred_region
      %466 = dma.done [#allocation33], 16
    $region225: #{genapon_forward.1} parent=1 // pred_fallthru
      _
    // Predicated region
    $region226: #{genapon_forward.1} parent=1 // pred_check
      _
    $region227: #{genapon_forward.1} parent=1 // pred_check_branch
      %468 = sbr.rel (0) target = $region229
    $region228: #{genapon_forward.1} parent=1 // pred_region
      %469 = dma.done [#allocation36], 1024
    $region229: #{genapon_forward.1} parent=1 // pred_fallthru
      _
    // Predicated region
    $region230: #{genapon_forward.1} parent=1 // pred_check
      _
    $region231: #{genapon_forward.1} parent=1 // pred_check_branch
      %471 = sbr.rel (0) target = $region233
    $region232: #{genapon_forward.1} parent=1 // pred_region
      %472 = dma.done [#allocation36], 16
    $region233: #{genapon_forward.1} parent=1 // pred_fallthru
      _
    // Predicated region
    $region234: #{genapon_forward.1} parent=1 // pred_check
      _
    $region235: #{genapon_forward.1} parent=1 // pred_check_branch
      %474 = sbr.rel (0) target = $region237
    $region236: #{genapon_forward.1} parent=1 // pred_region
      %475 = dma.done [#allocation39], 384
    $region237: #{genapon_forward.1} parent=1 // pred_fallthru
      _
    // Predicated region
    $region238: #{genapon_forward.1} parent=1 // pred_check
      _
    $region239: #{genapon_forward.1} parent=1 // pred_check_branch
      %477 = sbr.rel (0) target = $region241
    $region240: #{genapon_forward.1} parent=1 // pred_region
      %478 = dma.done [#allocation39], 16
    $region241: #{genapon_forward.1} parent=1 // pred_fallthru
      _
    // Predicated region
    $region242: #{genapon_forward.1} parent=1 // pred_check
      _
    $region243: #{genapon_forward.1} parent=1 // pred_check_branch
      %480 = sbr.rel (0) target = $region245
    $region244: #{genapon_forward.1} parent=1 // pred_region
      %481 = dma.done [#allocation42], 16
    $region245: #{genapon_forward.1} parent=1 // pred_fallthru
      _
    // Predicated region
    $region246: #{genapon_forward.1} parent=1 // pred_check
      _
    $region247: #{genapon_forward.1} parent=1 // pred_check_branch
      %483 = sbr.rel (0) target = $region249
    $region248: #{genapon_forward.1} parent=1 // pred_region
      %484 = dma.done [#allocation42], 256
    $region249: #{genapon_forward.1} parent=1 // pred_fallthru
      _
    %v485 = vld [vmem:[%s1] sm:$0xff]
    %v486 = vld [vmem:[%s1 + $0x8] sm:$0xff]
    %v487 = vlaneseq
    %v488 = vand.u32 %v487, 127
    %489 = vset.pattern.permute.xlu0 0
    %490 = vperm.xlu0 %489, %v485
    %v491 = vpop.permute.xlu0 %490
    %492 = vset.pattern.permute.xlu0 0
    %493 = vperm.xlu0 %492, %v486
    %v494 = vpop.permute.xlu0 %493
    %vm495 = vcmp.eq.s32.totalorder %v488, %v491
    %vm496 = vcmp.eq.s32.totalorder %v488, %v494
    %v497 = vsel %vm495, 1, 0
    %v498 = vsel %vm496, 1, 0
    %v499 = vcvt.s32.f32 %v497
    %v500 = vcvt.s32.f32 %v498
    %v501 = vld [vmem:[#allocation3] sm:$0xff]
    %v502 = vld [vmem:[#allocation3 + $0x8] sm:$0xff]
    %v503 = vld [vmem:[#allocation3 + $0x10] sm:$0xff]
    %v504 = vld [vmem:[#allocation3 + $0x18] sm:$0xff]
    %v505 = vld [vmem:[#allocation3 + $0x20] sm:$0xff]
    %v506 = vld [vmem:[#allocation3 + $0x28] sm:$0xff]
    %v507 = vld [vmem:[#allocation3 + $0x30] sm:$0xff]
    %v508 = vld [vmem:[#allocation3 + $0x38] sm:$0xff]
    %vm509 = vcmask 523264
    %v511 = vsel %vm509, %v499, 0
    %v514 = vsel %vm509, %v500, 0
    %516 = vmatprep.subr.mxu0 0.0
    %517 = vmatpush1.msra.mxu0 %v501
    %518 = vmatprep.subr.mxu0 0.0
    %519 = vmatpush1.msra.mxu0 %v502
    %520 = vmatprep.subr.mxu0 0.0
    %521 = vmatpush1.msra.mxu0 %v503
    %522 = vmatprep.subr.mxu0 0.0
    %523 = vmatpush1.msra.mxu0 %v504
    %524 = vmatprep.subr.mxu0 0.0
    %525 = vmatpush1.msra.mxu0 %v505
    %526 = vmatprep.subr.mxu0 0.0
    %527 = vmatpush1.msra.mxu0 %v506
    %528 = vmatprep.subr.mxu0 0.0
    %529 = vmatpush1.msra.mxu0 %v507
    %530 = vmatprep.subr.mxu0 0.0
    %531 = vmatpush1.msra.mxu0 %v508
    %532 = vmatprep.subr.mxu0 0.0
    %533 = vmatpush1.msra.mxu0 0.0
    %534 = vmatprep.subr.mxu0 0.0
    %535 = vmatpush1.msra.mxu0 0.0
    %536 = vmatprep.subr.mxu0 0.0
    %537 = vmatpush1.msra.mxu0 0.0
    %538 = vmatprep.subr.mxu0 0.0
    %539 = vmatpush1.msra.mxu0 0.0
    %540 = vmatprep.subr.mxu0 0.0
    %541 = vmatpush1.msra.mxu0 0.0
    %542 = vmatprep.subr.mxu0 0.0
    %543 = vmatpush1.msra.mxu0 0.0
    %544 = vmatprep.subr.mxu0 0.0
    %545 = vmatpush1.msra.mxu0 0.0
    %546 = vmatprep.subr.mxu0 0.0
    %547 = vmatpush1.msra.mxu0 0.0
    %548 = vmatprep.subr.mxu0 0.0
    %549 = vmatpush1.msra.mxu0 0.0
    %550 = vmatprep.subr.mxu0 0.0
    %551 = vmatpush1.msra.mxu0 0.0
    %552 = vmatprep.subr.mxu0 0.0
    %553 = vmatpush1.msra.mxu0 0.0
    %554 = vmatprep.subr.mxu0 0.0
    %555 = vmatpush1.msra.mxu0 0.0
    %556 = vmatprep.subr.mxu0 0.0
    %557 = vmatpush1.msra.mxu0 0.0
    %558 = vmatprep.subr.mxu0 0.0
    %559 = vmatpush1.msra.mxu0 0.0
    %560 = vmatprep.subr.mxu0 0.0
    %561 = vmatpush1.msra.mxu0 0.0
    %562 = vmatprep.subr.mxu0 0.0
    %563 = vmatpush1.msra.mxu0 0.0
    %564 = vmatprep.subr.mxu0 0.0
    %565 = vmatpush1.msra.mxu0 0.0
    %566 = vmatprep.subr.mxu0 0.0
    %567 = vmatpush1.msra.mxu0 0.0
    %568 = vmatprep.subr.mxu0 0.0
    %569 = vmatpush1.msra.mxu0 0.0
    %570 = vmatprep.subr.mxu0 0.0
    %571 = vmatpush1.msra.mxu0 0.0
    %572 = vmatprep.subr.mxu0 0.0
    %573 = vmatpush1.msra.mxu0 0.0
    %574 = vmatprep.subr.mxu0 0.0
    %575 = vmatpush1.msra.mxu0 0.0
    %576 = vmatprep.subr.mxu0 0.0
    %577 = vmatpush1.msra.mxu0 0.0
    %578 = vmatprep.subr.mxu0 0.0
    %579 = vmatpush1.msra.mxu0 0.0
    %580 = vmatprep.mubr.f32.mxu0 0.0
    %581 = vmatmul.mubr.f32.gmra.mrb[0].mxu0 %v511
    %v582 = vpop.f32.mrb[0].mxu0
    %v583 = vadd.f32 0.0, %v582
    %v584 = vpop.f32.mrb[0].mxu0
    %585 = vmatprep.mubr.f32.mxu0 0.0
    %586 = vmatmul.mubr.f32.gmra.mrb[0].mxu0 %v514
    %v587 = vpop.f32.mrb[0].mxu0
    %v588 = vadd.f32 0.0, %v587
    %v589 = vpop.f32.mrb[0].mxu0
    %590 = vdwg.mxu0
    %v591 = vld [vmem:[#allocation7] sm:$0xff]
    %v592 = vld [vmem:[#allocation7 + $0x8] sm:$0xff]
    %v593 = vld [vmem:[#allocation7 + $0x10] sm:$0xff]
    %v594 = vld [vmem:[#allocation7 + $0x18] sm:$0xff]
    %v595 = vld [vmem:[#allocation8] sm:$0x1]
    %v596 = vld [vmem:[#allocation10] sm:$0xff]
    %v597 = vld [vmem:[#allocation10 + $0x8] sm:$0xff]
    %v598 = vld [vmem:[#allocation10 + $0x10] sm:$0xff]
    %v599 = vld [vmem:[#allocation10 + $0x18] sm:$0xff]
    %v600 = vld [vmem:[#allocation10 + $0x20] sm:$0xff]
    %v601 = vld [vmem:[#allocation10 + $0x28] sm:$0xff]
    %v602 = vld [vmem:[#allocation10 + $0x30] sm:$0xff]
    %v603 = vld [vmem:[#allocation10 + $0x38] sm:$0xff]
    %v604 = vld [vmem:[#allocation11] sm:$0x1]
    %v606 = vlaneseq
    %v607 = vshrl.u32 %v606, 7
    %v608 = vsub.s32 0, %v607
    %v609 = vrot.slane %v595, %v608
    %vm611 = vcmask 261120
    %v613 = vsel %vm611, %v583, 0
    %v616 = vsel %vm611, %v588, 0
    %618 = vmatprep.subr.mxu0 0.0
    %619 = vmatpush1.msra.mxu0 %v591
    %620 = vmatprep.subr.mxu0 0.0
    %621 = vmatpush1.msra.mxu0 %v592
    %622 = vmatprep.subr.mxu0 0.0
    %623 = vmatpush1.msra.mxu0 %v593
    %624 = vmatprep.subr.mxu0 0.0
    %625 = vmatpush1.msra.mxu0 %v594
    %626 = vmatprep.subr.mxu0 0.0
    %627 = vmatpush1.msra.mxu0 0.0
    %628 = vmatprep.subr.mxu0 0.0
    %629 = vmatpush1.msra.mxu0 0.0
    %630 = vmatprep.subr.mxu0 0.0
    %631 = vmatpush1.msra.mxu0 0.0
    %632 = vmatprep.subr.mxu0 0.0
    %633 = vmatpush1.msra.mxu0 0.0
    %634 = vmatprep.subr.mxu0 0.0
    %635 = vmatpush1.msra.mxu0 0.0
    %636 = vmatprep.subr.mxu0 0.0
    %637 = vmatpush1.msra.mxu0 0.0
    %638 = vmatprep.subr.mxu0 0.0
    %639 = vmatpush1.msra.mxu0 0.0
    %640 = vmatprep.subr.mxu0 0.0
    %641 = vmatpush1.msra.mxu0 0.0
    %642 = vmatprep.subr.mxu0 0.0
    %643 = vmatpush1.msra.mxu0 0.0
    %644 = vmatprep.subr.mxu0 0.0
    %645 = vmatpush1.msra.mxu0 0.0
    %646 = vmatprep.subr.mxu0 0.0
    %647 = vmatpush1.msra.mxu0 0.0
    %648 = vmatprep.subr.mxu0 0.0
    %649 = vmatpush1.msra.mxu0 0.0
    %650 = vmatprep.subr.mxu0 0.0
    %651 = vmatpush1.msra.mxu0 0.0
    %652 = vmatprep.subr.mxu0 0.0
    %653 = vmatpush1.msra.mxu0 0.0
    %654 = vmatprep.subr.mxu0 0.0
    %655 = vmatpush1.msra.mxu0 0.0
    %656 = vmatprep.subr.mxu0 0.0
    %657 = vmatpush1.msra.mxu0 0.0
    %658 = vmatprep.subr.mxu0 0.0
    %659 = vmatpush1.msra.mxu0 0.0
    %660 = vmatprep.subr.mxu0 0.0
    %661 = vmatpush1.msra.mxu0 0.0
    %662 = vmatprep.subr.mxu0 0.0
    %663 = vmatpush1.msra.mxu0 0.0
    %664 = vmatprep.subr.mxu0 0.0
    %665 = vmatpush1.msra.mxu0 0.0
    %666 = vmatprep.subr.mxu0 0.0
    %667 = vmatpush1.msra.mxu0 0.0
    %668 = vmatprep.subr.mxu0 0.0
    %669 = vmatpush1.msra.mxu0 0.0
    %670 = vmatprep.subr.mxu0 0.0
    %671 = vmatpush1.msra.mxu0 0.0
    %672 = vmatprep.subr.mxu0 0.0
    %673 = vmatpush1.msra.mxu0 0.0
    %674 = vmatprep.subr.mxu0 0.0
    %675 = vmatpush1.msra.mxu0 0.0
    %676 = vmatprep.subr.mxu0 0.0
    %677 = vmatpush1.msra.mxu0 0.0
    %678 = vmatprep.subr.mxu0 0.0
    %679 = vmatpush1.msra.mxu0 0.0
    %680 = vmatprep.subr.mxu0 0.0
    %681 = vmatpush1.msra.mxu0 0.0
    %682 = vmatprep.mubr.f32.mxu0 0.0
    %683 = vmatmul.mubr.f32.gmra.mrb[0].mxu0 %v613
    %v684 = vpop.f32.mrb[0].mxu0
    %v685 = vadd.f32 %v609, %v684
    %v686 = vpop.f32.mrb[0].mxu0
    %687 = vmatprep.mubr.f32.mxu0 0.0
    %688 = vmatmul.mubr.f32.gmra.mrb[0].mxu0 %v616
    %v689 = vpop.f32.mrb[0].mxu0
    %v690 = vadd.f32 %v609, %v689
    %v691 = vpop.f32.mrb[0].mxu0
    %692 = vdwg.mxu0
    %v693 = vmax.f32 %v685, 0.0
    %v694 = vmax.f32 %v690, 0.0
    %v696 = vlaneseq
    %v697 = vshrl.u32 %v696, 7
    %v698 = vsub.s32 0, %v697
    %v699 = vrot.slane %v604, %v698
    %v702 = vsel %vm509, %v693, 0
    %v705 = vsel %vm509, %v694, 0
    %707 = vmatprep.subr.mxu0 0.0
    %708 = vmatpush1.msra.mxu0 %v596
    %709 = vmatprep.subr.mxu0 0.0
    %710 = vmatpush1.msra.mxu0 %v597
    %711 = vmatprep.subr.mxu0 0.0
    %712 = vmatpush1.msra.mxu0 %v598
    %713 = vmatprep.subr.mxu0 0.0
    %714 = vmatpush1.msra.mxu0 %v599
    %715 = vmatprep.subr.mxu0 0.0
    %716 = vmatpush1.msra.mxu0 %v600
    %717 = vmatprep.subr.mxu0 0.0
    %718 = vmatpush1.msra.mxu0 %v601
    %719 = vmatprep.subr.mxu0 0.0
    %720 = vmatpush1.msra.mxu0 %v602
    %721 = vmatprep.subr.mxu0 0.0
    %722 = vmatpush1.msra.mxu0 %v603
    %723 = vmatprep.subr.mxu0 0.0
    %724 = vmatpush1.msra.mxu0 0.0
    %725 = vmatprep.subr.mxu0 0.0
    %726 = vmatpush1.msra.mxu0 0.0
    %727 = vmatprep.subr.mxu0 0.0
    %728 = vmatpush1.msra.mxu0 0.0
    %729 = vmatprep.subr.mxu0 0.0
    %730 = vmatpush1.msra.mxu0 0.0
    %731 = vmatprep.subr.mxu0 0.0
    %732 = vmatpush1.msra.mxu0 0.0
    %733 = vmatprep.subr.mxu0 0.0
    %734 = vmatpush1.msra.mxu0 0.0
    %735 = vmatprep.subr.mxu0 0.0
    %736 = vmatpush1.msra.mxu0 0.0
    %737 = vmatprep.subr.mxu0 0.0
    %738 = vmatpush1.msra.mxu0 0.0
    %739 = vmatprep.subr.mxu0 0.0
    %740 = vmatpush1.msra.mxu0 0.0
    %741 = vmatprep.subr.mxu0 0.0
    %742 = vmatpush1.msra.mxu0 0.0
    %743 = vmatprep.subr.mxu0 0.0
    %744 = vmatpush1.msra.mxu0 0.0
    %745 = vmatprep.subr.mxu0 0.0
    %746 = vmatpush1.msra.mxu0 0.0
    %747 = vmatprep.subr.mxu0 0.0
    %748 = vmatpush1.msra.mxu0 0.0
    %749 = vmatprep.subr.mxu0 0.0
    %750 = vmatpush1.msra.mxu0 0.0
    %751 = vmatprep.subr.mxu0 0.0
    %752 = vmatpush1.msra.mxu0 0.0
    %753 = vmatprep.subr.mxu0 0.0
    %754 = vmatpush1.msra.mxu0 0.0
    %755 = vmatprep.subr.mxu0 0.0
    %756 = vmatpush1.msra.mxu0 0.0
    %757 = vmatprep.subr.mxu0 0.0
    %758 = vmatpush1.msra.mxu0 0.0
    %759 = vmatprep.subr.mxu0 0.0
    %760 = vmatpush1.msra.mxu0 0.0
    %761 = vmatprep.subr.mxu0 0.0
    %762 = vmatpush1.msra.mxu0 0.0
    %763 = vmatprep.subr.mxu0 0.0
    %764 = vmatpush1.msra.mxu0 0.0
    %765 = vmatprep.subr.mxu0 0.0
    %766 = vmatpush1.msra.mxu0 0.0
    %767 = vmatprep.subr.mxu0 0.0
    %768 = vmatpush1.msra.mxu0 0.0
    %769 = vmatprep.subr.mxu0 0.0
    %770 = vmatpush1.msra.mxu0 0.0
    %771 = vmatprep.mubr.f32.mxu0 0.0
    %772 = vmatmul.mubr.f32.gmra.mrb[0].mxu0 %v702
    %v773 = vpop.f32.mrb[0].mxu0
    %v774 = vadd.f32 %v699, %v773
    %v775 = vpop.f32.mrb[0].mxu0
    %776 = vmatprep.mubr.f32.mxu0 0.0
    %777 = vmatmul.mubr.f32.gmra.mrb[0].mxu0 %v705
    %v778 = vpop.f32.mrb[0].mxu0
    %v779 = vadd.f32 %v699, %v778
    %v780 = vpop.f32.mrb[0].mxu0
    %781 = vdwg.mxu0
    %v782 = vlaneseq
    %v783 = vshrl.u32 %v782, 7
    %v784 = vmul.u32 %v783, 8
    %vm785 = vcmp.ge.s32.totalorder %v488, %v784
    %v786 = vadd.s32 %v783, 1
    %v787 = vmul.u32 %v786, 8
    %vm788 = vcmp.lt.s32.totalorder %v488, %v787
    %vm789 = vmand %vm785, %vm788
    %v790 = vsel %vm789, 1, 0
    %v791 = vcvt.s32.f32 %v790
    %vm792 = vcmask 130048
    %v794 = vsel %vm792, %v791, 0
    %796 = vmatprep.subr.mxu0 0.0
    %797 = vmatpush1.msra.mxu0 %v774
    %798 = vmatprep.subr.mxu0 0.0
    %799 = vmatpush1.msra.mxu0 %v779
    %800 = vmatprep.subr.mxu0 0.0
    %801 = vmatpush1.msra.mxu0 0.0
    %802 = vmatprep.subr.mxu0 0.0
    %803 = vmatpush1.msra.mxu0 0.0
    %804 = vmatprep.subr.mxu0 0.0
    %805 = vmatpush1.msra.mxu0 0.0
    %806 = vmatprep.subr.mxu0 0.0
    %807 = vmatpush1.msra.mxu0 0.0
    %808 = vmatprep.subr.mxu0 0.0
    %809 = vmatpush1.msra.mxu0 0.0
    %810 = vmatprep.subr.mxu0 0.0
    %811 = vmatpush1.msra.mxu0 0.0
    %812 = vmatprep.subr.mxu0 0.0
    %813 = vmatpush1.msra.mxu0 0.0
    %814 = vmatprep.subr.mxu0 0.0
    %815 = vmatpush1.msra.mxu0 0.0
    %816 = vmatprep.subr.mxu0 0.0
    %817 = vmatpush1.msra.mxu0 0.0
    %818 = vmatprep.subr.mxu0 0.0
    %819 = vmatpush1.msra.mxu0 0.0
    %820 = vmatprep.subr.mxu0 0.0
    %821 = vmatpush1.msra.mxu0 0.0
    %822 = vmatprep.subr.mxu0 0.0
    %823 = vmatpush1.msra.mxu0 0.0
    %824 = vmatprep.subr.mxu0 0.0
    %825 = vmatpush1.msra.mxu0 0.0
    %826 = vmatprep.subr.mxu0 0.0
    %827 = vmatpush1.msra.mxu0 0.0
    %828 = vmatprep.subr.mxu0 0.0
    %829 = vmatpush1.msra.mxu0 0.0
    %830 = vmatprep.subr.mxu0 0.0
    %831 = vmatpush1.msra.mxu0 0.0
    %832 = vmatprep.subr.mxu0 0.0
    %833 = vmatpush1.msra.mxu0 0.0
    %834 = vmatprep.subr.mxu0 0.0
    %835 = vmatpush1.msra.mxu0 0.0
    %836 = vmatprep.subr.mxu0 0.0
    %837 = vmatpush1.msra.mxu0 0.0
    %838 = vmatprep.subr.mxu0 0.0
    %839 = vmatpush1.msra.mxu0 0.0
    %840 = vmatprep.subr.mxu0 0.0
    %841 = vmatpush1.msra.mxu0 0.0
    %842 = vmatprep.subr.mxu0 0.0
    %843 = vmatpush1.msra.mxu0 0.0
    %844 = vmatprep.subr.mxu0 0.0
    %845 = vmatpush1.msra.mxu0 0.0
    %846 = vmatprep.subr.mxu0 0.0
    %847 = vmatpush1.msra.mxu0 0.0
    %848 = vmatprep.subr.mxu0 0.0
    %849 = vmatpush1.msra.mxu0 0.0
    %850 = vmatprep.subr.mxu0 0.0
    %851 = vmatpush1.msra.mxu0 0.0
    %852 = vmatprep.subr.mxu0 0.0
    %853 = vmatpush1.msra.mxu0 0.0
    %854 = vmatprep.subr.mxu0 0.0
    %855 = vmatpush1.msra.mxu0 0.0
    %856 = vmatprep.subr.mxu0 0.0
    %857 = vmatpush1.msra.mxu0 0.0
    %858 = vmatprep.subr.mxu0 0.0
    %859 = vmatpush1.msra.mxu0 0.0
    %860 = vmatprep.mubr.f32.mxu0 0.0
    %861 = vmatmul.mubr.f32.gmra.mrb[0].mxu0 %v794
    %v862 = vpop.f32.mrb[0].mxu0
    %v863 = vadd.f32 0.0, %v862
    %v864 = vpop.f32.mrb[0].mxu0
    %865 = vdwg.mxu0
    %v866 = vld [vmem:[#allocation13] sm:$0xff]
    %v867 = vld [vmem:[#allocation13 + $0x8] sm:$0xff]
    %v868 = vld [vmem:[#allocation13 + $0x10] sm:$0xff]
    %v869 = vld [vmem:[#allocation13 + $0x18] sm:$0xff]
    %v870 = vld [vmem:[#allocation14] sm:$0x1]
    %v871 = vld [vmem:[#allocation16] sm:$0xff]
    %v872 = vld [vmem:[#allocation16 + $0x8] sm:$0xff]
    %v873 = vld [vmem:[#allocation16 + $0x10] sm:$0xff]
    %v874 = vld [vmem:[#allocation16 + $0x18] sm:$0xff]
    %v875 = vld [vmem:[#allocation16 + $0x20] sm:$0xff]
    %v876 = vld [vmem:[#allocation16 + $0x28] sm:$0xff]
    %v877 = vld [vmem:[#allocation16 + $0x30] sm:$0xff]
    %v878 = vld [vmem:[#allocation16 + $0x38] sm:$0xff]
    %v879 = vld [vmem:[#allocation17] sm:$0x1]
    %v881 = vlaneseq
    %v882 = vshrl.u32 %v881, 7
    %v883 = vsub.s32 0, %v882
    %v884 = vrot.slane %v870, %v883
    %v887 = vsel %vm611, %v863, 0
    %889 = vmatprep.subr.mxu0 0.0
    %890 = vmatpush1.msra.mxu0 %v866
    %891 = vmatprep.subr.mxu0 0.0
    %892 = vmatpush1.msra.mxu0 %v867
    %893 = vmatprep.subr.mxu0 0.0
    %894 = vmatpush1.msra.mxu0 %v868
    %895 = vmatprep.subr.mxu0 0.0
    %896 = vmatpush1.msra.mxu0 %v869
    %897 = vmatprep.subr.mxu0 0.0
    %898 = vmatpush1.msra.mxu0 0.0
    %899 = vmatprep.subr.mxu0 0.0
    %900 = vmatpush1.msra.mxu0 0.0
    %901 = vmatprep.subr.mxu0 0.0
    %902 = vmatpush1.msra.mxu0 0.0
    %903 = vmatprep.subr.mxu0 0.0
    %904 = vmatpush1.msra.mxu0 0.0
    %905 = vmatprep.subr.mxu0 0.0
    %906 = vmatpush1.msra.mxu0 0.0
    %907 = vmatprep.subr.mxu0 0.0
    %908 = vmatpush1.msra.mxu0 0.0
    %909 = vmatprep.subr.mxu0 0.0
    %910 = vmatpush1.msra.mxu0 0.0
    %911 = vmatprep.subr.mxu0 0.0
    %912 = vmatpush1.msra.mxu0 0.0
    %913 = vmatprep.subr.mxu0 0.0
    %914 = vmatpush1.msra.mxu0 0.0
    %915 = vmatprep.subr.mxu0 0.0
    %916 = vmatpush1.msra.mxu0 0.0
    %917 = vmatprep.subr.mxu0 0.0
    %918 = vmatpush1.msra.mxu0 0.0
    %919 = vmatprep.subr.mxu0 0.0
    %920 = vmatpush1.msra.mxu0 0.0
    %921 = vmatprep.subr.mxu0 0.0
    %922 = vmatpush1.msra.mxu0 0.0
    %923 = vmatprep.subr.mxu0 0.0
    %924 = vmatpush1.msra.mxu0 0.0
    %925 = vmatprep.subr.mxu0 0.0
    %926 = vmatpush1.msra.mxu0 0.0
    %927 = vmatprep.subr.mxu0 0.0
    %928 = vmatpush1.msra.mxu0 0.0
    %929 = vmatprep.subr.mxu0 0.0
    %930 = vmatpush1.msra.mxu0 0.0
    %931 = vmatprep.subr.mxu0 0.0
    %932 = vmatpush1.msra.mxu0 0.0
    %933 = vmatprep.subr.mxu0 0.0
    %934 = vmatpush1.msra.mxu0 0.0
    %935 = vmatprep.subr.mxu0 0.0
    %936 = vmatpush1.msra.mxu0 0.0
    %937 = vmatprep.subr.mxu0 0.0
    %938 = vmatpush1.msra.mxu0 0.0
    %939 = vmatprep.subr.mxu0 0.0
    %940 = vmatpush1.msra.mxu0 0.0
    %941 = vmatprep.subr.mxu0 0.0
    %942 = vmatpush1.msra.mxu0 0.0
    %943 = vmatprep.subr.mxu0 0.0
    %944 = vmatpush1.msra.mxu0 0.0
    %945 = vmatprep.subr.mxu0 0.0
    %946 = vmatpush1.msra.mxu0 0.0
    %947 = vmatprep.subr.mxu0 0.0
    %948 = vmatpush1.msra.mxu0 0.0
    %949 = vmatprep.subr.mxu0 0.0
    %950 = vmatpush1.msra.mxu0 0.0
    %951 = vmatprep.subr.mxu0 0.0
    %952 = vmatpush1.msra.mxu0 0.0
    %953 = vmatprep.mubr.f32.mxu0 0.0
    %954 = vmatmul.mubr.f32.gmra.mrb[0].mxu0 %v887
    %v955 = vpop.f32.mrb[0].mxu0
    %v956 = vadd.f32 %v884, %v955
    %v957 = vpop.f32.mrb[0].mxu0
    %958 = vdwg.mxu0
    %v959 = vmax.f32 %v956, 0.0
    %v961 = vlaneseq
    %v962 = vshrl.u32 %v961, 7
    %v963 = vsub.s32 0, %v962
    %v964 = vrot.slane %v879, %v963
    %v967 = vsel %vm509, %v959, 0
    %969 = vmatprep.subr.mxu0 0.0
    %970 = vmatpush1.msra.mxu0 %v871
    %971 = vmatprep.subr.mxu0 0.0
    %972 = vmatpush1.msra.mxu0 %v872
    %973 = vmatprep.subr.mxu0 0.0
    %974 = vmatpush1.msra.mxu0 %v873
    %975 = vmatprep.subr.mxu0 0.0
    %976 = vmatpush1.msra.mxu0 %v874
    %977 = vmatprep.subr.mxu0 0.0
    %978 = vmatpush1.msra.mxu0 %v875
    %979 = vmatprep.subr.mxu0 0.0
    %980 = vmatpush1.msra.mxu0 %v876
    %981 = vmatprep.subr.mxu0 0.0
    %982 = vmatpush1.msra.mxu0 %v877
    %983 = vmatprep.subr.mxu0 0.0
    %984 = vmatpush1.msra.mxu0 %v878
    %985 = vmatprep.subr.mxu0 0.0
    %986 = vmatpush1.msra.mxu0 0.0
    %987 = vmatprep.subr.mxu0 0.0
    %988 = vmatpush1.msra.mxu0 0.0
    %989 = vmatprep.subr.mxu0 0.0
    %990 = vmatpush1.msra.mxu0 0.0
    %991 = vmatprep.subr.mxu0 0.0
    %992 = vmatpush1.msra.mxu0 0.0
    %993 = vmatprep.subr.mxu0 0.0
    %994 = vmatpush1.msra.mxu0 0.0
    %995 = vmatprep.subr.mxu0 0.0
    %996 = vmatpush1.msra.mxu0 0.0
    %997 = vmatprep.subr.mxu0 0.0
    %998 = vmatpush1.msra.mxu0 0.0
    %999 = vmatprep.subr.mxu0 0.0
    %1000 = vmatpush1.msra.mxu0 0.0
    %1001 = vmatprep.subr.mxu0 0.0
    %1002 = vmatpush1.msra.mxu0 0.0
    %1003 = vmatprep.subr.mxu0 0.0
    %1004 = vmatpush1.msra.mxu0 0.0
    %1005 = vmatprep.subr.mxu0 0.0
    %1006 = vmatpush1.msra.mxu0 0.0
    %1007 = vmatprep.subr.mxu0 0.0
    %1008 = vmatpush1.msra.mxu0 0.0
    %1009 = vmatprep.subr.mxu0 0.0
    %1010 = vmatpush1.msra.mxu0 0.0
    %1011 = vmatprep.subr.mxu0 0.0
    %1012 = vmatpush1.msra.mxu0 0.0
    %1013 = vmatprep.subr.mxu0 0.0
    %1014 = vmatpush1.msra.mxu0 0.0
    %1015 = vmatprep.subr.mxu0 0.0
    %1016 = vmatpush1.msra.mxu0 0.0
    %1017 = vmatprep.subr.mxu0 0.0
    %1018 = vmatpush1.msra.mxu0 0.0
    %1019 = vmatprep.subr.mxu0 0.0
    %1020 = vmatpush1.msra.mxu0 0.0
    %1021 = vmatprep.subr.mxu0 0.0
    %1022 = vmatpush1.msra.mxu0 0.0
    %1023 = vmatprep.subr.mxu0 0.0
    %1024 = vmatpush1.msra.mxu0 0.0
    %1025 = vmatprep.subr.mxu0 0.0
    %1026 = vmatpush1.msra.mxu0 0.0
    %1027 = vmatprep.subr.mxu0 0.0
    %1028 = vmatpush1.msra.mxu0 0.0
    %1029 = vmatprep.subr.mxu0 0.0
    %1030 = vmatpush1.msra.mxu0 0.0
    %1031 = vmatprep.subr.mxu0 0.0
    %1032 = vmatpush1.msra.mxu0 0.0
    %1033 = vmatprep.mubr.f32.mxu0 0.0
    %1034 = vmatmul.mubr.f32.gmra.mrb[0].mxu0 %v967
    %v1035 = vpop.f32.mrb[0].mxu0
    %v1036 = vadd.f32 %v964, %v1035
    %v1037 = vpop.f32.mrb[0].mxu0
    %1038 = vdwg.mxu0
    %v1039 = vld [vmem:[#allocation26] sm:$0xff]
    %v1040 = vld [vmem:[#allocation26 + $0x8] sm:$0xff]
    %v1041 = vld [vmem:[#allocation26 + $0x10] sm:$0xff]
    %v1042 = vld [vmem:[#allocation26 + $0x18] sm:$0xff]
    %v1043 = vld [vmem:[#allocation28] sm:$0x1]
    %v1044 = vld [vmem:[#allocation29] sm:$0xff]
    %v1045 = vld [vmem:[#allocation29 + $0x8] sm:$0xff]
    %v1046 = vld [vmem:[#allocation29 + $0x10] sm:$0xff]
    %v1047 = vld [vmem:[#allocation29 + $0x18] sm:$0xff]
    %v1048 = vld [vmem:[#allocation29 + $0x20] sm:$0xff]
    %v1049 = vld [vmem:[#allocation29 + $0x28] sm:$0xff]
    %v1050 = vld [vmem:[#allocation29 + $0x30] sm:$0xff]
    %v1051 = vld [vmem:[#allocation29 + $0x38] sm:$0xff]
    %v1052 = vld [vmem:[#allocation31] sm:$0x1]
    %v1054 = vlaneseq
    %v1055 = vshrl.u32 %v1054, 7
    %v1056 = vsub.s32 0, %v1055
    %v1057 = vrot.slane %v1043, %v1056
    %v1060 = vsel %vm611, %v1036, 0
    %1062 = vmatprep.subr.mxu0 0.0
    %1063 = vmatpush1.msra.mxu0 %v1039
    %1064 = vmatprep.subr.mxu0 0.0
    %1065 = vmatpush1.msra.mxu0 %v1040
    %1066 = vmatprep.subr.mxu0 0.0
    %1067 = vmatpush1.msra.mxu0 %v1041
    %1068 = vmatprep.subr.mxu0 0.0
    %1069 = vmatpush1.msra.mxu0 %v1042
    %1070 = vmatprep.subr.mxu0 0.0
    %1071 = vmatpush1.msra.mxu0 0.0
    %1072 = vmatprep.subr.mxu0 0.0
    %1073 = vmatpush1.msra.mxu0 0.0
    %1074 = vmatprep.subr.mxu0 0.0
    %1075 = vmatpush1.msra.mxu0 0.0
    %1076 = vmatprep.subr.mxu0 0.0
    %1077 = vmatpush1.msra.mxu0 0.0
    %1078 = vmatprep.subr.mxu0 0.0
    %1079 = vmatpush1.msra.mxu0 0.0
    %1080 = vmatprep.subr.mxu0 0.0
    %1081 = vmatpush1.msra.mxu0 0.0
    %1082 = vmatprep.subr.mxu0 0.0
    %1083 = vmatpush1.msra.mxu0 0.0
    %1084 = vmatprep.subr.mxu0 0.0
    %1085 = vmatpush1.msra.mxu0 0.0
    %1086 = vmatprep.subr.mxu0 0.0
    %1087 = vmatpush1.msra.mxu0 0.0
    %1088 = vmatprep.subr.mxu0 0.0
    %1089 = vmatpush1.msra.mxu0 0.0
    %1090 = vmatprep.subr.mxu0 0.0
    %1091 = vmatpush1.msra.mxu0 0.0
    %1092 = vmatprep.subr.mxu0 0.0
    %1093 = vmatpush1.msra.mxu0 0.0
    %1094 = vmatprep.subr.mxu0 0.0
    %1095 = vmatpush1.msra.mxu0 0.0
    %1096 = vmatprep.subr.mxu0 0.0
    %1097 = vmatpush1.msra.mxu0 0.0
    %1098 = vmatprep.subr.mxu0 0.0
    %1099 = vmatpush1.msra.mxu0 0.0
    %1100 = vmatprep.subr.mxu0 0.0
    %1101 = vmatpush1.msra.mxu0 0.0
    %1102 = vmatprep.subr.mxu0 0.0
    %1103 = vmatpush1.msra.mxu0 0.0
    %1104 = vmatprep.subr.mxu0 0.0
    %1105 = vmatpush1.msra.mxu0 0.0
    %1106 = vmatprep.subr.mxu0 0.0
    %1107 = vmatpush1.msra.mxu0 0.0
    %1108 = vmatprep.subr.mxu0 0.0
    %1109 = vmatpush1.msra.mxu0 0.0
    %1110 = vmatprep.subr.mxu0 0.0
    %1111 = vmatpush1.msra.mxu0 0.0
    %1112 = vmatprep.subr.mxu0 0.0
    %1113 = vmatpush1.msra.mxu0 0.0
    %1114 = vmatprep.subr.mxu0 0.0
    %1115 = vmatpush1.msra.mxu0 0.0
    %1116 = vmatprep.subr.mxu0 0.0
    %1117 = vmatpush1.msra.mxu0 0.0
    %1118 = vmatprep.subr.mxu0 0.0
    %1119 = vmatpush1.msra.mxu0 0.0
    %1120 = vmatprep.subr.mxu0 0.0
    %1121 = vmatpush1.msra.mxu0 0.0
    %1122 = vmatprep.subr.mxu0 0.0
    %1123 = vmatpush1.msra.mxu0 0.0
    %1124 = vmatprep.subr.mxu0 0.0
    %1125 = vmatpush1.msra.mxu0 0.0
    %1126 = vmatprep.mubr.f32.mxu0 0.0
    %1127 = vmatmul.mubr.f32.gmra.mrb[0].mxu0 %v1060
    %v1128 = vpop.f32.mrb[0].mxu0
    %v1129 = vadd.f32 %v1057, %v1128
    %v1130 = vpop.f32.mrb[0].mxu0
    %1131 = vdwg.mxu0
    %v1132 = vmax.f32 %v1129, 0.0
    %v1134 = vlaneseq
    %v1135 = vshrl.u32 %v1134, 7
    %v1136 = vsub.s32 0, %v1135
    %v1137 = vrot.slane %v1052, %v1136
    %v1140 = vsel %vm509, %v1132, 0
    %1142 = vmatprep.subr.mxu0 0.0
    %1143 = vmatpush1.msra.mxu0 %v1044
    %1144 = vmatprep.subr.mxu0 0.0
    %1145 = vmatpush1.msra.mxu0 %v1045
    %1146 = vmatprep.subr.mxu0 0.0
    %1147 = vmatpush1.msra.mxu0 %v1046
    %1148 = vmatprep.subr.mxu0 0.0
    %1149 = vmatpush1.msra.mxu0 %v1047
    %1150 = vmatprep.subr.mxu0 0.0
    %1151 = vmatpush1.msra.mxu0 %v1048
    %1152 = vmatprep.subr.mxu0 0.0
    %1153 = vmatpush1.msra.mxu0 %v1049
    %1154 = vmatprep.subr.mxu0 0.0
    %1155 = vmatpush1.msra.mxu0 %v1050
    %1156 = vmatprep.subr.mxu0 0.0
    %1157 = vmatpush1.msra.mxu0 %v1051
    %1158 = vmatprep.subr.mxu0 0.0
    %1159 = vmatpush1.msra.mxu0 0.0
    %1160 = vmatprep.subr.mxu0 0.0
    %1161 = vmatpush1.msra.mxu0 0.0
    %1162 = vmatprep.subr.mxu0 0.0
    %1163 = vmatpush1.msra.mxu0 0.0
    %1164 = vmatprep.subr.mxu0 0.0
    %1165 = vmatpush1.msra.mxu0 0.0
    %1166 = vmatprep.subr.mxu0 0.0
    %1167 = vmatpush1.msra.mxu0 0.0
    %1168 = vmatprep.subr.mxu0 0.0
    %1169 = vmatpush1.msra.mxu0 0.0
    %1170 = vmatprep.subr.mxu0 0.0
    %1171 = vmatpush1.msra.mxu0 0.0
    %1172 = vmatprep.subr.mxu0 0.0
    %1173 = vmatpush1.msra.mxu0 0.0
    %1174 = vmatprep.subr.mxu0 0.0
    %1175 = vmatpush1.msra.mxu0 0.0
    %1176 = vmatprep.subr.mxu0 0.0
    %1177 = vmatpush1.msra.mxu0 0.0
    %1178 = vmatprep.subr.mxu0 0.0
    %1179 = vmatpush1.msra.mxu0 0.0
    %1180 = vmatprep.subr.mxu0 0.0
    %1181 = vmatpush1.msra.mxu0 0.0
    %1182 = vmatprep.subr.mxu0 0.0
    %1183 = vmatpush1.msra.mxu0 0.0
    %1184 = vmatprep.subr.mxu0 0.0
    %1185 = vmatpush1.msra.mxu0 0.0
    %1186 = vmatprep.subr.mxu0 0.0
    %1187 = vmatpush1.msra.mxu0 0.0
    %1188 = vmatprep.subr.mxu0 0.0
    %1189 = vmatpush1.msra.mxu0 0.0
    %1190 = vmatprep.subr.mxu0 0.0
    %1191 = vmatpush1.msra.mxu0 0.0
    %1192 = vmatprep.subr.mxu0 0.0
    %1193 = vmatpush1.msra.mxu0 0.0
    %1194 = vmatprep.subr.mxu0 0.0
    %1195 = vmatpush1.msra.mxu0 0.0
    %1196 = vmatprep.subr.mxu0 0.0
    %1197 = vmatpush1.msra.mxu0 0.0
    %1198 = vmatprep.subr.mxu0 0.0
    %1199 = vmatpush1.msra.mxu0 0.0
    %1200 = vmatprep.subr.mxu0 0.0
    %1201 = vmatpush1.msra.mxu0 0.0
    %1202 = vmatprep.subr.mxu0 0.0
    %1203 = vmatpush1.msra.mxu0 0.0
    %1204 = vmatprep.subr.mxu0 0.0
    %1205 = vmatpush1.msra.mxu0 0.0
    %1206 = vmatprep.mubr.f32.mxu0 0.0
    %1207 = vmatmul.mubr.f32.gmra.mrb[0].mxu0 %v1140
    %v1208 = vpop.f32.mrb[0].mxu0
    %v1209 = vadd.f32 %v1137, %v1208
    %v1210 = vpop.f32.mrb[0].mxu0
    %1211 = vdwg.mxu0
    %v1212 = vld [vmem:[%s5] sm:$0xff]
    %v1213 = vld [vmem:[%s5 + $0x8] sm:$0xff]
    %v1214 = vld [vmem:[#allocation19] sm:$0x1]
    %1216 = vset.pattern.permute.xlu0 0
    %1217 = vperm.xlu0 %1216, %v1212
    %v1218 = vpop.permute.xlu0 %1217
    %1221 = vset.pattern.permute.xlu0 0
    %1222 = vperm.xlu0 %1221, %v1213
    %v1223 = vpop.permute.xlu0 %1222
    %v1226 = vlaneseq
    %v1227 = vshrl.u32 %v1226, 7
    %v1228 = vsub.s32 0, %v1227
    %v1229 = vrot.slane %v1214, %v1228
    %v1231 = vmul.f32 %v1218, %v1229
    %v1232 = vmul.f32 %v1223, %v1229
    %v1233 = vld [vmem:[#allocation20] sm:$0x1]
    %v1235 = vlaneseq
    %v1236 = vshrl.u32 %v1235, 7
    %v1237 = vsub.s32 0, %v1236
    %v1238 = vrot.slane %v1233, %v1237
    %v1240 = vadd.f32 %v1231, %v1238
    %v1241 = vadd.f32 %v1232, %v1238
    %vm1242 = vcmp.eq.s32.totalorder %v488, 0
    %v1243 = vand.u32 2147483647, %v1240
    %vm1244 = vcmp.le.f32.partialorder %v1243, 0.7853982
    %vm1245 = vcmp.lt.s32.totalorder %v1240, 0
    %v1246 = vand.u32 %v1240, 2139095040
    %v1247 = vshrl.u32 %v1246, 23
    %v1248 = vsub.s32 %v1247, 127
    %v1249 = vand.u32 2147483647, %v1240
    %v1250 = vand.u32 %v1249, 8388607
    %v1251 = vor.u32 %v1250, 8388608
    %v1252 = vsub.s32 0, %v1251
    %v1253 = vadd.s32 %v1248, 1
    %vm1254 = vcmp.gt.s32.totalorder %v1253, 0
    %v1255 = vsel %vm1254, %v1253, 0
    %v1256 = vshrl.u32 %v1255, 5
    %v1257 = vand.u32 %v1255, 31
    %v1258 = vsub.s32 32, %v1257
    %v1259 = vshrl.u32 683565275, %v1258
    %v1260 = vshll.u32 683565275, %v1257
    %v1261 = vshrl.u32 2475754826, %v1258
    %v1262 = vor.u32 %v1260, %v1261
    %v1263 = vshll.u32 2475754826, %v1257
    %v1264 = vshrl.u32 2131351028, %v1258
    %v1265 = vor.u32 %v1263, %v1264
    %v1266 = vshll.u32 2131351028, %v1257
    %v1267 = vshrl.u32 2102212464, %v1258
    %v1268 = vor.u32 %v1266, %v1267
    %v1269 = vshll.u32 2102212464, %v1257
    %v1270 = vshrl.u32 920167782, %v1258
    %v1271 = vor.u32 %v1269, %v1270
    %v1272 = vshll.u32 920167782, %v1257
    %v1273 = vshrl.u32 1326507024, %v1258
    %v1274 = vor.u32 %v1272, %v1273
    %vm1275 = vcmp.lt.s32.totalorder %v1256, 1
    %vm1276 = vcmp.lt.s32.totalorder %v1256, 2
    %vm1277 = vcmp.lt.s32.totalorder %v1256, 3
    %vm1278 = vcmp.lt.s32.totalorder %v1256, 4
    %v1279 = vsel %vm1275, %v1259, %v1262
    %v1280 = vsel %vm1278, %v1268, 2102212464
    %v1281 = vsel %vm1277, %v1265, %v1280
    %v1282 = vsel %vm1276, %v1279, %v1281
    %v1283 = vsel %vm1275, %v1262, %v1265
    %v1284 = vsel %vm1278, %v1271, 920167782
    %v1285 = vsel %vm1277, %v1268, %v1284
    %v1286 = vsel %vm1276, %v1283, %v1285
    %v1287 = vsel %vm1275, %v1265, %v1268
    %v1288 = vsel %vm1278, %v1274, 1326507024
    %v1289 = vsel %vm1277, %v1271, %v1288
    %v1290 = vsel %vm1276, %v1287, %v1289
    %v1291 = vshll.u32 %v1251, 8
    %v1292 = vmul.u32.u64.compose %v1291, %v1290
    %v1293 = vextract.low.u32 %v1292
    %v1294 = vextract.high.u32 %v1292
    %v1295 = vmul.u32.u64.compose %v1291, %v1286
    %v1296 = vextract.low.u32 %v1295
    %v1297 = vextract.high.u32 %v1295
    %v1298 = vmul.u32 %v1291, %v1282
    %v1299 = vadd.s32 %v1294, %v1296
    %vm1300 = vc.u32 %v1294, %v1296
    %v1301 = vadd.s32 %v1297, 1
    %v1302 = vsel %vm1300, %v1301, %v1297
    %v1303 = vadd.s32 %v1298, %v1302
    %v1304 = vadd.s32 %v1303, 536870912
    %v1305 = vshrl.u32 %v1304, 30
    %v1306 = vshll.u32 %v1305, 30
    %v1307 = vsub.s32 %v1303, %v1306
    %vm1308 = vcmp.lt.s32.totalorder %v1307, 0
    %v1309 = vsub.s32 0, %v1307
    %v1310 = vsel %vm1308, %v1309, %v1307
    %v1311 = vclz %v1310
    %v1312 = vsub.s32 %v1311, 2
    %vm1313 = vcmp.gt.s32.totalorder 0, %v1312
    %v1314 = vsel %vm1313, 0, %v1312
    %v1315 = vsub.s32 32, %v1314
    %v1316 = vshll.u32 %v1307, %v1314
    %v1317 = vshrl.u32 %v1299, %v1315
    %v1318 = vor.u32 %v1316, %v1317
    %v1319 = vsub.s32 4294967266, %v1314
    %v1320 = vadd.s32 %v1319, 127
    %v1321 = vshll.u32 %v1320, 23
    %v1322 = vor.u32 4788187, %v1321
    %v1323 = vand.u32 2147483647, %v1322
    %v1325 = vcvt.s32.f32 %v1318
    %v1326 = vmul.f32 %v1325, %v1323
    %v1327 = vxor.u32 %v1326, 2147483648
    %v1328 = vsel %vm1245, %v1327, %v1326
    %v1329 = vsub.s32 4, %v1305
    %v1330 = vsel %vm1245, %v1329, %v1305
    %v1331 = vsel %vm1244, %v1240, %v1328
    %v1332 = vsel %vm1244, 0, %v1330
    %v1333 = vcosq.f32.pop %v1331
    %v1334 = vsinq.f32.pop %v1331
    %vm1335 = vweird.f32 %v1240
    %v1336 = vadd.s32 %v1332, 3
    %v1337 = vand.u32 %v1336, 3
    %vm1338 = vcmp.lt.s32.totalorder %v1337, 2
    %vm1339 = vcmp.eq.s32.totalorder %v1337, 0
    %v1340 = vxor.u32 %v1334, 2147483648
    %v1341 = vsel %vm1339, %v1333, %v1340
    %vm1342 = vcmp.eq.s32.totalorder %v1337, 2
    %v1343 = vxor.u32 %v1333, 2147483648
    %v1344 = vsel %vm1342, %v1343, %v1334
    %v1345 = vsel %vm1338, %v1341, %v1344
    %v1346 = vsel %vm1335, nan, %v1345
    %v1347 = vand.u32 2147483647, %v1241
    %vm1348 = vcmp.le.f32.partialorder %v1347, 0.7853982
    %vm1349 = vcmp.lt.s32.totalorder %v1241, 0
    %v1350 = vand.u32 %v1241, 2139095040
    %v1351 = vshrl.u32 %v1350, 23
    %v1352 = vsub.s32 %v1351, 127
    %v1353 = vand.u32 2147483647, %v1241
    %v1354 = vand.u32 %v1353, 8388607
    %v1355 = vor.u32 %v1354, 8388608
    %v1356 = vsub.s32 0, %v1355
    %v1357 = vadd.s32 %v1352, 1
    %vm1358 = vcmp.gt.s32.totalorder %v1357, 0
    %v1359 = vsel %vm1358, %v1357, 0
    %v1360 = vshrl.u32 %v1359, 5
    %v1361 = vand.u32 %v1359, 31
    %v1362 = vsub.s32 32, %v1361
    %v1363 = vshrl.u32 683565275, %v1362
    %v1364 = vshll.u32 683565275, %v1361
    %v1365 = vshrl.u32 2475754826, %v1362
    %v1366 = vor.u32 %v1364, %v1365
    %v1367 = vshll.u32 2475754826, %v1361
    %v1368 = vshrl.u32 2131351028, %v1362
    %v1369 = vor.u32 %v1367, %v1368
    %v1370 = vshll.u32 2131351028, %v1361
    %v1371 = vshrl.u32 2102212464, %v1362
    %v1372 = vor.u32 %v1370, %v1371
    %v1373 = vshll.u32 2102212464, %v1361
    %v1374 = vshrl.u32 920167782, %v1362
    %v1375 = vor.u32 %v1373, %v1374
    %v1376 = vshll.u32 920167782, %v1361
    %v1377 = vshrl.u32 1326507024, %v1362
    %v1378 = vor.u32 %v1376, %v1377
    %vm1379 = vcmp.lt.s32.totalorder %v1360, 1
    %vm1380 = vcmp.lt.s32.totalorder %v1360, 2
    %vm1381 = vcmp.lt.s32.totalorder %v1360, 3
    %vm1382 = vcmp.lt.s32.totalorder %v1360, 4
    %v1383 = vsel %vm1379, %v1363, %v1366
    %v1384 = vsel %vm1382, %v1372, 2102212464
    %v1385 = vsel %vm1381, %v1369, %v1384
    %v1386 = vsel %vm1380, %v1383, %v1385
    %v1387 = vsel %vm1379, %v1366, %v1369
    %v1388 = vsel %vm1382, %v1375, 920167782
    %v1389 = vsel %vm1381, %v1372, %v1388
    %v1390 = vsel %vm1380, %v1387, %v1389
    %v1391 = vsel %vm1379, %v1369, %v1372
    %v1392 = vsel %vm1382, %v1378, 1326507024
    %v1393 = vsel %vm1381, %v1375, %v1392
    %v1394 = vsel %vm1380, %v1391, %v1393
    %v1395 = vshll.u32 %v1355, 8
    %v1396 = vmul.u32.u64.compose %v1395, %v1394
    %v1397 = vextract.low.u32 %v1396
    %v1398 = vextract.high.u32 %v1396
    %v1399 = vmul.u32.u64.compose %v1395, %v1390
    %v1400 = vextract.low.u32 %v1399
    %v1401 = vextract.high.u32 %v1399
    %v1402 = vmul.u32 %v1395, %v1386
    %v1403 = vadd.s32 %v1398, %v1400
    %vm1404 = vc.u32 %v1398, %v1400
    %v1405 = vadd.s32 %v1401, 1
    %v1406 = vsel %vm1404, %v1405, %v1401
    %v1407 = vadd.s32 %v1402, %v1406
    %v1408 = vadd.s32 %v1407, 536870912
    %v1409 = vshrl.u32 %v1408, 30
    %v1410 = vshll.u32 %v1409, 30
    %v1411 = vsub.s32 %v1407, %v1410
    %vm1412 = vcmp.lt.s32.totalorder %v1411, 0
    %v1413 = vsub.s32 0, %v1411
    %v1414 = vsel %vm1412, %v1413, %v1411
    %v1415 = vclz %v1414
    %v1416 = vsub.s32 %v1415, 2
    %vm1417 = vcmp.gt.s32.totalorder 0, %v1416
    %v1418 = vsel %vm1417, 0, %v1416
    %v1419 = vsub.s32 32, %v1418
    %v1420 = vshll.u32 %v1411, %v1418
    %v1421 = vshrl.u32 %v1403, %v1419
    %v1422 = vor.u32 %v1420, %v1421
    %v1423 = vsub.s32 4294967266, %v1418
    %v1424 = vadd.s32 %v1423, 127
    %v1425 = vshll.u32 %v1424, 23
    %v1426 = vor.u32 4788187, %v1425
    %v1427 = vand.u32 2147483647, %v1426
    %v1429 = vcvt.s32.f32 %v1422
    %v1430 = vmul.f32 %v1429, %v1427
    %v1431 = vxor.u32 %v1430, 2147483648
    %v1432 = vsel %vm1349, %v1431, %v1430
    %v1433 = vsub.s32 4, %v1409
    %v1434 = vsel %vm1349, %v1433, %v1409
    %v1435 = vsel %vm1348, %v1241, %v1432
    %v1436 = vsel %vm1348, 0, %v1434
    %v1437 = vcosq.f32.pop %v1435
    %v1438 = vsinq.f32.pop %v1435
    %vm1439 = vweird.f32 %v1241
    %v1440 = vadd.s32 %v1436, 3
    %v1441 = vand.u32 %v1440, 3
    %vm1442 = vcmp.lt.s32.totalorder %v1441, 2
    %vm1443 = vcmp.eq.s32.totalorder %v1441, 0
    %v1444 = vxor.u32 %v1438, 2147483648
    %v1445 = vsel %vm1443, %v1437, %v1444
    %vm1446 = vcmp.eq.s32.totalorder %v1441, 2
    %v1447 = vxor.u32 %v1437, 2147483648
    %v1448 = vsel %vm1446, %v1447, %v1438
    %v1449 = vsel %vm1442, %v1445, %v1448
    %v1450 = vsel %vm1439, nan, %v1449
    %v1451 = vsel %vm1242, %v1240, %v1346
    %v1452 = vsel %vm1242, %v1241, %v1450
    %v1453 = vld [vmem:[#allocation22] sm:$0xff]
    %v1454 = vld [vmem:[#allocation22 + $0x8] sm:$0xff]
    %v1455 = vld [vmem:[#allocation25] sm:$0x1]
    %v1457 = vlaneseq
    %v1458 = vshrl.u32 %v1457, 7
    %v1459 = vsub.s32 0, %v1458
    %v1460 = vrot.slane %v1455, %v1459
    %v1463 = vsel %vm792, %v1451, 0
    %v1466 = vsel %vm792, %v1452, 0
    %1468 = vmatprep.subr.mxu0 0.0
    %1469 = vmatpush1.msra.mxu0 %v1453
    %1470 = vmatprep.subr.mxu0 0.0
    %1471 = vmatpush1.msra.mxu0 %v1454
    %1472 = vmatprep.subr.mxu0 0.0
    %1473 = vmatpush1.msra.mxu0 0.0
    %1474 = vmatprep.subr.mxu0 0.0
    %1475 = vmatpush1.msra.mxu0 0.0
    %1476 = vmatprep.subr.mxu0 0.0
    %1477 = vmatpush1.msra.mxu0 0.0
    %1478 = vmatprep.subr.mxu0 0.0
    %1479 = vmatpush1.msra.mxu0 0.0
    %1480 = vmatprep.subr.mxu0 0.0
    %1481 = vmatpush1.msra.mxu0 0.0
    %1482 = vmatprep.subr.mxu0 0.0
    %1483 = vmatpush1.msra.mxu0 0.0
    %1484 = vmatprep.subr.mxu0 0.0
    %1485 = vmatpush1.msra.mxu0 0.0
    %1486 = vmatprep.subr.mxu0 0.0
    %1487 = vmatpush1.msra.mxu0 0.0
    %1488 = vmatprep.subr.mxu0 0.0
    %1489 = vmatpush1.msra.mxu0 0.0
    %1490 = vmatprep.subr.mxu0 0.0
    %1491 = vmatpush1.msra.mxu0 0.0
    %1492 = vmatprep.subr.mxu0 0.0
    %1493 = vmatpush1.msra.mxu0 0.0
    %1494 = vmatprep.subr.mxu0 0.0
    %1495 = vmatpush1.msra.mxu0 0.0
    %1496 = vmatprep.subr.mxu0 0.0
    %1497 = vmatpush1.msra.mxu0 0.0
    %1498 = vmatprep.subr.mxu0 0.0
    %1499 = vmatpush1.msra.mxu0 0.0
    %1500 = vmatprep.subr.mxu0 0.0
    %1501 = vmatpush1.msra.mxu0 0.0
    %1502 = vmatprep.subr.mxu0 0.0
    %1503 = vmatpush1.msra.mxu0 0.0
    %1504 = vmatprep.subr.mxu0 0.0
    %1505 = vmatpush1.msra.mxu0 0.0
    %1506 = vmatprep.subr.mxu0 0.0
    %1507 = vmatpush1.msra.mxu0 0.0
    %1508 = vmatprep.subr.mxu0 0.0
    %1509 = vmatpush1.msra.mxu0 0.0
    %1510 = vmatprep.subr.mxu0 0.0
    %1511 = vmatpush1.msra.mxu0 0.0
    %1512 = vmatprep.subr.mxu0 0.0
    %1513 = vmatpush1.msra.mxu0 0.0
    %1514 = vmatprep.subr.mxu0 0.0
    %1515 = vmatpush1.msra.mxu0 0.0
    %1516 = vmatprep.subr.mxu0 0.0
    %1517 = vmatpush1.msra.mxu0 0.0
    %1518 = vmatprep.subr.mxu0 0.0
    %1519 = vmatpush1.msra.mxu0 0.0
    %1520 = vmatprep.subr.mxu0 0.0
    %1521 = vmatpush1.msra.mxu0 0.0
    %1522 = vmatprep.subr.mxu0 0.0
    %1523 = vmatpush1.msra.mxu0 0.0
    %1524 = vmatprep.subr.mxu0 0.0
    %1525 = vmatpush1.msra.mxu0 0.0
    %1526 = vmatprep.subr.mxu0 0.0
    %1527 = vmatpush1.msra.mxu0 0.0
    %1528 = vmatprep.subr.mxu0 0.0
    %1529 = vmatpush1.msra.mxu0 0.0
    %1530 = vmatprep.subr.mxu0 0.0
    %1531 = vmatpush1.msra.mxu0 0.0
    %1532 = vmatprep.mubr.f32.mxu0 0.0
    %1533 = vmatmul.mubr.f32.gmra.mrb[0].mxu0 %v1463
    %v1534 = vpop.f32.mrb[0].mxu0
    %v1535 = vadd.f32 %v1460, %v1534
    %v1536 = vpop.f32.mrb[0].mxu0
    %1537 = vmatprep.mubr.f32.mxu0 0.0
    %1538 = vmatmul.mubr.f32.gmra.mrb[0].mxu0 %v1466
    %v1539 = vpop.f32.mrb[0].mxu0
    %v1540 = vadd.f32 %v1460, %v1539
    %v1541 = vpop.f32.mrb[0].mxu0
    %1542 = vdwg.mxu0
    %v1543 = vld [vmem:[#allocation23] sm:$0xff]
    %v1544 = vld [vmem:[#allocation23 + $0x8] sm:$0xff]
    %v1545 = vld [vmem:[#allocation23 + $0x10] sm:$0xff]
    %v1546 = vld [vmem:[#allocation23 + $0x18] sm:$0xff]
    %vm1547 = vcmp.ge.s32.totalorder %v488, 64
    %vm1548 = vcmp.lt.s32.totalorder %v488, 96
    %vm1549 = vmand %vm1547, %vm1548
    %v1551 = vsel %vm611, 0.0, 0
    %1553 = vmatprep.subr.mxu0 0.0
    %1554 = vmatpush1.msra.mxu0 %v1543
    %1555 = vmatprep.subr.mxu0 0.0
    %1556 = vmatpush1.msra.mxu0 %v1544
    %1557 = vmatprep.subr.mxu0 0.0
    %1558 = vmatpush1.msra.mxu0 %v1545
    %1559 = vmatprep.subr.mxu0 0.0
    %1560 = vmatpush1.msra.mxu0 %v1546
    %1561 = vmatprep.subr.mxu0 0.0
    %1562 = vmatpush1.msra.mxu0 0.0
    %1563 = vmatprep.subr.mxu0 0.0
    %1564 = vmatpush1.msra.mxu0 0.0
    %1565 = vmatprep.subr.mxu0 0.0
    %1566 = vmatpush1.msra.mxu0 0.0
    %1567 = vmatprep.subr.mxu0 0.0
    %1568 = vmatpush1.msra.mxu0 0.0
    %1569 = vmatprep.subr.mxu0 0.0
    %1570 = vmatpush1.msra.mxu0 0.0
    %1571 = vmatprep.subr.mxu0 0.0
    %1572 = vmatpush1.msra.mxu0 0.0
    %1573 = vmatprep.subr.mxu0 0.0
    %1574 = vmatpush1.msra.mxu0 0.0
    %1575 = vmatprep.subr.mxu0 0.0
    %1576 = vmatpush1.msra.mxu0 0.0
    %1577 = vmatprep.subr.mxu0 0.0
    %1578 = vmatpush1.msra.mxu0 0.0
    %1579 = vmatprep.subr.mxu0 0.0
    %1580 = vmatpush1.msra.mxu0 0.0
    %1581 = vmatprep.subr.mxu0 0.0
    %1582 = vmatpush1.msra.mxu0 0.0
    %1583 = vmatprep.subr.mxu0 0.0
    %1584 = vmatpush1.msra.mxu0 0.0
    %1585 = vmatprep.subr.mxu0 0.0
    %1586 = vmatpush1.msra.mxu0 0.0
    %1587 = vmatprep.subr.mxu0 0.0
    %1588 = vmatpush1.msra.mxu0 0.0
    %1589 = vmatprep.subr.mxu0 0.0
    %1590 = vmatpush1.msra.mxu0 0.0
    %1591 = vmatprep.subr.mxu0 0.0
    %1592 = vmatpush1.msra.mxu0 0.0
    %1593 = vmatprep.subr.mxu0 0.0
    %1594 = vmatpush1.msra.mxu0 0.0
    %1595 = vmatprep.subr.mxu0 0.0
    %1596 = vmatpush1.msra.mxu0 0.0
    %1597 = vmatprep.subr.mxu0 0.0
    %1598 = vmatpush1.msra.mxu0 0.0
    %1599 = vmatprep.subr.mxu0 0.0
    %1600 = vmatpush1.msra.mxu0 0.0
    %1601 = vmatprep.subr.mxu0 0.0
    %1602 = vmatpush1.msra.mxu0 0.0
    %1603 = vmatprep.subr.mxu0 0.0
    %1604 = vmatpush1.msra.mxu0 0.0
    %1605 = vmatprep.subr.mxu0 0.0
    %1606 = vmatpush1.msra.mxu0 0.0
    %1607 = vmatprep.subr.mxu0 0.0
    %1608 = vmatpush1.msra.mxu0 0.0
    %1609 = vmatprep.subr.mxu0 0.0
    %1610 = vmatpush1.msra.mxu0 0.0
    %1611 = vmatprep.subr.mxu0 0.0
    %1612 = vmatpush1.msra.mxu0 0.0
    %1613 = vmatprep.subr.mxu0 0.0
    %1614 = vmatpush1.msra.mxu0 0.0
    %1615 = vmatprep.subr.mxu0 0.0
    %1616 = vmatpush1.msra.mxu0 0.0
    %1617 = vmatprep.mubr.f32.mxu0 0.0
    %1618 = vmatmul.mubr.f32.gmra.mrb[0].mxu0 %v1551
    %v1619 = vpop.f32.mrb[0].mxu0
    %v1620 = vadd.f32 0.0, %v1619
    %v1621 = vpop.f32.mrb[0].mxu0
    %1622 = vdwg.mxu0
    %v1623 = vadd.f32 %v1535, %v1620
    %v1624 = vtanh.pop %v1623
    %v1625 = vxor.u32 %v1623, 2147483648
    %v1626 = vmul.f32 %v1625, 1.442695
    %v1627 = vpow.pop %v1626
    %v1628 = vadd.f32 %v1627, 1.0
    %v1629 = vrcp.pop %v1628
    %v1630 = vmul.f32 1.0, %v1629
    %v1631 = vsel %vm1549, %v1624, %v1630
    %v1632 = vmul.f32 %v1631, 0.0
    %1634 = vrot.lane.b32.xlu0 %v1631, 64
    %v1635 = vpop.permute.xlu0 %1634
    %v1637 = vmul.f32 %v1631, %v1635
    %1639 = vrot.lane.b32.xlu0 %v1637, 32
    %v1640 = vpop.permute.xlu0 %1639
    %v1642 = vadd.f32 %v1632, %v1640
    %v1643 = vtanh.pop %v1642
    %1645 = vrot.lane.b32.xlu0 %v1643, 64
    %v1646 = vpop.permute.xlu0 %1645
    %v1648 = vmul.f32 %v1631, %v1646
    %1650 = vrot.lane.b32.xlu0 %v1648, 32
    %v1651 = vpop.permute.xlu0 %1650
    %v1652 = vsel %vm611, %v1651, 0
    %1654 = vmatprep.subr.mxu0 0.0
    %1655 = vmatpush1.msra.mxu0 %v1543
    %1656 = vmatprep.subr.mxu0 0.0
    %1657 = vmatpush1.msra.mxu0 %v1544
    %1658 = vmatprep.subr.mxu0 0.0
    %1659 = vmatpush1.msra.mxu0 %v1545
    %1660 = vmatprep.subr.mxu0 0.0
    %1661 = vmatpush1.msra.mxu0 %v1546
    %1662 = vmatprep.subr.mxu0 0.0
    %1663 = vmatpush1.msra.mxu0 0.0
    %1664 = vmatprep.subr.mxu0 0.0
    %1665 = vmatpush1.msra.mxu0 0.0
    %1666 = vmatprep.subr.mxu0 0.0
    %1667 = vmatpush1.msra.mxu0 0.0
    %1668 = vmatprep.subr.mxu0 0.0
    %1669 = vmatpush1.msra.mxu0 0.0
    %1670 = vmatprep.subr.mxu0 0.0
    %1671 = vmatpush1.msra.mxu0 0.0
    %1672 = vmatprep.subr.mxu0 0.0
    %1673 = vmatpush1.msra.mxu0 0.0
    %1674 = vmatprep.subr.mxu0 0.0
    %1675 = vmatpush1.msra.mxu0 0.0
    %1676 = vmatprep.subr.mxu0 0.0
    %1677 = vmatpush1.msra.mxu0 0.0
    %1678 = vmatprep.subr.mxu0 0.0
    %1679 = vmatpush1.msra.mxu0 0.0
    %1680 = vmatprep.subr.mxu0 0.0
    %1681 = vmatpush1.msra.mxu0 0.0
    %1682 = vmatprep.subr.mxu0 0.0
    %1683 = vmatpush1.msra.mxu0 0.0
    %1684 = vmatprep.subr.mxu0 0.0
    %1685 = vmatpush1.msra.mxu0 0.0
    %1686 = vmatprep.subr.mxu0 0.0
    %1687 = vmatpush1.msra.mxu0 0.0
    %1688 = vmatprep.subr.mxu0 0.0
    %1689 = vmatpush1.msra.mxu0 0.0
    %1690 = vmatprep.subr.mxu0 0.0
    %1691 = vmatpush1.msra.mxu0 0.0
    %1692 = vmatprep.subr.mxu0 0.0
    %1693 = vmatpush1.msra.mxu0 0.0
    %1694 = vmatprep.subr.mxu0 0.0
    %1695 = vmatpush1.msra.mxu0 0.0
    %1696 = vmatprep.subr.mxu0 0.0
    %1697 = vmatpush1.msra.mxu0 0.0
    %1698 = vmatprep.subr.mxu0 0.0
    %1699 = vmatpush1.msra.mxu0 0.0
    %1700 = vmatprep.subr.mxu0 0.0
    %1701 = vmatpush1.msra.mxu0 0.0
    %1702 = vmatprep.subr.mxu0 0.0
    %1703 = vmatpush1.msra.mxu0 0.0
    %1704 = vmatprep.subr.mxu0 0.0
    %1705 = vmatpush1.msra.mxu0 0.0
    %1706 = vmatprep.subr.mxu0 0.0
    %1707 = vmatpush1.msra.mxu0 0.0
    %1708 = vmatprep.subr.mxu0 0.0
    %1709 = vmatpush1.msra.mxu0 0.0
    %1710 = vmatprep.subr.mxu0 0.0
    %1711 = vmatpush1.msra.mxu0 0.0
    %1712 = vmatprep.subr.mxu0 0.0
    %1713 = vmatpush1.msra.mxu0 0.0
    %1714 = vmatprep.subr.mxu0 0.0
    %1715 = vmatpush1.msra.mxu0 0.0
    %1716 = vmatprep.subr.mxu0 0.0
    %1717 = vmatpush1.msra.mxu0 0.0
    %1718 = vmatprep.mubr.f32.mxu0 0.0
    %1719 = vmatmul.mubr.f32.gmra.mrb[0].mxu0 %v1652
    %v1720 = vpop.f32.mrb[0].mxu0
    %v1721 = vadd.f32 0.0, %v1720
    %v1722 = vpop.f32.mrb[0].mxu0
    %1723 = vdwg.mxu0
    %v1725 = vrot.slane %v1721, 6
    %v1727 = vadd.f32 %v1535, %v1725
    %v1728 = vtanh.pop %v1727
    %v1729 = vxor.u32 %v1727, 2147483648
    %v1730 = vmul.f32 %v1729, 1.442695
    %v1731 = vpow.pop %v1730
    %v1732 = vadd.f32 %v1731, 1.0
    %v1733 = vrcp.pop %v1732
    %v1734 = vmul.f32 1.0, %v1733
    %v1735 = vsel %vm1549, %v1728, %v1734
    %v1737 = vrot.slane %v1642, 6
    %v1739 = vmul.f32 %v1735, %v1737
    %1741 = vrot.lane.b32.xlu0 %v1735, 64
    %v1742 = vpop.permute.xlu0 %1741
    %v1744 = vmul.f32 %v1735, %v1742
    %1746 = vrot.lane.b32.xlu0 %v1744, 32
    %v1747 = vpop.permute.xlu0 %1746
    %v1749 = vadd.f32 %v1739, %v1747
    %v1750 = vtanh.pop %v1749
    %1752 = vrot.lane.b32.xlu0 %v1750, 64
    %v1753 = vpop.permute.xlu0 %1752
    %v1755 = vmul.f32 %v1735, %v1753
    %v1757 = vrot.slane %v1755, 2
    %1758 = vrot.lane.b32.xlu0 %v1757, 32
    %v1759 = vpop.permute.xlu0 %1758
    %v1760 = vsel %vm611, %v1759, 0
    %1762 = vmatprep.subr.mxu0 0.0
    %1763 = vmatpush1.msra.mxu0 %v1543
    %1764 = vmatprep.subr.mxu0 0.0
    %1765 = vmatpush1.msra.mxu0 %v1544
    %1766 = vmatprep.subr.mxu0 0.0
    %1767 = vmatpush1.msra.mxu0 %v1545
    %1768 = vmatprep.subr.mxu0 0.0
    %1769 = vmatpush1.msra.mxu0 %v1546
    %1770 = vmatprep.subr.mxu0 0.0
    %1771 = vmatpush1.msra.mxu0 0.0
    %1772 = vmatprep.subr.mxu0 0.0
    %1773 = vmatpush1.msra.mxu0 0.0
    %1774 = vmatprep.subr.mxu0 0.0
    %1775 = vmatpush1.msra.mxu0 0.0
    %1776 = vmatprep.subr.mxu0 0.0
    %1777 = vmatpush1.msra.mxu0 0.0
    %1778 = vmatprep.subr.mxu0 0.0
    %1779 = vmatpush1.msra.mxu0 0.0
    %1780 = vmatprep.subr.mxu0 0.0
    %1781 = vmatpush1.msra.mxu0 0.0
    %1782 = vmatprep.subr.mxu0 0.0
    %1783 = vmatpush1.msra.mxu0 0.0
    %1784 = vmatprep.subr.mxu0 0.0
    %1785 = vmatpush1.msra.mxu0 0.0
    %1786 = vmatprep.subr.mxu0 0.0
    %1787 = vmatpush1.msra.mxu0 0.0
    %1788 = vmatprep.subr.mxu0 0.0
    %1789 = vmatpush1.msra.mxu0 0.0
    %1790 = vmatprep.subr.mxu0 0.0
    %1791 = vmatpush1.msra.mxu0 0.0
    %1792 = vmatprep.subr.mxu0 0.0
    %1793 = vmatpush1.msra.mxu0 0.0
    %1794 = vmatprep.subr.mxu0 0.0
    %1795 = vmatpush1.msra.mxu0 0.0
    %1796 = vmatprep.subr.mxu0 0.0
    %1797 = vmatpush1.msra.mxu0 0.0
    %1798 = vmatprep.subr.mxu0 0.0
    %1799 = vmatpush1.msra.mxu0 0.0
    %1800 = vmatprep.subr.mxu0 0.0
    %1801 = vmatpush1.msra.mxu0 0.0
    %1802 = vmatprep.subr.mxu0 0.0
    %1803 = vmatpush1.msra.mxu0 0.0
    %1804 = vmatprep.subr.mxu0 0.0
    %1805 = vmatpush1.msra.mxu0 0.0
    %1806 = vmatprep.subr.mxu0 0.0
    %1807 = vmatpush1.msra.mxu0 0.0
    %1808 = vmatprep.subr.mxu0 0.0
    %1809 = vmatpush1.msra.mxu0 0.0
    %1810 = vmatprep.subr.mxu0 0.0
    %1811 = vmatpush1.msra.mxu0 0.0
    %1812 = vmatprep.subr.mxu0 0.0
    %1813 = vmatpush1.msra.mxu0 0.0
    %1814 = vmatprep.subr.mxu0 0.0
    %1815 = vmatpush1.msra.mxu0 0.0
    %1816 = vmatprep.subr.mxu0 0.0
    %1817 = vmatpush1.msra.mxu0 0.0
    %1818 = vmatprep.subr.mxu0 0.0
    %1819 = vmatpush1.msra.mxu0 0.0
    %1820 = vmatprep.subr.mxu0 0.0
    %1821 = vmatpush1.msra.mxu0 0.0
    %1822 = vmatprep.subr.mxu0 0.0
    %1823 = vmatpush1.msra.mxu0 0.0
    %1824 = vmatprep.subr.mxu0 0.0
    %1825 = vmatpush1.msra.mxu0 0.0
    %1826 = vmatprep.mubr.f32.mxu0 0.0
    %1827 = vmatmul.mubr.f32.gmra.mrb[0].mxu0 %v1760
    %v1828 = vpop.f32.mrb[0].mxu0
    %v1829 = vadd.f32 0.0, %v1828
    %v1830 = vpop.f32.mrb[0].mxu0
    %1831 = vdwg.mxu0
    %v1833 = vrot.slane %v1829, 4
    %v1835 = vadd.f32 %v1535, %v1833
    %v1836 = vtanh.pop %v1835
    %v1837 = vxor.u32 %v1835, 2147483648
    %v1838 = vmul.f32 %v1837, 1.442695
    %v1839 = vpow.pop %v1838
    %v1840 = vadd.f32 %v1839, 1.0
    %v1841 = vrcp.pop %v1840
    %v1842 = vmul.f32 1.0, %v1841
    %v1843 = vsel %vm1549, %v1836, %v1842
    %v1845 = vrot.slane %v1749, 6
    %v1847 = vmul.f32 %v1843, %v1845
    %1849 = vrot.lane.b32.xlu0 %v1843, 64
    %v1850 = vpop.permute.xlu0 %1849
    %v1852 = vmul.f32 %v1843, %v1850
    %1854 = vrot.lane.b32.xlu0 %v1852, 32
    %v1855 = vpop.permute.xlu0 %1854
    %v1857 = vadd.f32 %v1847, %v1855
    %v1858 = vtanh.pop %v1857
    %1860 = vrot.lane.b32.xlu0 %v1858, 64
    %v1861 = vpop.permute.xlu0 %1860
    %v1863 = vmul.f32 %v1843, %v1861
    %v1865 = vrot.slane %v1863, 4
    %1866 = vrot.lane.b32.xlu0 %v1865, 32
    %v1867 = vpop.permute.xlu0 %1866
    %v1868 = vsel %vm611, %v1867, 0
    %1870 = vmatprep.subr.mxu0 0.0
    %1871 = vmatpush1.msra.mxu0 %v1543
    %1872 = vmatprep.subr.mxu0 0.0
    %1873 = vmatpush1.msra.mxu0 %v1544
    %1874 = vmatprep.subr.mxu0 0.0
    %1875 = vmatpush1.msra.mxu0 %v1545
    %1876 = vmatprep.subr.mxu0 0.0
    %1877 = vmatpush1.msra.mxu0 %v1546
    %1878 = vmatprep.subr.mxu0 0.0
    %1879 = vmatpush1.msra.mxu0 0.0
    %1880 = vmatprep.subr.mxu0 0.0
    %1881 = vmatpush1.msra.mxu0 0.0
    %1882 = vmatprep.subr.mxu0 0.0
    %1883 = vmatpush1.msra.mxu0 0.0
    %1884 = vmatprep.subr.mxu0 0.0
    %1885 = vmatpush1.msra.mxu0 0.0
    %1886 = vmatprep.subr.mxu0 0.0
    %1887 = vmatpush1.msra.mxu0 0.0
    %1888 = vmatprep.subr.mxu0 0.0
    %1889 = vmatpush1.msra.mxu0 0.0
    %1890 = vmatprep.subr.mxu0 0.0
    %1891 = vmatpush1.msra.mxu0 0.0
    %1892 = vmatprep.subr.mxu0 0.0
    %1893 = vmatpush1.msra.mxu0 0.0
    %1894 = vmatprep.subr.mxu0 0.0
    %1895 = vmatpush1.msra.mxu0 0.0
    %1896 = vmatprep.subr.mxu0 0.0
    %1897 = vmatpush1.msra.mxu0 0.0
    %1898 = vmatprep.subr.mxu0 0.0
    %1899 = vmatpush1.msra.mxu0 0.0
    %1900 = vmatprep.subr.mxu0 0.0
    %1901 = vmatpush1.msra.mxu0 0.0
    %1902 = vmatprep.subr.mxu0 0.0
    %1903 = vmatpush1.msra.mxu0 0.0
    %1904 = vmatprep.subr.mxu0 0.0
    %1905 = vmatpush1.msra.mxu0 0.0
    %1906 = vmatprep.subr.mxu0 0.0
    %1907 = vmatpush1.msra.mxu0 0.0
    %1908 = vmatprep.subr.mxu0 0.0
    %1909 = vmatpush1.msra.mxu0 0.0
    %1910 = vmatprep.subr.mxu0 0.0
    %1911 = vmatpush1.msra.mxu0 0.0
    %1912 = vmatprep.subr.mxu0 0.0
    %1913 = vmatpush1.msra.mxu0 0.0
    %1914 = vmatprep.subr.mxu0 0.0
    %1915 = vmatpush1.msra.mxu0 0.0
    %1916 = vmatprep.subr.mxu0 0.0
    %1917 = vmatpush1.msra.mxu0 0.0
    %1918 = vmatprep.subr.mxu0 0.0
    %1919 = vmatpush1.msra.mxu0 0.0
    %1920 = vmatprep.subr.mxu0 0.0
    %1921 = vmatpush1.msra.mxu0 0.0
    %1922 = vmatprep.subr.mxu0 0.0
    %1923 = vmatpush1.msra.mxu0 0.0
    %1924 = vmatprep.subr.mxu0 0.0
    %1925 = vmatpush1.msra.mxu0 0.0
    %1926 = vmatprep.subr.mxu0 0.0
    %1927 = vmatpush1.msra.mxu0 0.0
    %1928 = vmatprep.subr.mxu0 0.0
    %1929 = vmatpush1.msra.mxu0 0.0
    %1930 = vmatprep.subr.mxu0 0.0
    %1931 = vmatpush1.msra.mxu0 0.0
    %1932 = vmatprep.subr.mxu0 0.0
    %1933 = vmatpush1.msra.mxu0 0.0
    %1934 = vmatprep.mubr.f32.mxu0 0.0
    %1935 = vmatmul.mubr.f32.gmra.mrb[0].mxu0 %v1868
    %v1936 = vpop.f32.mrb[0].mxu0
    %v1937 = vadd.f32 0.0, %v1936
    %v1938 = vpop.f32.mrb[0].mxu0
    %1939 = vdwg.mxu0
    %v1941 = vrot.slane %v1937, 2
    %v1943 = vadd.f32 %v1535, %v1941
    %v1944 = vtanh.pop %v1943
    %v1945 = vxor.u32 %v1943, 2147483648
    %v1946 = vmul.f32 %v1945, 1.442695
    %v1947 = vpow.pop %v1946
    %v1948 = vadd.f32 %v1947, 1.0
    %v1949 = vrcp.pop %v1948
    %v1950 = vmul.f32 1.0, %v1949
    %v1951 = vsel %vm1549, %v1944, %v1950
    %v1953 = vrot.slane %v1857, 6
    %v1955 = vmul.f32 %v1951, %v1953
    %1957 = vrot.lane.b32.xlu0 %v1951, 64
    %v1958 = vpop.permute.xlu0 %1957
    %v1960 = vmul.f32 %v1951, %v1958
    %1962 = vrot.lane.b32.xlu0 %v1960, 32
    %v1963 = vpop.permute.xlu0 %1962
    %v1965 = vadd.f32 %v1955, %v1963
    %v1966 = vtanh.pop %v1965
    %1968 = vrot.lane.b32.xlu0 %v1966, 64
    %v1969 = vpop.permute.xlu0 %1968
    %v1971 = vmul.f32 %v1951, %v1969
    %v1973 = vrot.slane %v1971, 6
    %1974 = vrot.lane.b32.xlu0 %v1973, 32
    %v1975 = vpop.permute.xlu0 %1974
    %v1976 = vsel %vm611, %v1975, 0
    %1978 = vmatprep.subr.mxu0 0.0
    %1979 = vmatpush1.msra.mxu0 %v1543
    %1980 = vmatprep.subr.mxu0 0.0
    %1981 = vmatpush1.msra.mxu0 %v1544
    %1982 = vmatprep.subr.mxu0 0.0
    %1983 = vmatpush1.msra.mxu0 %v1545
    %1984 = vmatprep.subr.mxu0 0.0
    %1985 = vmatpush1.msra.mxu0 %v1546
    %1986 = vmatprep.subr.mxu0 0.0
    %1987 = vmatpush1.msra.mxu0 0.0
    %1988 = vmatprep.subr.mxu0 0.0
    %1989 = vmatpush1.msra.mxu0 0.0
    %1990 = vmatprep.subr.mxu0 0.0
    %1991 = vmatpush1.msra.mxu0 0.0
    %1992 = vmatprep.subr.mxu0 0.0
    %1993 = vmatpush1.msra.mxu0 0.0
    %1994 = vmatprep.subr.mxu0 0.0
    %1995 = vmatpush1.msra.mxu0 0.0
    %1996 = vmatprep.subr.mxu0 0.0
    %1997 = vmatpush1.msra.mxu0 0.0
    %1998 = vmatprep.subr.mxu0 0.0
    %1999 = vmatpush1.msra.mxu0 0.0
    %2000 = vmatprep.subr.mxu0 0.0
    %2001 = vmatpush1.msra.mxu0 0.0
    %2002 = vmatprep.subr.mxu0 0.0
    %2003 = vmatpush1.msra.mxu0 0.0
    %2004 = vmatprep.subr.mxu0 0.0
    %2005 = vmatpush1.msra.mxu0 0.0
    %2006 = vmatprep.subr.mxu0 0.0
    %2007 = vmatpush1.msra.mxu0 0.0
    %2008 = vmatprep.subr.mxu0 0.0
    %2009 = vmatpush1.msra.mxu0 0.0
    %2010 = vmatprep.subr.mxu0 0.0
    %2011 = vmatpush1.msra.mxu0 0.0
    %2012 = vmatprep.subr.mxu0 0.0
    %2013 = vmatpush1.msra.mxu0 0.0
    %2014 = vmatprep.subr.mxu0 0.0
    %2015 = vmatpush1.msra.mxu0 0.0
    %2016 = vmatprep.subr.mxu0 0.0
    %2017 = vmatpush1.msra.mxu0 0.0
    %2018 = vmatprep.subr.mxu0 0.0
    %2019 = vmatpush1.msra.mxu0 0.0
    %2020 = vmatprep.subr.mxu0 0.0
    %2021 = vmatpush1.msra.mxu0 0.0
    %2022 = vmatprep.subr.mxu0 0.0
    %2023 = vmatpush1.msra.mxu0 0.0
    %2024 = vmatprep.subr.mxu0 0.0
    %2025 = vmatpush1.msra.mxu0 0.0
    %2026 = vmatprep.subr.mxu0 0.0
    %2027 = vmatpush1.msra.mxu0 0.0
    %2028 = vmatprep.subr.mxu0 0.0
    %2029 = vmatpush1.msra.mxu0 0.0
    %2030 = vmatprep.subr.mxu0 0.0
    %2031 = vmatpush1.msra.mxu0 0.0
    %2032 = vmatprep.subr.mxu0 0.0
    %2033 = vmatpush1.msra.mxu0 0.0
    %2034 = vmatprep.subr.mxu0 0.0
    %2035 = vmatpush1.msra.mxu0 0.0
    %2036 = vmatprep.subr.mxu0 0.0
    %2037 = vmatpush1.msra.mxu0 0.0
    %2038 = vmatprep.subr.mxu0 0.0
    %2039 = vmatpush1.msra.mxu0 0.0
    %2040 = vmatprep.subr.mxu0 0.0
    %2041 = vmatpush1.msra.mxu0 0.0
    %2042 = vmatprep.mubr.f32.mxu0 0.0
    %2043 = vmatmul.mubr.f32.gmra.mrb[0].mxu0 %v1976
    %v2044 = vpop.f32.mrb[0].mxu0
    %v2045 = vadd.f32 0.0, %v2044
    %v2046 = vpop.f32.mrb[0].mxu0
    %2047 = vdwg.mxu0
    %v2048 = vadd.f32 %v1540, %v2045
    %v2049 = vtanh.pop %v2048
    %v2050 = vxor.u32 %v2048, 2147483648
    %v2051 = vmul.f32 %v2050, 1.442695
    %v2052 = vpow.pop %v2051
    %v2053 = vadd.f32 %v2052, 1.0
    %v2054 = vrcp.pop %v2053
    %v2055 = vmul.f32 1.0, %v2054
    %v2056 = vsel %vm1549, %v2049, %v2055
    %v2058 = vrot.slane %v1965, 6
    %v2060 = vmul.f32 %v2056, %v2058
    %2062 = vrot.lane.b32.xlu0 %v2056, 64
    %v2063 = vpop.permute.xlu0 %2062
    %v2065 = vmul.f32 %v2056, %v2063
    %2067 = vrot.lane.b32.xlu0 %v2065, 32
    %v2068 = vpop.permute.xlu0 %2067
    %v2070 = vadd.f32 %v2060, %v2068
    %v2071 = vtanh.pop %v2070
    %2073 = vrot.lane.b32.xlu0 %v2071, 64
    %v2074 = vpop.permute.xlu0 %2073
    %v2076 = vmul.f32 %v2056, %v2074
    %2078 = vrot.lane.b32.xlu0 %v2076, 32
    %v2079 = vpop.permute.xlu0 %2078
    %v2080 = vsel %vm611, %v2079, 0
    %2082 = vmatprep.subr.mxu0 0.0
    %2083 = vmatpush1.msra.mxu0 %v1543
    %2084 = vmatprep.subr.mxu0 0.0
    %2085 = vmatpush1.msra.mxu0 %v1544
    %2086 = vmatprep.subr.mxu0 0.0
    %2087 = vmatpush1.msra.mxu0 %v1545
    %2088 = vmatprep.subr.mxu0 0.0
    %2089 = vmatpush1.msra.mxu0 %v1546
    %2090 = vmatprep.subr.mxu0 0.0
    %2091 = vmatpush1.msra.mxu0 0.0
    %2092 = vmatprep.subr.mxu0 0.0
    %2093 = vmatpush1.msra.mxu0 0.0
    %2094 = vmatprep.subr.mxu0 0.0
    %2095 = vmatpush1.msra.mxu0 0.0
    %2096 = vmatprep.subr.mxu0 0.0
    %2097 = vmatpush1.msra.mxu0 0.0
    %2098 = vmatprep.subr.mxu0 0.0
    %2099 = vmatpush1.msra.mxu0 0.0
    %2100 = vmatprep.subr.mxu0 0.0
    %2101 = vmatpush1.msra.mxu0 0.0
    %2102 = vmatprep.subr.mxu0 0.0
    %2103 = vmatpush1.msra.mxu0 0.0
    %2104 = vmatprep.subr.mxu0 0.0
    %2105 = vmatpush1.msra.mxu0 0.0
    %2106 = vmatprep.subr.mxu0 0.0
    %2107 = vmatpush1.msra.mxu0 0.0
    %2108 = vmatprep.subr.mxu0 0.0
    %2109 = vmatpush1.msra.mxu0 0.0
    %2110 = vmatprep.subr.mxu0 0.0
    %2111 = vmatpush1.msra.mxu0 0.0
    %2112 = vmatprep.subr.mxu0 0.0
    %2113 = vmatpush1.msra.mxu0 0.0
    %2114 = vmatprep.subr.mxu0 0.0
    %2115 = vmatpush1.msra.mxu0 0.0
    %2116 = vmatprep.subr.mxu0 0.0
    %2117 = vmatpush1.msra.mxu0 0.0
    %2118 = vmatprep.subr.mxu0 0.0
    %2119 = vmatpush1.msra.mxu0 0.0
    %2120 = vmatprep.subr.mxu0 0.0
    %2121 = vmatpush1.msra.mxu0 0.0
    %2122 = vmatprep.subr.mxu0 0.0
    %2123 = vmatpush1.msra.mxu0 0.0
    %2124 = vmatprep.subr.mxu0 0.0
    %2125 = vmatpush1.msra.mxu0 0.0
    %2126 = vmatprep.subr.mxu0 0.0
    %2127 = vmatpush1.msra.mxu0 0.0
    %2128 = vmatprep.subr.mxu0 0.0
    %2129 = vmatpush1.msra.mxu0 0.0
    %2130 = vmatprep.subr.mxu0 0.0
    %2131 = vmatpush1.msra.mxu0 0.0
    %2132 = vmatprep.subr.mxu0 0.0
    %2133 = vmatpush1.msra.mxu0 0.0
    %2134 = vmatprep.subr.mxu0 0.0
    %2135 = vmatpush1.msra.mxu0 0.0
    %2136 = vmatprep.subr.mxu0 0.0
    %2137 = vmatpush1.msra.mxu0 0.0
    %2138 = vmatprep.subr.mxu0 0.0
    %2139 = vmatpush1.msra.mxu0 0.0
    %2140 = vmatprep.subr.mxu0 0.0
    %2141 = vmatpush1.msra.mxu0 0.0
    %2142 = vmatprep.subr.mxu0 0.0
    %2143 = vmatpush1.msra.mxu0 0.0
    %2144 = vmatprep.subr.mxu0 0.0
    %2145 = vmatpush1.msra.mxu0 0.0
    %2146 = vmatprep.mubr.f32.mxu0 0.0
    %2147 = vmatmul.mubr.f32.gmra.mrb[0].mxu0 %v2080
    %v2148 = vpop.f32.mrb[0].mxu0
    %v2149 = vadd.f32 0.0, %v2148
    %v2150 = vpop.f32.mrb[0].mxu0
    %2151 = vdwg.mxu0
    %v2153 = vrot.slane %v2149, 6
    %v2155 = vadd.f32 %v1540, %v2153
    %v2156 = vtanh.pop %v2155
    %v2157 = vxor.u32 %v2155, 2147483648
    %v2158 = vmul.f32 %v2157, 1.442695
    %v2159 = vpow.pop %v2158
    %v2160 = vadd.f32 %v2159, 1.0
    %v2161 = vrcp.pop %v2160
    %v2162 = vmul.f32 1.0, %v2161
    %v2163 = vsel %vm1549, %v2156, %v2162
    %v2165 = vrot.slane %v2070, 6
    %v2167 = vmul.f32 %v2163, %v2165
    %2169 = vrot.lane.b32.xlu0 %v2163, 64
    %v2170 = vpop.permute.xlu0 %2169
    %v2172 = vmul.f32 %v2163, %v2170
    %2174 = vrot.lane.b32.xlu0 %v2172, 32
    %v2175 = vpop.permute.xlu0 %2174
    %v2177 = vadd.f32 %v2167, %v2175
    %v2178 = vtanh.pop %v2177
    %2180 = vrot.lane.b32.xlu0 %v2178, 64
    %v2181 = vpop.permute.xlu0 %2180
    %v2183 = vmul.f32 %v2163, %v2181
    %v2185 = vrot.slane %v2183, 2
    %2186 = vrot.lane.b32.xlu0 %v2185, 32
    %v2187 = vpop.permute.xlu0 %2186
    %v2188 = vsel %vm611, %v2187, 0
    %2190 = vmatprep.subr.mxu0 0.0
    %2191 = vmatpush1.msra.mxu0 %v1543
    %2192 = vmatprep.subr.mxu0 0.0
    %2193 = vmatpush1.msra.mxu0 %v1544
    %2194 = vmatprep.subr.mxu0 0.0
    %2195 = vmatpush1.msra.mxu0 %v1545
    %2196 = vmatprep.subr.mxu0 0.0
    %2197 = vmatpush1.msra.mxu0 %v1546
    %2198 = vmatprep.subr.mxu0 0.0
    %2199 = vmatpush1.msra.mxu0 0.0
    %2200 = vmatprep.subr.mxu0 0.0
    %2201 = vmatpush1.msra.mxu0 0.0
    %2202 = vmatprep.subr.mxu0 0.0
    %2203 = vmatpush1.msra.mxu0 0.0
    %2204 = vmatprep.subr.mxu0 0.0
    %2205 = vmatpush1.msra.mxu0 0.0
    %2206 = vmatprep.subr.mxu0 0.0
    %2207 = vmatpush1.msra.mxu0 0.0
    %2208 = vmatprep.subr.mxu0 0.0
    %2209 = vmatpush1.msra.mxu0 0.0
    %2210 = vmatprep.subr.mxu0 0.0
    %2211 = vmatpush1.msra.mxu0 0.0
    %2212 = vmatprep.subr.mxu0 0.0
    %2213 = vmatpush1.msra.mxu0 0.0
    %2214 = vmatprep.subr.mxu0 0.0
    %2215 = vmatpush1.msra.mxu0 0.0
    %2216 = vmatprep.subr.mxu0 0.0
    %2217 = vmatpush1.msra.mxu0 0.0
    %2218 = vmatprep.subr.mxu0 0.0
    %2219 = vmatpush1.msra.mxu0 0.0
    %2220 = vmatprep.subr.mxu0 0.0
    %2221 = vmatpush1.msra.mxu0 0.0
    %2222 = vmatprep.subr.mxu0 0.0
    %2223 = vmatpush1.msra.mxu0 0.0
    %2224 = vmatprep.subr.mxu0 0.0
    %2225 = vmatpush1.msra.mxu0 0.0
    %2226 = vmatprep.subr.mxu0 0.0
    %2227 = vmatpush1.msra.mxu0 0.0
    %2228 = vmatprep.subr.mxu0 0.0
    %2229 = vmatpush1.msra.mxu0 0.0
    %2230 = vmatprep.subr.mxu0 0.0
    %2231 = vmatpush1.msra.mxu0 0.0
    %2232 = vmatprep.subr.mxu0 0.0
    %2233 = vmatpush1.msra.mxu0 0.0
    %2234 = vmatprep.subr.mxu0 0.0
    %2235 = vmatpush1.msra.mxu0 0.0
    %2236 = vmatprep.subr.mxu0 0.0
    %2237 = vmatpush1.msra.mxu0 0.0
    %2238 = vmatprep.subr.mxu0 0.0
    %2239 = vmatpush1.msra.mxu0 0.0
    %2240 = vmatprep.subr.mxu0 0.0
    %2241 = vmatpush1.msra.mxu0 0.0
    %2242 = vmatprep.subr.mxu0 0.0
    %2243 = vmatpush1.msra.mxu0 0.0
    %2244 = vmatprep.subr.mxu0 0.0
    %2245 = vmatpush1.msra.mxu0 0.0
    %2246 = vmatprep.subr.mxu0 0.0
    %2247 = vmatpush1.msra.mxu0 0.0
    %2248 = vmatprep.subr.mxu0 0.0
    %2249 = vmatpush1.msra.mxu0 0.0
    %2250 = vmatprep.subr.mxu0 0.0
    %2251 = vmatpush1.msra.mxu0 0.0
    %2252 = vmatprep.subr.mxu0 0.0
    %2253 = vmatpush1.msra.mxu0 0.0
    %2254 = vmatprep.mubr.f32.mxu0 0.0
    %2255 = vmatmul.mubr.f32.gmra.mrb[0].mxu0 %v2188
    %v2256 = vpop.f32.mrb[0].mxu0
    %v2257 = vadd.f32 0.0, %v2256
    %v2258 = vpop.f32.mrb[0].mxu0
    %2259 = vdwg.mxu0
    %v2261 = vrot.slane %v2257, 4
    %v2263 = vadd.f32 %v1540, %v2261
    %v2264 = vtanh.pop %v2263
    %v2265 = vxor.u32 %v2263, 2147483648
    %v2266 = vmul.f32 %v2265, 1.442695
    %v2267 = vpow.pop %v2266
    %v2268 = vadd.f32 %v2267, 1.0
    %v2269 = vrcp.pop %v2268
    %v2270 = vmul.f32 1.0, %v2269
    %v2271 = vsel %vm1549, %v2264, %v2270
    %v2273 = vrot.slane %v2177, 6
    %v2275 = vmul.f32 %v2271, %v2273
    %2277 = vrot.lane.b32.xlu0 %v2271, 64
    %v2278 = vpop.permute.xlu0 %2277
    %v2280 = vmul.f32 %v2271, %v2278
    %2282 = vrot.lane.b32.xlu0 %v2280, 32
    %v2283 = vpop.permute.xlu0 %2282
    %v2285 = vadd.f32 %v2275, %v2283
    %v2286 = vtanh.pop %v2285
    %2288 = vrot.lane.b32.xlu0 %v2286, 64
    %v2289 = vpop.permute.xlu0 %2288
    %v2291 = vmul.f32 %v2271, %v2289
    %v2293 = vrot.slane %v2291, 4
    %2294 = vrot.lane.b32.xlu0 %v2293, 32
    %v2295 = vpop.permute.xlu0 %2294
    %v2296 = vsel %vm611, %v2295, 0
    %2298 = vmatprep.subr.mxu0 0.0
    %2299 = vmatpush1.msra.mxu0 %v1543
    %2300 = vmatprep.subr.mxu0 0.0
    %2301 = vmatpush1.msra.mxu0 %v1544
    %2302 = vmatprep.subr.mxu0 0.0
    %2303 = vmatpush1.msra.mxu0 %v1545
    %2304 = vmatprep.subr.mxu0 0.0
    %2305 = vmatpush1.msra.mxu0 %v1546
    %2306 = vmatprep.subr.mxu0 0.0
    %2307 = vmatpush1.msra.mxu0 0.0
    %2308 = vmatprep.subr.mxu0 0.0
    %2309 = vmatpush1.msra.mxu0 0.0
    %2310 = vmatprep.subr.mxu0 0.0
    %2311 = vmatpush1.msra.mxu0 0.0
    %2312 = vmatprep.subr.mxu0 0.0
    %2313 = vmatpush1.msra.mxu0 0.0
    %2314 = vmatprep.subr.mxu0 0.0
    %2315 = vmatpush1.msra.mxu0 0.0
    %2316 = vmatprep.subr.mxu0 0.0
    %2317 = vmatpush1.msra.mxu0 0.0
    %2318 = vmatprep.subr.mxu0 0.0
    %2319 = vmatpush1.msra.mxu0 0.0
    %2320 = vmatprep.subr.mxu0 0.0
    %2321 = vmatpush1.msra.mxu0 0.0
    %2322 = vmatprep.subr.mxu0 0.0
    %2323 = vmatpush1.msra.mxu0 0.0
    %2324 = vmatprep.subr.mxu0 0.0
    %2325 = vmatpush1.msra.mxu0 0.0
    %2326 = vmatprep.subr.mxu0 0.0
    %2327 = vmatpush1.msra.mxu0 0.0
    %2328 = vmatprep.subr.mxu0 0.0
    %2329 = vmatpush1.msra.mxu0 0.0
    %2330 = vmatprep.subr.mxu0 0.0
    %2331 = vmatpush1.msra.mxu0 0.0
    %2332 = vmatprep.subr.mxu0 0.0
    %2333 = vmatpush1.msra.mxu0 0.0
    %2334 = vmatprep.subr.mxu0 0.0
    %2335 = vmatpush1.msra.mxu0 0.0
    %2336 = vmatprep.subr.mxu0 0.0
    %2337 = vmatpush1.msra.mxu0 0.0
    %2338 = vmatprep.subr.mxu0 0.0
    %2339 = vmatpush1.msra.mxu0 0.0
    %2340 = vmatprep.subr.mxu0 0.0
    %2341 = vmatpush1.msra.mxu0 0.0
    %2342 = vmatprep.subr.mxu0 0.0
    %2343 = vmatpush1.msra.mxu0 0.0
    %2344 = vmatprep.subr.mxu0 0.0
    %2345 = vmatpush1.msra.mxu0 0.0
    %2346 = vmatprep.subr.mxu0 0.0
    %2347 = vmatpush1.msra.mxu0 0.0
    %2348 = vmatprep.subr.mxu0 0.0
    %2349 = vmatpush1.msra.mxu0 0.0
    %2350 = vmatprep.subr.mxu0 0.0
    %2351 = vmatpush1.msra.mxu0 0.0
    %2352 = vmatprep.subr.mxu0 0.0
    %2353 = vmatpush1.msra.mxu0 0.0
    %2354 = vmatprep.subr.mxu0 0.0
    %2355 = vmatpush1.msra.mxu0 0.0
    %2356 = vmatprep.subr.mxu0 0.0
    %2357 = vmatpush1.msra.mxu0 0.0
    %2358 = vmatprep.subr.mxu0 0.0
    %2359 = vmatpush1.msra.mxu0 0.0
    %2360 = vmatprep.subr.mxu0 0.0
    %2361 = vmatpush1.msra.mxu0 0.0
    %2362 = vmatprep.mubr.f32.mxu0 0.0
    %2363 = vmatmul.mubr.f32.gmra.mrb[0].mxu0 %v2296
    %v2364 = vpop.f32.mrb[0].mxu0
    %v2365 = vadd.f32 0.0, %v2364
    %v2366 = vpop.f32.mrb[0].mxu0
    %2367 = vdwg.mxu0
    %v2369 = vrot.slane %v2365, 2
    %v2371 = vadd.f32 %v1540, %v2369
    %v2372 = vtanh.pop %v2371
    %v2373 = vxor.u32 %v2371, 2147483648
    %v2374 = vmul.f32 %v2373, 1.442695
    %v2375 = vpow.pop %v2374
    %v2376 = vadd.f32 %v2375, 1.0
    %v2377 = vrcp.pop %v2376
    %v2378 = vmul.f32 1.0, %v2377
    %v2379 = vsel %vm1549, %v2372, %v2378
    %v2381 = vrot.slane %v2285, 6
    %v2383 = vmul.f32 %v2379, %v2381
    %2385 = vrot.lane.b32.xlu0 %v2379, 64
    %v2386 = vpop.permute.xlu0 %2385
    %v2388 = vmul.f32 %v2379, %v2386
    %2390 = vrot.lane.b32.xlu0 %v2388, 32
    %v2391 = vpop.permute.xlu0 %2390
    %v2393 = vadd.f32 %v2383, %v2391
    %v2394 = vtanh.pop %v2393
    %2396 = vrot.lane.b32.xlu0 %v2394, 64
    %v2397 = vpop.permute.xlu0 %2396
    %v2399 = vmul.f32 %v2379, %v2397
    %v2400 = vld [vmem:[#allocation32] sm:$0xff]
    %v2401 = vld [vmem:[#allocation32 + $0x8] sm:$0xff]
    %v2402 = vld [vmem:[#allocation32 + $0x10] sm:$0xff]
    %v2403 = vld [vmem:[#allocation32 + $0x18] sm:$0xff]
    %v2404 = vld [vmem:[#allocation34] sm:$0x1]
    %v2405 = vld [vmem:[#allocation35] sm:$0xff]
    %v2406 = vld [vmem:[#allocation35 + $0x8] sm:$0xff]
    %v2407 = vld [vmem:[#allocation35 + $0x10] sm:$0xff]
    %v2408 = vld [vmem:[#allocation35 + $0x18] sm:$0xff]
    %v2409 = vld [vmem:[#allocation35 + $0x20] sm:$0xff]
    %v2410 = vld [vmem:[#allocation35 + $0x28] sm:$0xff]
    %v2411 = vld [vmem:[#allocation35 + $0x30] sm:$0xff]
    %v2412 = vld [vmem:[#allocation35 + $0x38] sm:$0xff]
    %v2413 = vld [vmem:[#allocation37] sm:$0x1]
    %v2415 = vlaneseq
    %v2416 = vshrl.u32 %v2415, 7
    %v2417 = vsub.s32 0, %v2416
    %v2418 = vrot.slane %v2404, %v2417
    %v2421 = vrot.slane %v2399, 6
    %2422 = vrot.lane.b32.xlu0 %v2421, 32
    %v2423 = vpop.permute.xlu0 %2422
    %v2424 = vsel %vm611, %v2423, 0
    %2426 = vmatprep.subr.mxu0 0.0
    %2427 = vmatpush1.msra.mxu0 %v2400
    %2428 = vmatprep.subr.mxu0 0.0
    %2429 = vmatpush1.msra.mxu0 %v2401
    %2430 = vmatprep.subr.mxu0 0.0
    %2431 = vmatpush1.msra.mxu0 %v2402
    %2432 = vmatprep.subr.mxu0 0.0
    %2433 = vmatpush1.msra.mxu0 %v2403
    %2434 = vmatprep.subr.mxu0 0.0
    %2435 = vmatpush1.msra.mxu0 0.0
    %2436 = vmatprep.subr.mxu0 0.0
    %2437 = vmatpush1.msra.mxu0 0.0
    %2438 = vmatprep.subr.mxu0 0.0
    %2439 = vmatpush1.msra.mxu0 0.0
    %2440 = vmatprep.subr.mxu0 0.0
    %2441 = vmatpush1.msra.mxu0 0.0
    %2442 = vmatprep.subr.mxu0 0.0
    %2443 = vmatpush1.msra.mxu0 0.0
    %2444 = vmatprep.subr.mxu0 0.0
    %2445 = vmatpush1.msra.mxu0 0.0
    %2446 = vmatprep.subr.mxu0 0.0
    %2447 = vmatpush1.msra.mxu0 0.0
    %2448 = vmatprep.subr.mxu0 0.0
    %2449 = vmatpush1.msra.mxu0 0.0
    %2450 = vmatprep.subr.mxu0 0.0
    %2451 = vmatpush1.msra.mxu0 0.0
    %2452 = vmatprep.subr.mxu0 0.0
    %2453 = vmatpush1.msra.mxu0 0.0
    %2454 = vmatprep.subr.mxu0 0.0
    %2455 = vmatpush1.msra.mxu0 0.0
    %2456 = vmatprep.subr.mxu0 0.0
    %2457 = vmatpush1.msra.mxu0 0.0
    %2458 = vmatprep.subr.mxu0 0.0
    %2459 = vmatpush1.msra.mxu0 0.0
    %2460 = vmatprep.subr.mxu0 0.0
    %2461 = vmatpush1.msra.mxu0 0.0
    %2462 = vmatprep.subr.mxu0 0.0
    %2463 = vmatpush1.msra.mxu0 0.0
    %2464 = vmatprep.subr.mxu0 0.0
    %2465 = vmatpush1.msra.mxu0 0.0
    %2466 = vmatprep.subr.mxu0 0.0
    %2467 = vmatpush1.msra.mxu0 0.0
    %2468 = vmatprep.subr.mxu0 0.0
    %2469 = vmatpush1.msra.mxu0 0.0
    %2470 = vmatprep.subr.mxu0 0.0
    %2471 = vmatpush1.msra.mxu0 0.0
    %2472 = vmatprep.subr.mxu0 0.0
    %2473 = vmatpush1.msra.mxu0 0.0
    %2474 = vmatprep.subr.mxu0 0.0
    %2475 = vmatpush1.msra.mxu0 0.0
    %2476 = vmatprep.subr.mxu0 0.0
    %2477 = vmatpush1.msra.mxu0 0.0
    %2478 = vmatprep.subr.mxu0 0.0
    %2479 = vmatpush1.msra.mxu0 0.0
    %2480 = vmatprep.subr.mxu0 0.0
    %2481 = vmatpush1.msra.mxu0 0.0
    %2482 = vmatprep.subr.mxu0 0.0
    %2483 = vmatpush1.msra.mxu0 0.0
    %2484 = vmatprep.subr.mxu0 0.0
    %2485 = vmatpush1.msra.mxu0 0.0
    %2486 = vmatprep.subr.mxu0 0.0
    %2487 = vmatpush1.msra.mxu0 0.0
    %2488 = vmatprep.subr.mxu0 0.0
    %2489 = vmatpush1.msra.mxu0 0.0
    %2490 = vmatprep.mubr.f32.mxu0 0.0
    %2491 = vmatmul.mubr.f32.gmra.mrb[0].mxu0 %v2424
    %v2492 = vpop.f32.mrb[0].mxu0
    %v2493 = vadd.f32 %v2418, %v2492
    %v2494 = vpop.f32.mrb[0].mxu0
    %2495 = vdwg.mxu0
    %v2496 = vmax.f32 %v2493, 0.0
    %v2498 = vlaneseq
    %v2499 = vshrl.u32 %v2498, 7
    %v2500 = vsub.s32 0, %v2499
    %v2501 = vrot.slane %v2413, %v2500
    %v2504 = vsel %vm509, %v2496, 0
    %2506 = vmatprep.subr.mxu0 0.0
    %2507 = vmatpush1.msra.mxu0 %v2405
    %2508 = vmatprep.subr.mxu0 0.0
    %2509 = vmatpush1.msra.mxu0 %v2406
    %2510 = vmatprep.subr.mxu0 0.0
    %2511 = vmatpush1.msra.mxu0 %v2407
    %2512 = vmatprep.subr.mxu0 0.0
    %2513 = vmatpush1.msra.mxu0 %v2408
    %2514 = vmatprep.subr.mxu0 0.0
    %2515 = vmatpush1.msra.mxu0 %v2409
    %2516 = vmatprep.subr.mxu0 0.0
    %2517 = vmatpush1.msra.mxu0 %v2410
    %2518 = vmatprep.subr.mxu0 0.0
    %2519 = vmatpush1.msra.mxu0 %v2411
    %2520 = vmatprep.subr.mxu0 0.0
    %2521 = vmatpush1.msra.mxu0 %v2412
    %2522 = vmatprep.subr.mxu0 0.0
    %2523 = vmatpush1.msra.mxu0 0.0
    %2524 = vmatprep.subr.mxu0 0.0
    %2525 = vmatpush1.msra.mxu0 0.0
    %2526 = vmatprep.subr.mxu0 0.0
    %2527 = vmatpush1.msra.mxu0 0.0
    %2528 = vmatprep.subr.mxu0 0.0
    %2529 = vmatpush1.msra.mxu0 0.0
    %2530 = vmatprep.subr.mxu0 0.0
    %2531 = vmatpush1.msra.mxu0 0.0
    %2532 = vmatprep.subr.mxu0 0.0
    %2533 = vmatpush1.msra.mxu0 0.0
    %2534 = vmatprep.subr.mxu0 0.0
    %2535 = vmatpush1.msra.mxu0 0.0
    %2536 = vmatprep.subr.mxu0 0.0
    %2537 = vmatpush1.msra.mxu0 0.0
    %2538 = vmatprep.subr.mxu0 0.0
    %2539 = vmatpush1.msra.mxu0 0.0
    %2540 = vmatprep.subr.mxu0 0.0
    %2541 = vmatpush1.msra.mxu0 0.0
    %2542 = vmatprep.subr.mxu0 0.0
    %2543 = vmatpush1.msra.mxu0 0.0
    %2544 = vmatprep.subr.mxu0 0.0
    %2545 = vmatpush1.msra.mxu0 0.0
    %2546 = vmatprep.subr.mxu0 0.0
    %2547 = vmatpush1.msra.mxu0 0.0
    %2548 = vmatprep.subr.mxu0 0.0
    %2549 = vmatpush1.msra.mxu0 0.0
    %2550 = vmatprep.subr.mxu0 0.0
    %2551 = vmatpush1.msra.mxu0 0.0
    %2552 = vmatprep.subr.mxu0 0.0
    %2553 = vmatpush1.msra.mxu0 0.0
    %2554 = vmatprep.subr.mxu0 0.0
    %2555 = vmatpush1.msra.mxu0 0.0
    %2556 = vmatprep.subr.mxu0 0.0
    %2557 = vmatpush1.msra.mxu0 0.0
    %2558 = vmatprep.subr.mxu0 0.0
    %2559 = vmatpush1.msra.mxu0 0.0
    %2560 = vmatprep.subr.mxu0 0.0
    %2561 = vmatpush1.msra.mxu0 0.0
    %2562 = vmatprep.subr.mxu0 0.0
    %2563 = vmatpush1.msra.mxu0 0.0
    %2564 = vmatprep.subr.mxu0 0.0
    %2565 = vmatpush1.msra.mxu0 0.0
    %2566 = vmatprep.subr.mxu0 0.0
    %2567 = vmatpush1.msra.mxu0 0.0
    %2568 = vmatprep.subr.mxu0 0.0
    %2569 = vmatpush1.msra.mxu0 0.0
    %2570 = vmatprep.mubr.f32.mxu0 0.0
    %2571 = vmatmul.mubr.f32.gmra.mrb[0].mxu0 %v2504
    %v2572 = vpop.f32.mrb[0].mxu0
    %v2573 = vadd.f32 %v2501, %v2572
    %v2574 = vpop.f32.mrb[0].mxu0
    %2575 = vdwg.mxu0
    %v2576 = vld [vmem:[#allocation5] sm:$0x3]
    %v2577 = vld [vmem:[#allocation38] sm:$0xff]
    %v2578 = vld [vmem:[#allocation38 + $0x8] sm:$0xff]
    %v2579 = vld [vmem:[#allocation38 + $0x10] sm:$0xff]
    %v2580 = vld [vmem:[#allocation40] sm:$0x1]
    %v2581 = vld [vmem:[%s55] sm:$0xff]
    %v2582 = vld [vmem:[%s55 + $0x8] sm:$0xff]
    %v2583 = vld [vmem:[%s55 + $0x10] sm:$0xff]
    %v2584 = vld [vmem:[%s55 + $0x18] sm:$0xff]
    %v2585 = vld [vmem:[%s55 + $0x20] sm:$0xff]
    %v2586 = vld [vmem:[%s55 + $0x28] sm:$0xff]
    %v2587 = vld [vmem:[%s55 + $0x30] sm:$0xff]
    %v2588 = vld [vmem:[%s55 + $0x38] sm:$0xff]
    %v2589 = vld [vmem:[#allocation41] sm:$0x1]
    %v2591 = vlaneseq
    %v2592 = vshrl.u32 %v2591, 7
    %v2593 = vsub.s32 0, %v2592
    %v2594 = vrot.slane %v2580, %v2593
    %vm2596 = vcmask 195584
    %v2598 = vsel %vm2596, %v2576, 0
    %2600 = vmatprep.subr.mxu0 0.0
    %2601 = vmatpush1.msra.mxu0 %v2577
    %2602 = vmatprep.subr.mxu0 0.0
    %2603 = vmatpush1.msra.mxu0 %v2578
    %2604 = vmatprep.subr.mxu0 0.0
    %2605 = vmatpush1.msra.mxu0 %v2579
    %2606 = vmatprep.subr.mxu0 0.0
    %2607 = vmatpush1.msra.mxu0 0.0
    %2608 = vmatprep.subr.mxu0 0.0
    %2609 = vmatpush1.msra.mxu0 0.0
    %2610 = vmatprep.subr.mxu0 0.0
    %2611 = vmatpush1.msra.mxu0 0.0
    %2612 = vmatprep.subr.mxu0 0.0
    %2613 = vmatpush1.msra.mxu0 0.0
    %2614 = vmatprep.subr.mxu0 0.0
    %2615 = vmatpush1.msra.mxu0 0.0
    %2616 = vmatprep.subr.mxu0 0.0
    %2617 = vmatpush1.msra.mxu0 0.0
    %2618 = vmatprep.subr.mxu0 0.0
    %2619 = vmatpush1.msra.mxu0 0.0
    %2620 = vmatprep.subr.mxu0 0.0
    %2621 = vmatpush1.msra.mxu0 0.0
    %2622 = vmatprep.subr.mxu0 0.0
    %2623 = vmatpush1.msra.mxu0 0.0
    %2624 = vmatprep.subr.mxu0 0.0
    %2625 = vmatpush1.msra.mxu0 0.0
    %2626 = vmatprep.subr.mxu0 0.0
    %2627 = vmatpush1.msra.mxu0 0.0
    %2628 = vmatprep.subr.mxu0 0.0
    %2629 = vmatpush1.msra.mxu0 0.0
    %2630 = vmatprep.subr.mxu0 0.0
    %2631 = vmatpush1.msra.mxu0 0.0
    %2632 = vmatprep.subr.mxu0 0.0
    %2633 = vmatpush1.msra.mxu0 0.0
    %2634 = vmatprep.subr.mxu0 0.0
    %2635 = vmatpush1.msra.mxu0 0.0
    %2636 = vmatprep.subr.mxu0 0.0
    %2637 = vmatpush1.msra.mxu0 0.0
    %2638 = vmatprep.subr.mxu0 0.0
    %2639 = vmatpush1.msra.mxu0 0.0
    %2640 = vmatprep.subr.mxu0 0.0
    %2641 = vmatpush1.msra.mxu0 0.0
    %2642 = vmatprep.subr.mxu0 0.0
    %2643 = vmatpush1.msra.mxu0 0.0
    %2644 = vmatprep.subr.mxu0 0.0
    %2645 = vmatpush1.msra.mxu0 0.0
    %2646 = vmatprep.subr.mxu0 0.0
    %2647 = vmatpush1.msra.mxu0 0.0
    %2648 = vmatprep.subr.mxu0 0.0
    %2649 = vmatpush1.msra.mxu0 0.0
    %2650 = vmatprep.subr.mxu0 0.0
    %2651 = vmatpush1.msra.mxu0 0.0
    %2652 = vmatprep.subr.mxu0 0.0
    %2653 = vmatpush1.msra.mxu0 0.0
    %2654 = vmatprep.subr.mxu0 0.0
    %2655 = vmatpush1.msra.mxu0 0.0
    %2656 = vmatprep.subr.mxu0 0.0
    %2657 = vmatpush1.msra.mxu0 0.0
    %2658 = vmatprep.subr.mxu0 0.0
    %2659 = vmatpush1.msra.mxu0 0.0
    %2660 = vmatprep.subr.mxu0 0.0
    %2661 = vmatpush1.msra.mxu0 0.0
    %2662 = vmatprep.subr.mxu0 0.0
    %2663 = vmatpush1.msra.mxu0 0.0
    %2664 = vmatprep.mubr.f32.mxu0 0.0
    %2665 = vmatmul.mubr.f32.gmra.mrb[0].mxu0 %v2598
    %v2666 = vpop.f32.mrb[0].mxu0
    %v2667 = vadd.f32 %v2594, %v2666
    %v2668 = vpop.f32.mrb[0].mxu0
    %2669 = vdwg.mxu0
    %v2670 = vmax.f32 %v2667, 0.0
    %v2672 = vlaneseq
    %v2673 = vshrl.u32 %v2672, 7
    %v2674 = vsub.s32 0, %v2673
    %v2675 = vrot.slane %v2589, %v2674
    %v2678 = vsel %vm509, %v2670, 0
    %2680 = vmatprep.subr.mxu0 0.0
    %2681 = vmatpush1.msra.mxu0 %v2581
    %2682 = vmatprep.subr.mxu0 0.0
    %2683 = vmatpush1.msra.mxu0 %v2582
    %2684 = vmatprep.subr.mxu0 0.0
    %2685 = vmatpush1.msra.mxu0 %v2583
    %2686 = vmatprep.subr.mxu0 0.0
    %2687 = vmatpush1.msra.mxu0 %v2584
    %2688 = vmatprep.subr.mxu0 0.0
    %2689 = vmatpush1.msra.mxu0 %v2585
    %2690 = vmatprep.subr.mxu0 0.0
    %2691 = vmatpush1.msra.mxu0 %v2586
    %2692 = vmatprep.subr.mxu0 0.0
    %2693 = vmatpush1.msra.mxu0 %v2587
    %2694 = vmatprep.subr.mxu0 0.0
    %2695 = vmatpush1.msra.mxu0 %v2588
    %2696 = vmatprep.subr.mxu0 0.0
    %2697 = vmatpush1.msra.mxu0 0.0
    %2698 = vmatprep.subr.mxu0 0.0
    %2699 = vmatpush1.msra.mxu0 0.0
    %2700 = vmatprep.subr.mxu0 0.0
    %2701 = vmatpush1.msra.mxu0 0.0
    %2702 = vmatprep.subr.mxu0 0.0
    %2703 = vmatpush1.msra.mxu0 0.0
    %2704 = vmatprep.subr.mxu0 0.0
    %2705 = vmatpush1.msra.mxu0 0.0
    %2706 = vmatprep.subr.mxu0 0.0
    %2707 = vmatpush1.msra.mxu0 0.0
    %2708 = vmatprep.subr.mxu0 0.0
    %2709 = vmatpush1.msra.mxu0 0.0
    %2710 = vmatprep.subr.mxu0 0.0
    %2711 = vmatpush1.msra.mxu0 0.0
    %2712 = vmatprep.subr.mxu0 0.0
    %2713 = vmatpush1.msra.mxu0 0.0
    %2714 = vmatprep.subr.mxu0 0.0
    %2715 = vmatpush1.msra.mxu0 0.0
    %2716 = vmatprep.subr.mxu0 0.0
    %2717 = vmatpush1.msra.mxu0 0.0
    %2718 = vmatprep.subr.mxu0 0.0
    %2719 = vmatpush1.msra.mxu0 0.0
    %2720 = vmatprep.subr.mxu0 0.0
    %2721 = vmatpush1.msra.mxu0 0.0
    %2722 = vmatprep.subr.mxu0 0.0
    %2723 = vmatpush1.msra.mxu0 0.0
    %2724 = vmatprep.subr.mxu0 0.0
    %2725 = vmatpush1.msra.mxu0 0.0
    %2726 = vmatprep.subr.mxu0 0.0
    %2727 = vmatpush1.msra.mxu0 0.0
    %2728 = vmatprep.subr.mxu0 0.0
    %2729 = vmatpush1.msra.mxu0 0.0
    %2730 = vmatprep.subr.mxu0 0.0
    %2731 = vmatpush1.msra.mxu0 0.0
    %2732 = vmatprep.subr.mxu0 0.0
    %2733 = vmatpush1.msra.mxu0 0.0
    %2734 = vmatprep.subr.mxu0 0.0
    %2735 = vmatpush1.msra.mxu0 0.0
    %2736 = vmatprep.subr.mxu0 0.0
    %2737 = vmatpush1.msra.mxu0 0.0
    %2738 = vmatprep.subr.mxu0 0.0
    %2739 = vmatpush1.msra.mxu0 0.0
    %2740 = vmatprep.subr.mxu0 0.0
    %2741 = vmatpush1.msra.mxu0 0.0
    %2742 = vmatprep.subr.mxu0 0.0
    %2743 = vmatpush1.msra.mxu0 0.0
    %2744 = vmatprep.mubr.f32.mxu0 0.0
    %2745 = vmatmul.mubr.f32.gmra.mrb[0].mxu0 %v2678
    %v2746 = vpop.f32.mrb[0].mxu0
    %v2747 = vadd.f32 %v2675, %v2746
    %v2748 = vpop.f32.mrb[0].mxu0
    %2749 = vdwg.mxu0
    %v2750 = vld [vmem:[%s59] sm:$0xff]
    %v2751 = vld [vmem:[%s59 + $0x8] sm:$0xff]
    %v2752 = vld [vmem:[%s59 + $0x10] sm:$0xff]
    %v2753 = vld [vmem:[#allocation43] sm:$0xff]
    %v2754 = vld [vmem:[#allocation43 + $0x8] sm:$0xff]
    %v2756 = vsel %vm792, %v1209, 0
    %2758 = vmatprep.subr.mxu0 0.0
    %2759 = vmatpush1.msra.mxu0 %v2753
    %2760 = vmatprep.subr.mxu0 0.0
    %2761 = vmatpush1.msra.mxu0 %v2754
    %2762 = vmatprep.subr.mxu0 0.0
    %2763 = vmatpush1.msra.mxu0 0.0
    %2764 = vmatprep.subr.mxu0 0.0
    %2765 = vmatpush1.msra.mxu0 0.0
    %2766 = vmatprep.subr.mxu0 0.0
    %2767 = vmatpush1.msra.mxu0 0.0
    %2768 = vmatprep.subr.mxu0 0.0
    %2769 = vmatpush1.msra.mxu0 0.0
    %2770 = vmatprep.subr.mxu0 0.0
    %2771 = vmatpush1.msra.mxu0 0.0
    %2772 = vmatprep.subr.mxu0 0.0
    %2773 = vmatpush1.msra.mxu0 0.0
    %2774 = vmatprep.subr.mxu0 0.0
    %2775 = vmatpush1.msra.mxu0 0.0
    %2776 = vmatprep.subr.mxu0 0.0
    %2777 = vmatpush1.msra.mxu0 0.0
    %2778 = vmatprep.subr.mxu0 0.0
    %2779 = vmatpush1.msra.mxu0 0.0
    %2780 = vmatprep.subr.mxu0 0.0
    %2781 = vmatpush1.msra.mxu0 0.0
    %2782 = vmatprep.subr.mxu0 0.0
    %2783 = vmatpush1.msra.mxu0 0.0
    %2784 = vmatprep.subr.mxu0 0.0
    %2785 = vmatpush1.msra.mxu0 0.0
    %2786 = vmatprep.subr.mxu0 0.0
    %2787 = vmatpush1.msra.mxu0 0.0
    %2788 = vmatprep.subr.mxu0 0.0
    %2789 = vmatpush1.msra.mxu0 0.0
    %2790 = vmatprep.subr.mxu0 0.0
    %2791 = vmatpush1.msra.mxu0 0.0
    %2792 = vmatprep.subr.mxu0 0.0
    %2793 = vmatpush1.msra.mxu0 0.0
    %2794 = vmatprep.subr.mxu0 0.0
    %2795 = vmatpush1.msra.mxu0 0.0
    %2796 = vmatprep.subr.mxu0 0.0
    %2797 = vmatpush1.msra.mxu0 0.0
    %2798 = vmatprep.subr.mxu0 0.0
    %2799 = vmatpush1.msra.mxu0 0.0
    %2800 = vmatprep.subr.mxu0 0.0
    %2801 = vmatpush1.msra.mxu0 0.0
    %2802 = vmatprep.subr.mxu0 0.0
    %2803 = vmatpush1.msra.mxu0 0.0
    %2804 = vmatprep.subr.mxu0 0.0
    %2805 = vmatpush1.msra.mxu0 0.0
    %2806 = vmatprep.subr.mxu0 0.0
    %2807 = vmatpush1.msra.mxu0 0.0
    %2808 = vmatprep.subr.mxu0 0.0
    %2809 = vmatpush1.msra.mxu0 0.0
    %2810 = vmatprep.subr.mxu0 0.0
    %2811 = vmatpush1.msra.mxu0 0.0
    %2812 = vmatprep.subr.mxu0 0.0
    %2813 = vmatpush1.msra.mxu0 0.0
    %2814 = vmatprep.subr.mxu0 0.0
    %2815 = vmatpush1.msra.mxu0 0.0
    %2816 = vmatprep.subr.mxu0 0.0
    %2817 = vmatpush1.msra.mxu0 0.0
    %2818 = vmatprep.subr.mxu0 0.0
    %2819 = vmatpush1.msra.mxu0 0.0
    %2820 = vmatprep.subr.mxu0 0.0
    %2821 = vmatpush1.msra.mxu0 0.0
    %2822 = vmatprep.mubr.f32.mxu0 0.0
    %2823 = vmatmul.mubr.f32.gmra.mrb[0].mxu0 %v2756
    %v2824 = vpop.f32.mrb[0].mxu0
    %v2825 = vadd.f32 0.0, %v2824
    %v2826 = vpop.f32.mrb[0].mxu0
    %2827 = vdwg.mxu0
    %v2829 = vsel %vm2596, %v2747, 0
    %2831 = vmatprep.subr.mxu0 0.0
    %2832 = vmatpush1.msra.mxu0 %v2750
    %2833 = vmatprep.subr.mxu0 0.0
    %2834 = vmatpush1.msra.mxu0 %v2751
    %2835 = vmatprep.subr.mxu0 0.0
    %2836 = vmatpush1.msra.mxu0 %v2752
    %2837 = vmatprep.subr.mxu0 0.0
    %2838 = vmatpush1.msra.mxu0 0.0
    %2839 = vmatprep.subr.mxu0 0.0
    %2840 = vmatpush1.msra.mxu0 0.0
    %2841 = vmatprep.subr.mxu0 0.0
    %2842 = vmatpush1.msra.mxu0 0.0
    %2843 = vmatprep.subr.mxu0 0.0
    %2844 = vmatpush1.msra.mxu0 0.0
    %2845 = vmatprep.subr.mxu0 0.0
    %2846 = vmatpush1.msra.mxu0 0.0
    %2847 = vmatprep.subr.mxu0 0.0
    %2848 = vmatpush1.msra.mxu0 0.0
    %2849 = vmatprep.subr.mxu0 0.0
    %2850 = vmatpush1.msra.mxu0 0.0
    %2851 = vmatprep.subr.mxu0 0.0
    %2852 = vmatpush1.msra.mxu0 0.0
    %2853 = vmatprep.subr.mxu0 0.0
    %2854 = vmatpush1.msra.mxu0 0.0
    %2855 = vmatprep.subr.mxu0 0.0
    %2856 = vmatpush1.msra.mxu0 0.0
    %2857 = vmatprep.subr.mxu0 0.0
    %2858 = vmatpush1.msra.mxu0 0.0
    %2859 = vmatprep.subr.mxu0 0.0
    %2860 = vmatpush1.msra.mxu0 0.0
    %2861 = vmatprep.subr.mxu0 0.0
    %2862 = vmatpush1.msra.mxu0 0.0
    %2863 = vmatprep.subr.mxu0 0.0
    %2864 = vmatpush1.msra.mxu0 0.0
    %2865 = vmatprep.subr.mxu0 0.0
    %2866 = vmatpush1.msra.mxu0 0.0
    %2867 = vmatprep.subr.mxu0 0.0
    %2868 = vmatpush1.msra.mxu0 0.0
    %2869 = vmatprep.subr.mxu0 0.0
    %2870 = vmatpush1.msra.mxu0 0.0
    %2871 = vmatprep.subr.mxu0 0.0
    %2872 = vmatpush1.msra.mxu0 0.0
    %2873 = vmatprep.subr.mxu0 0.0
    %2874 = vmatpush1.msra.mxu0 0.0
    %2875 = vmatprep.subr.mxu0 0.0
    %2876 = vmatpush1.msra.mxu0 0.0
    %2877 = vmatprep.subr.mxu0 0.0
    %2878 = vmatpush1.msra.mxu0 0.0
    %2879 = vmatprep.subr.mxu0 0.0
    %2880 = vmatpush1.msra.mxu0 0.0
    %2881 = vmatprep.subr.mxu0 0.0
    %2882 = vmatpush1.msra.mxu0 0.0
    %2883 = vmatprep.subr.mxu0 0.0
    %2884 = vmatpush1.msra.mxu0 0.0
    %2885 = vmatprep.subr.mxu0 0.0
    %2886 = vmatpush1.msra.mxu0 0.0
    %2887 = vmatprep.subr.mxu0 0.0
    %2888 = vmatpush1.msra.mxu0 0.0
    %2889 = vmatprep.subr.mxu0 0.0
    %2890 = vmatpush1.msra.mxu0 0.0
    %2891 = vmatprep.subr.mxu0 0.0
    %2892 = vmatpush1.msra.mxu0 0.0
    %2893 = vmatprep.subr.mxu0 0.0
    %2894 = vmatpush1.msra.mxu0 0.0
    %2895 = vmatprep.mubr.f32.mxu0 0.0
    %2896 = vmatmul.mubr.f32.gmra.mrb[0].mxu0 %v2829
    %v2897 = vpop.f32.mrb[0].mxu0
    %v2898 = vadd.f32 %v2825, %v2897
    %v2899 = vpop.f32.mrb[0].mxu0
    %2900 = vdwg.mxu0
    %v2901 = vld [vmem:[%s63] sm:$0xff]
    %v2902 = vld [vmem:[%s63 + $0x8] sm:$0xff]
    %v2904 = vsel %vm792, %v2573, 0
    %2906 = vmatprep.subr.mxu0 0.0
    %2907 = vmatpush1.msra.mxu0 %v2901
    %2908 = vmatprep.subr.mxu0 0.0
    %2909 = vmatpush1.msra.mxu0 %v2902
    %2910 = vmatprep.subr.mxu0 0.0
    %2911 = vmatpush1.msra.mxu0 0.0
    %2912 = vmatprep.subr.mxu0 0.0
    %2913 = vmatpush1.msra.mxu0 0.0
    %2914 = vmatprep.subr.mxu0 0.0
    %2915 = vmatpush1.msra.mxu0 0.0
    %2916 = vmatprep.subr.mxu0 0.0
    %2917 = vmatpush1.msra.mxu0 0.0
    %2918 = vmatprep.subr.mxu0 0.0
    %2919 = vmatpush1.msra.mxu0 0.0
    %2920 = vmatprep.subr.mxu0 0.0
    %2921 = vmatpush1.msra.mxu0 0.0
    %2922 = vmatprep.subr.mxu0 0.0
    %2923 = vmatpush1.msra.mxu0 0.0
    %2924 = vmatprep.subr.mxu0 0.0
    %2925 = vmatpush1.msra.mxu0 0.0
    %2926 = vmatprep.subr.mxu0 0.0
    %2927 = vmatpush1.msra.mxu0 0.0
    %2928 = vmatprep.subr.mxu0 0.0
    %2929 = vmatpush1.msra.mxu0 0.0
    %2930 = vmatprep.subr.mxu0 0.0
    %2931 = vmatpush1.msra.mxu0 0.0
    %2932 = vmatprep.subr.mxu0 0.0
    %2933 = vmatpush1.msra.mxu0 0.0
    %2934 = vmatprep.subr.mxu0 0.0
    %2935 = vmatpush1.msra.mxu0 0.0
    %2936 = vmatprep.subr.mxu0 0.0
    %2937 = vmatpush1.msra.mxu0 0.0
    %2938 = vmatprep.subr.mxu0 0.0
    %2939 = vmatpush1.msra.mxu0 0.0
    %2940 = vmatprep.subr.mxu0 0.0
    %2941 = vmatpush1.msra.mxu0 0.0
    %2942 = vmatprep.subr.mxu0 0.0
    %2943 = vmatpush1.msra.mxu0 0.0
    %2944 = vmatprep.subr.mxu0 0.0
    %2945 = vmatpush1.msra.mxu0 0.0
    %2946 = vmatprep.subr.mxu0 0.0
    %2947 = vmatpush1.msra.mxu0 0.0
    %2948 = vmatprep.subr.mxu0 0.0
    %2949 = vmatpush1.msra.mxu0 0.0
    %2950 = vmatprep.subr.mxu0 0.0
    %2951 = vmatpush1.msra.mxu0 0.0
    %2952 = vmatprep.subr.mxu0 0.0
    %2953 = vmatpush1.msra.mxu0 0.0
    %2954 = vmatprep.subr.mxu0 0.0
    %2955 = vmatpush1.msra.mxu0 0.0
    %2956 = vmatprep.subr.mxu0 0.0
    %2957 = vmatpush1.msra.mxu0 0.0
    %2958 = vmatprep.subr.mxu0 0.0
    %2959 = vmatpush1.msra.mxu0 0.0
    %2960 = vmatprep.subr.mxu0 0.0
    %2961 = vmatpush1.msra.mxu0 0.0
    %2962 = vmatprep.subr.mxu0 0.0
    %2963 = vmatpush1.msra.mxu0 0.0
    %2964 = vmatprep.subr.mxu0 0.0
    %2965 = vmatpush1.msra.mxu0 0.0
    %2966 = vmatprep.subr.mxu0 0.0
    %2967 = vmatpush1.msra.mxu0 0.0
    %2968 = vmatprep.subr.mxu0 0.0
    %2969 = vmatpush1.msra.mxu0 0.0
    %2970 = vmatprep.mubr.f32.mxu0 0.0
    %2971 = vmatmul.mubr.f32.gmra.mrb[0].mxu0 %v2904
    %v2972 = vpop.f32.mrb[0].mxu0
    %v2973 = vadd.f32 0.0, %v2972
    %v2974 = vpop.f32.mrb[0].mxu0
    %2975 = vdwg.mxu0
    %v2976 = vadd.f32 %v2898, %v2973
    %v2977 = vld [vmem:[%s65] sm:$0x1]
    %v2979 = vlaneseq
    %v2980 = vshrl.u32 %v2979, 7
    %v2981 = vsub.s32 0, %v2980
    %v2982 = vrot.slane %v2977, %v2981
    %v2984 = vadd.f32 %v2976, %v2982
    %v2985 = vmax.f32 %v2984, 0.0
    %v2986 = vld [vmem:[%s67] sm:$0xff]
    %v2987 = vld [vmem:[%s67 + $0x8] sm:$0xff]
    %v2988 = vld [vmem:[%s67 + $0x10] sm:$0xff]
    %v2989 = vld [vmem:[%s67 + $0x18] sm:$0xff]
    %v2990 = vld [vmem:[%s67 + $0x20] sm:$0xff]
    %v2991 = vld [vmem:[%s67 + $0x28] sm:$0xff]
    %v2992 = vld [vmem:[%s67 + $0x30] sm:$0xff]
    %v2993 = vld [vmem:[%s67 + $0x38] sm:$0xff]
    %v2994 = vld [vmem:[#allocation2] sm:$0x1]
    %v2996 = vlaneseq
    %v2997 = vshrl.u32 %v2996, 7
    %v2998 = vsub.s32 0, %v2997
    %v2999 = vrot.slane %v2994, %v2998
    %v3002 = vsel %vm509, %v2985, 0
    %3004 = vmatprep.subr.mxu0 0.0
    %3005 = vmatpush1.msra.mxu0 %v2986
    %3006 = vmatprep.subr.mxu0 0.0
    %3007 = vmatpush1.msra.mxu0 %v2987
    %3008 = vmatprep.subr.mxu0 0.0
    %3009 = vmatpush1.msra.mxu0 %v2988
    %3010 = vmatprep.subr.mxu0 0.0
    %3011 = vmatpush1.msra.mxu0 %v2989
    %3012 = vmatprep.subr.mxu0 0.0
    %3013 = vmatpush1.msra.mxu0 %v2990
    %3014 = vmatprep.subr.mxu0 0.0
    %3015 = vmatpush1.msra.mxu0 %v2991
    %3016 = vmatprep.subr.mxu0 0.0
    %3017 = vmatpush1.msra.mxu0 %v2992
    %3018 = vmatprep.subr.mxu0 0.0
    %3019 = vmatpush1.msra.mxu0 %v2993
    %3020 = vmatprep.subr.mxu0 0.0
    %3021 = vmatpush1.msra.mxu0 0.0
    %3022 = vmatprep.subr.mxu0 0.0
    %3023 = vmatpush1.msra.mxu0 0.0
    %3024 = vmatprep.subr.mxu0 0.0
    %3025 = vmatpush1.msra.mxu0 0.0
    %3026 = vmatprep.subr.mxu0 0.0
    %3027 = vmatpush1.msra.mxu0 0.0
    %3028 = vmatprep.subr.mxu0 0.0
    %3029 = vmatpush1.msra.mxu0 0.0
    %3030 = vmatprep.subr.mxu0 0.0
    %3031 = vmatpush1.msra.mxu0 0.0
    %3032 = vmatprep.subr.mxu0 0.0
    %3033 = vmatpush1.msra.mxu0 0.0
    %3034 = vmatprep.subr.mxu0 0.0
    %3035 = vmatpush1.msra.mxu0 0.0
    %3036 = vmatprep.subr.mxu0 0.0
    %3037 = vmatpush1.msra.mxu0 0.0
    %3038 = vmatprep.subr.mxu0 0.0
    %3039 = vmatpush1.msra.mxu0 0.0
    %3040 = vmatprep.subr.mxu0 0.0
    %3041 = vmatpush1.msra.mxu0 0.0
    %3042 = vmatprep.subr.mxu0 0.0
    %3043 = vmatpush1.msra.mxu0 0.0
    %3044 = vmatprep.subr.mxu0 0.0
    %3045 = vmatpush1.msra.mxu0 0.0
    %3046 = vmatprep.subr.mxu0 0.0
    %3047 = vmatpush1.msra.mxu0 0.0
    %3048 = vmatprep.subr.mxu0 0.0
    %3049 = vmatpush1.msra.mxu0 0.0
    %3050 = vmatprep.subr.mxu0 0.0
    %3051 = vmatpush1.msra.mxu0 0.0
    %3052 = vmatprep.subr.mxu0 0.0
    %3053 = vmatpush1.msra.mxu0 0.0
    %3054 = vmatprep.subr.mxu0 0.0
    %3055 = vmatpush1.msra.mxu0 0.0
    %3056 = vmatprep.subr.mxu0 0.0
    %3057 = vmatpush1.msra.mxu0 0.0
    %3058 = vmatprep.subr.mxu0 0.0
    %3059 = vmatpush1.msra.mxu0 0.0
    %3060 = vmatprep.subr.mxu0 0.0
    %3061 = vmatpush1.msra.mxu0 0.0
    %3062 = vmatprep.subr.mxu0 0.0
    %3063 = vmatpush1.msra.mxu0 0.0
    %3064 = vmatprep.subr.mxu0 0.0
    %3065 = vmatpush1.msra.mxu0 0.0
    %3066 = vmatprep.subr.mxu0 0.0
    %3067 = vmatpush1.msra.mxu0 0.0
    %3068 = vmatprep.mubr.f32.mxu0 0.0
    %3069 = vmatmul.mubr.f32.gmra.mrb[0].mxu0 %v3002
    %v3070 = vpop.f32.mrb[0].mxu0
    %v3071 = vadd.f32 %v2999, %v3070
    %v3072 = vpop.f32.mrb[0].mxu0
    %3073 = vdwg.mxu0
    %vm3074 = vcmask 1024
    %3075 = vst.msk [vmem:[%s71] sm:$0x3] %vm3074, %v3071
    // Predicated region
    $region250: #{genapon_forward.1} parent=1 // pred_check
      _
    $region251: #{genapon_forward.1} parent=1 // pred_check_branch
      %3077 = sbr.rel (0) target = $region253
    $region252: #{genapon_forward.1} parent=1 // pred_region
      _
    $region253: #{genapon_forward.1} parent=1 // pred_fallthru
      _
    // Predicated region
    $region254: #{genapon_forward.1} parent=1 // pred_check
      _
    $region255: #{genapon_forward.1} parent=1 // pred_check_branch
      %3079 = sbr.rel (0) target = $region257
    $region256: #{genapon_forward.1} parent=1 // pred_region
      _
    $region257: #{genapon_forward.1} parent=1 // pred_fallthru
      _
    %3080 = vsyncpa [#allocation4], 1
    %3081 = vsyncpa [#allocation6], 1
    %3082 = vsyncpa [#allocation9], 1
    %3083 = vsyncpa [#allocation12], 1
    %3084 = vsyncpa [#allocation15], 1
    %3085 = vsyncpa [#allocation18], 1
    %3086 = vsyncpa [#allocation21], 1
    %3087 = vsyncpa [#allocation24], 1
    %3088 = vsyncpa [#allocation27], 1
    %3089 = vsyncpa [#allocation30], 1
    %3090 = vsyncpa [#allocation33], 1
    %3091 = vsyncpa [#allocation36], 1
    %3092 = vsyncpa [#allocation39], 1
    %3093 = vsyncpa [#allocation42], 1

</llo_original>
